<compile_context>
chip_gen: v5e
topology: v5e:2x2
jax: 0.10.0
libtpu: 0.0.40
codegen_flags: <defaults>
</compile_context>

<pallas_src>
import math

import jax
import jax.numpy as jnp
from jax.experimental import pallas as pl
from jax.experimental.pallas import tpu as pltpu

# Static conv configuration for stackSize=4: (cin, cout, kernel, stride).
CONV_CFG = (
    (4, 8, 4, 2),
    (8, 16, 3, 2),
    (16, 32, 3, 2),
    (32, 64, 3, 2),
    (64, 128, 3, 1),
    (128, 256, 3, 1),
)


def _round_up(v, m):
    return ((v + m - 1) // m) * m


# ----------------------------------------------------------------------------
# Pallas kernel 1: row-tile matmul + bias + ReLU (used by every conv layer)
# ----------------------------------------------------------------------------
def _matmul_bias_relu_kernel(x_ref, w_ref, b_ref, o_ref):
    y = jnp.dot(x_ref[...], w_ref[...], preferred_element_type=jnp.float32)
    y = jnp.maximum(y + b_ref[...], 0.0)            # bias + ReLU in f32
    o_ref[...] = y.astype(o_ref.dtype)


def pallas_matmul_bias_relu(x, w, b, *, out_dtype=jnp.bfloat16, max_tm=1024):
    """ReLU(x @ w + b). x:(M,K) bf16, w:(K,N) bf16, b:(N,) f32 -> (M,N) out_dtype."""
    M, K = x.shape
    Kw, N = w.shape
    assert K == Kw
    if M <= max_tm:
        tm, Mp = M, M                # one block == full array -> no row padding
    else:
        nt = -(-M // max_tm)         # number of row tiles
        tm = _round_up(-(-M // nt), 8)
        Mp = tm * nt
    x_p = x if Mp == M else jnp.pad(x, ((0, Mp - M), (0, 0)))

    out = pl.pallas_call(
        _matmul_bias_relu_kernel,
        out_shape=jax.ShapeDtypeStruct((Mp, N), out_dtype),
        grid=(Mp // tm,),
        in_specs=[
            pl.BlockSpec((tm, K), lambda i: (i, 0)),   # row tile of patches
            pl.BlockSpec((K, N), lambda i: (0, 0)),    # full weight (tiny, VMEM-resident)
            pl.BlockSpec((1, N), lambda i: (0, 0)),    # bias row
        ],
        out_specs=pl.BlockSpec((tm, N), lambda i: (i, 0)),
        compiler_params=pltpu.CompilerParams(dimension_semantics=("parallel",)),
    )(x_p, w, b.reshape(1, N))
    return out if Mp == M else out[:M]


# ----------------------------------------------------------------------------
# Conv2d (VALID, cross-correlation, NHWC): fused patch extraction + Pallas matmul
# ----------------------------------------------------------------------------
def conv2d_relu(x_nhwc, w2d, b, k, stride):
    n, h, w, cin = x_nhwc.shape
    oh = (h - k) // stride + 1
    ow = (w - k) // stride + 1
    cout = w2d.shape[1]
    # TODO(synk): patch extraction stays as a single fused XLA op; moving it into
    # the Pallas kernel needs multi-dim strided ref gather (not done here).
    patches = jax.lax.conv_general_dilated_patches(
        x_nhwc, filter_shape=(k, k), window_strides=(stride, stride),
        padding="VALID", dimension_numbers=("NHWC", "HWIO", "NHWC"))
    y = pallas_matmul_bias_relu(patches.reshape(n * oh * ow, k * k * cin), w2d, b)
    return y.reshape(n, oh, ow, cout)


# ----------------------------------------------------------------------------
# Pallas kernel 2: fully fused head (fc/v1 + ReLU, alpha/beta softplus+1, v)
# ----------------------------------------------------------------------------
def _head_kernel(feat_ref, w1_ref, b1_ref, wab_ref, bab_ref, wv_ref, bv_ref,
                 ab_ref, v_ref):
    feat = feat_ref[...]                                               # (M,256) bf16
    h_all = jnp.dot(feat, w1_ref[...], preferred_element_type=jnp.float32)
    h_all = jnp.maximum(h_all + b1_ref[...], 0.0)                      # (M,256) f32
    h_fc = h_all[:, :128]      # fc hidden (cols 100..127 are structural zeros)
    h_v = h_all[:, 128:]       # v hidden  (cols 228..255 are structural zeros)
    ab = jnp.dot(h_fc, wab_ref[...], preferred_element_type=jnp.float32) + bab_ref[...]
    ab = jnp.maximum(ab, 0.0) + jnp.log1p(jnp.exp(-jnp.abs(ab))) + 1.0  # softplus + 1
    v = jnp.dot(h_v, wv_ref[...], preferred_element_type=jnp.float32) + bv_ref[...]
    ab_ref[...] = ab
    v_ref[...] = v


def pallas_head(feat, p):
    m = feat.shape[0]
    return pl.pallas_call(
        _head_kernel,
        out_shape=(jax.ShapeDtypeStruct((m, 6), jnp.float32),
                   jax.ShapeDtypeStruct((m, 1), jnp.float32)),
        grid=(1,),
        in_specs=[
            pl.BlockSpec((m, 256), lambda i: (0, 0)),
            pl.BlockSpec((256, 256), lambda i: (0, 0)),
            pl.BlockSpec((1, 256), lambda i: (0, 0)),
            pl.BlockSpec((128, 6), lambda i: (0, 0)),
            pl.BlockSpec((1, 6), lambda i: (0, 0)),
            pl.BlockSpec((128, 1), lambda i: (0, 0)),
            pl.BlockSpec((1, 1), lambda i: (0, 0)),
        ],
        out_specs=(
            pl.BlockSpec((m, 6), lambda i: (0, 0)),
            pl.BlockSpec((m, 1), lambda i: (0, 0)),
        ),
    )(feat, p["w1"], p["b1"], p["wab"], p["bab"], p["wv2"], p["bv2"])


# ----------------------------------------------------------------------------
# Parameter construction (deterministic, mirrors NN.__init__ shapes / init)
# ----------------------------------------------------------------------------
def _xavier_uniform_conv2d(key, cin, cout, k):
    gain = math.sqrt(2.0)                               # calculate_gain('relu')
    fan_in, fan_out = cin * k * k, cout * k * k
    bound = gain * math.sqrt(6.0 / (fan_in + fan_out))
    return jax.random.uniform(key, (cin * k * k, cout), jnp.float32, -bound, bound)


def _torch_linear_init(key, fan_in, fan_out):
    kw_, kb_ = jax.random.split(key)
    bound = 1.0 / math.sqrt(fan_in)
    w = jax.random.uniform(kw_, (fan_in, fan_out), jnp.float32, -bound, bound)
    b = jax.random.uniform(kb_, (fan_out,), jnp.float32, -bound, bound)
    return w, b


def init_params(key):
    keys = jax.random.split(key, len(CONV_CFG) + 5)
    conv = []
    for i, (cin, cout, k, _s) in enumerate(CONV_CFG):
        w = _xavier_uniform_conv2d(keys[i], cin, cout, k).astype(jnp.bfloat16)
        b = jnp.full((cout,), 0.1, jnp.float32)         # constant_(bias, 0.1)
        conv.append((w, b))
    ko = keys[len(CONV_CFG):]
    fc_w, fc_b = _torch_linear_init(ko[0], 256, 100)
    a_w, a_b = _torch_linear_init(ko[1], 100, 3)
    b_w, b_b = _torch_linear_init(ko[2], 100, 3)
    v1_w, v1_b = _torch_linear_init(ko[3], 256, 100)
    v2_w, v2_b = _torch_linear_init(ko[4], 100, 1)

    # Fused, lane-aligned head parameters:
    #   w1: fc(256->100) in cols 0:100, v-hidden(256->100) in cols 128:228, zeros elsewhere.
    w1 = jnp.zeros((256, 256), jnp.float32).at[:, :100].set(fc_w).at[:, 128:228].set(v1_w)
    b1 = jnp.zeros((256,), jnp.float32).at[:100].set(fc_b).at[128:228].set(v1_b)
    #   wab: alpha & beta heads fused; acts on h_all[:, :128] (zero rows past 100).
    wab = jnp.zeros((128, 6), jnp.float32).at[:100, :3].set(a_w).at[:100, 3:].set(b_w)
    bab = jnp.concatenate([a_b, b_b])
    #   wv2: value head; acts on h_all[:, 128:] (zero rows past 100).
    wv2 = jnp.zeros((128, 1), jnp.float32).at[:100, :].set(v2_w)
    return {
        "conv": conv,
        "w1": w1.astype(jnp.bfloat16), "b1": b1.reshape(1, 256),
        "wab": wab, "bab": bab.reshape(1, 6),
        "wv2": wv2, "bv2": v2_b.reshape(1, 1),
    }


# ----------------------------------------------------------------------------
# Forward pass (matches NN.forward semantics)
# ----------------------------------------------------------------------------
def nn_forward(x_nchw, params):
    # NCHW -> NHWC, bf16 activations end-to-end (f32 accumulation inside kernels).
    x = jnp.transpose(x_nchw, (0, 2, 3, 1)).astype(jnp.bfloat16)
    for (cin, cout, k, s), (w2d, b) in zip(CONV_CFG, params["conv"]):
        x = conv2d_relu(x, w2d, b, k, s)                 # conv + ReLU
    feat = x.reshape(-1, 256)                            # .view(-1, 256)
    ab, v = pallas_head(feat, params)                    # fc/v/alpha/beta in one kernel
    alpha, beta = ab[:, :3], ab[:, 3:]
    return (alpha, beta), v


if __name__ == "__main__":
    key = jax.random.PRNGKey(0)
    k_param, k_x = jax.random.split(key)
    params = init_params(k_param)

    # 96x96 spatial input is required so the final conv feature map is 1x1x256
    # (matching `.view(-1, 256)` in the reference); batch kept small at 2.
    x = jax.random.normal(k_x, (2, 4, 96, 96), jnp.float32)

    (alpha, beta), v = jax.jit(nn_forward)(x, params)
    jax.block_until_ready((alpha, beta, v))

    assert alpha.shape == (2, 3) and beta.shape == (2, 3) and v.shape == (2, 1)
    assert bool(jnp.all(alpha >= 1.0)) and bool(jnp.all(beta >= 1.0))
    print("KERNEL_OK")
</pallas_src>

<mosaic_0001>
module attributes {stable_mosaic.version = 11 : i64} {
  func.func @_matmul_bias_relu_kernel(%arg0: i32, %arg1: memref<888x64xbf16, #tpu.memory_space<vmem>>, %arg2: memref<64x8xbf16, #tpu.memory_space<vmem>>, %arg3: memref<1x8xf32, #tpu.memory_space<vmem>>, %arg4: memref<888x8xbf16, #tpu.memory_space<vmem>>) attributes {dimension_semantics = [#tpu.dimension_semantics<parallel>], iteration_bounds = array<i64: 5>, scalar_prefetch = 0 : i64, scratch_operands = 0 : i64, tpu.core_type = #tpu.core_type<tc>, window_params = [{transform_indices = @transform_0, window_bounds = array<i64: 888, 64>}, {pipeline_mode = #tpu.pipeline_mode<synchronous>, transform_indices = @transform_1, window_bounds = array<i64: 64, 8>}, {pipeline_mode = #tpu.pipeline_mode<synchronous>, transform_indices = @transform_2, window_bounds = array<i64: 1, 8>}, {transform_indices = @transform_3, window_bounds = array<i64: 888, 8>}]} {
    %c0 = arith.constant 0 : index
    %c0_0 = arith.constant 0 : index
    %0 = vector.load %arg1[%c0, %c0_0] : memref<888x64xbf16, #tpu.memory_space<vmem>>, vector<888x64xbf16>
    %c0_1 = arith.constant 0 : index
    %c0_2 = arith.constant 0 : index
    %1 = vector.load %arg2[%c0_1, %c0_2] : memref<64x8xbf16, #tpu.memory_space<vmem>>, vector<64x8xbf16>
    %cst = arith.constant dense<0.000000e+00> : vector<888x8xf32>
    %2 = tpu.matmul %0, %1, %cst {dimension_numbers = #tpu.dot_dimension_numbers<[1], [0], [0], [1], [0, 0, 1, 1], [], []>} : vector<888x64xbf16>, vector<64x8xbf16>, vector<888x8xf32> -> vector<888x8xf32>
    %c0_3 = arith.constant 0 : index
    %c0_4 = arith.constant 0 : index
    %3 = vector.load %arg3[%c0_3, %c0_4] : memref<1x8xf32, #tpu.memory_space<vmem>>, vector<1x8xf32>
    %4 = vector.broadcast %3 : vector<1x8xf32> to vector<888x8xf32>
    %5 = arith.addf %2, %4 : vector<888x8xf32>
    %cst_5 = arith.constant 0.000000e+00 : f32
    %6 = vector.broadcast %cst_5 : f32 to vector<888x8xf32>
    %7 = arith.maximumf %5, %6 : vector<888x8xf32>
    %8 = arith.truncf %7 : vector<888x8xf32> to vector<888x8xbf16>
    %c0_6 = arith.constant 0 : index
    %c0_7 = arith.constant 0 : index
    %9 = vector.load %arg4[%c0_6, %c0_7] : memref<888x8xbf16, #tpu.memory_space<vmem>>, vector<888x8xbf16>
    tpu.vector_store %arg4[%c0_6, %c0_7], %8 {strides = array<i32>} : memref<888x8xbf16, #tpu.memory_space<vmem>>, vector<888x8xbf16>,
    return
  }
  func.func @transform_0(%arg0: i32) -> (i32, i32) {
    %c0_i32 = arith.constant 0 : i32
    %c0_i32_0 = arith.constant 0 : i32
    return %arg0, %c0_i32 : i32, i32
  }
  func.func @transform_1(%arg0: i32) -> (i32, i32) {
    %c0_i32 = arith.constant 0 : i32
    %c0_i32_0 = arith.constant 0 : i32
    %c0_i32_1 = arith.constant 0 : i32
    return %c0_i32, %c0_i32_0 : i32, i32
  }
  func.func @transform_2(%arg0: i32) -> (i32, i32) {
    %c0_i32 = arith.constant 0 : i32
    %c0_i32_0 = arith.constant 0 : i32
    %c0_i32_1 = arith.constant 0 : i32
    return %c0_i32, %c0_i32_0 : i32, i32
  }
  func.func @transform_3(%arg0: i32) -> (i32, i32) {
    %c0_i32 = arith.constant 0 : i32
    %c0_i32_0 = arith.constant 0 : i32
    return %arg0, %c0_i32 : i32, i32
  }
}

module attributes {stable_mosaic.version = 11 : i64} {
  func.func @_matmul_bias_relu_kernel(%arg0: i32, %arg1: memref<536x72xbf16, #tpu.memory_space<vmem>>, %arg2: memref<72x16xbf16, #tpu.memory_space<vmem>>, %arg3: memref<1x16xf32, #tpu.memory_space<vmem>>, %arg4: memref<536x16xbf16, #tpu.memory_space<vmem>>) attributes {dimension_semantics = [#tpu.dimension_semantics<parallel>], iteration_bounds = array<i64: 2>, scalar_prefetch = 0 : i64, scratch_operands = 0 : i64, tpu.core_type = #tpu.core_type<tc>, window_params = [{transform_indices = @transform_0, window_bounds = array<i64: 536, 72>}, {pipeline_mode = #tpu.pipeline_mode<synchronous>, transform_indices = @transform_1, window_bounds = array<i64: 72, 16>}, {pipeline_mode = #tpu.pipeline_mode<synchronous>, transform_indices = @transform_2, window_bounds = array<i64: 1, 16>}, {transform_indices = @transform_3, window_bounds = array<i64: 536, 16>}]} {
    %c0 = arith.constant 0 : index
    %c0_0 = arith.constant 0 : index
    %0 = vector.load %arg1[%c0, %c0_0] : memref<536x72xbf16, #tpu.memory_space<vmem>>, vector<536x72xbf16>
    %c0_1 = arith.constant 0 : index
    %c0_2 = arith.constant 0 : index
    %1 = vector.load %arg2[%c0_1, %c0_2] : memref<72x16xbf16, #tpu.memory_space<vmem>>, vector<72x16xbf16>
    %cst = arith.constant dense<0.000000e+00> : vector<536x16xf32>
    %2 = tpu.matmul %0, %1, %cst {dimension_numbers = #tpu.dot_dimension_numbers<[1], [0], [0], [1], [0, 0, 1, 1], [], []>} : vector<536x72xbf16>, vector<72x16xbf16>, vector<536x16xf32> -> vector<536x16xf32>
    %c0_3 = arith.constant 0 : index
    %c0_4 = arith.constant 0 : index
    %3 = vector.load %arg3[%c0_3, %c0_4] : memref<1x16xf32, #tpu.memory_space<vmem>>, vector<1x16xf32>
    %4 = vector.broadcast %3 : vector<1x16xf32> to vector<536x16xf32>
    %5 = arith.addf %2, %4 : vector<536x16xf32>
    %cst_5 = arith.constant 0.000000e+00 : f32
    %6 = vector.broadcast %cst_5 : f32 to vector<536x16xf32>
    %7 = arith.maximumf %5, %6 : vector<536x16xf32>
    %8 = arith.truncf %7 : vector<536x16xf32> to vector<536x16xbf16>
    %c0_6 = arith.constant 0 : index
    %c0_7 = arith.constant 0 : index
    %9 = vector.load %arg4[%c0_6, %c0_7] : memref<536x16xbf16, #tpu.memory_space<vmem>>, vector<536x16xbf16>
    tpu.vector_store %arg4[%c0_6, %c0_7], %8 {strides = array<i32>} : memref<536x16xbf16, #tpu.memory_space<vmem>>, vector<536x16xbf16>,
    return
  }
  func.func @transform_0(%arg0: i32) -> (i32, i32) {
    %c0_i32 = arith.constant 0 : i32
    %c0_i32_0 = arith.constant 0 : i32
    return %arg0, %c0_i32 : i32, i32
  }
  func.func @transform_1(%arg0: i32) -> (i32, i32) {
    %c0_i32 = arith.constant 0 : i32
    %c0_i32_0 = arith.constant 0 : i32
    %c0_i32_1 = arith.constant 0 : i32
    return %c0_i32, %c0_i32_0 : i32, i32
  }
  func.func @transform_2(%arg0: i32) -> (i32, i32) {
    %c0_i32 = arith.constant 0 : i32
    %c0_i32_0 = arith.constant 0 : i32
    %c0_i32_1 = arith.constant 0 : i32
    return %c0_i32, %c0_i32_0 : i32, i32
  }
  func.func @transform_3(%arg0: i32) -> (i32, i32) {
    %c0_i32 = arith.constant 0 : i32
    %c0_i32_0 = arith.constant 0 : i32
    return %arg0, %c0_i32 : i32, i32
  }
}

module attributes {stable_mosaic.version = 11 : i64} {
  func.func @_matmul_bias_relu_kernel(%arg0: i32, %arg1: memref<242x144xbf16, #tpu.memory_space<vmem>>, %arg2: memref<144x32xbf16, #tpu.memory_space<vmem>>, %arg3: memref<1x32xf32, #tpu.memory_space<vmem>>, %arg4: memref<242x32xbf16, #tpu.memory_space<vmem>>) attributes {dimension_semantics = [#tpu.dimension_semantics<parallel>], iteration_bounds = array<i64: 1>, scalar_prefetch = 0 : i64, scratch_operands = 0 : i64, tpu.core_type = #tpu.core_type<tc>, window_params = [{transform_indices = @transform_0, window_bounds = array<i64: 242, 144>}, {pipeline_mode = #tpu.pipeline_mode<synchronous>, transform_indices = @transform_1, window_bounds = array<i64: 144, 32>}, {pipeline_mode = #tpu.pipeline_mode<synchronous>, transform_indices = @transform_2, window_bounds = array<i64: 1, 32>}, {transform_indices = @transform_3, window_bounds = array<i64: 242, 32>}]} {
    %c0 = arith.constant 0 : index
    %c0_0 = arith.constant 0 : index
    %0 = vector.load %arg1[%c0, %c0_0] : memref<242x144xbf16, #tpu.memory_space<vmem>>, vector<242x144xbf16>
    %c0_1 = arith.constant 0 : index
    %c0_2 = arith.constant 0 : index
    %1 = vector.load %arg2[%c0_1, %c0_2] : memref<144x32xbf16, #tpu.memory_space<vmem>>, vector<144x32xbf16>
    %cst = arith.constant dense<0.000000e+00> : vector<242x32xf32>
    %2 = tpu.matmul %0, %1, %cst {dimension_numbers = #tpu.dot_dimension_numbers<[1], [0], [0], [1], [0, 0, 1, 1], [], []>} : vector<242x144xbf16>, vector<144x32xbf16>, vector<242x32xf32> -> vector<242x32xf32>
    %c0_3 = arith.constant 0 : index
    %c0_4 = arith.constant 0 : index
    %3 = vector.load %arg3[%c0_3, %c0_4] : memref<1x32xf32, #tpu.memory_space<vmem>>, vector<1x32xf32>
    %4 = vector.broadcast %3 : vector<1x32xf32> to vector<242x32xf32>
    %5 = arith.addf %2, %4 : vector<242x32xf32>
    %cst_5 = arith.constant 0.000000e+00 : f32
    %6 = vector.broadcast %cst_5 : f32 to vector<242x32xf32>
    %7 = arith.maximumf %5, %6 : vector<242x32xf32>
    %8 = arith.truncf %7 : vector<242x32xf32> to vector<242x32xbf16>
    %c0_6 = arith.constant 0 : index
    %c0_7 = arith.constant 0 : index
    %9 = vector.load %arg4[%c0_6, %c0_7] : memref<242x32xbf16, #tpu.memory_space<vmem>>, vector<242x32xbf16>
    tpu.vector_store %arg4[%c0_6, %c0_7], %8 {strides = array<i32>} : memref<242x32xbf16, #tpu.memory_space<vmem>>, vector<242x32xbf16>,
    return
  }
  func.func @transform_0(%arg0: i32) -> (i32, i32) {
    %c0_i32 = arith.constant 0 : i32
    %c0_i32_0 = arith.constant 0 : i32
    return %arg0, %c0_i32 : i32, i32
  }
  func.func @transform_1(%arg0: i32) -> (i32, i32) {
    %c0_i32 = arith.constant 0 : i32
    %c0_i32_0 = arith.constant 0 : i32
    %c0_i32_1 = arith.constant 0 : i32
    return %c0_i32, %c0_i32_0 : i32, i32
  }
  func.func @transform_2(%arg0: i32) -> (i32, i32) {
    %c0_i32 = arith.constant 0 : i32
    %c0_i32_0 = arith.constant 0 : i32
    %c0_i32_1 = arith.constant 0 : i32
    return %c0_i32, %c0_i32_0 : i32, i32
  }
  func.func @transform_3(%arg0: i32) -> (i32, i32) {
    %c0_i32 = arith.constant 0 : i32
    %c0_i32_0 = arith.constant 0 : i32
    return %arg0, %c0_i32 : i32, i32
  }
}

module attributes {stable_mosaic.version = 11 : i64} {
  func.func @_matmul_bias_relu_kernel(%arg0: i32, %arg1: memref<50x288xbf16, #tpu.memory_space<vmem>>, %arg2: memref<288x64xbf16, #tpu.memory_space<vmem>>, %arg3: memref<1x64xf32, #tpu.memory_space<vmem>>, %arg4: memref<50x64xbf16, #tpu.memory_space<vmem>>) attributes {dimension_semantics = [#tpu.dimension_semantics<parallel>], iteration_bounds = array<i64: 1>, scalar_prefetch = 0 : i64, scratch_operands = 0 : i64, tpu.core_type = #tpu.core_type<tc>, window_params = [{transform_indices = @transform_0, window_bounds = array<i64: 50, 288>}, {pipeline_mode = #tpu.pipeline_mode<synchronous>, transform_indices = @transform_1, window_bounds = array<i64: 288, 64>}, {pipeline_mode = #tpu.pipeline_mode<synchronous>, transform_indices = @transform_2, window_bounds = array<i64: 1, 64>}, {transform_indices = @transform_3, window_bounds = array<i64: 50, 64>}]} {
    %c0 = arith.constant 0 : index
    %c0_0 = arith.constant 0 : index
    %0 = vector.load %arg1[%c0, %c0_0] : memref<50x288xbf16, #tpu.memory_space<vmem>>, vector<50x288xbf16>
    %c0_1 = arith.constant 0 : index
    %c0_2 = arith.constant 0 : index
    %1 = vector.load %arg2[%c0_1, %c0_2] : memref<288x64xbf16, #tpu.memory_space<vmem>>, vector<288x64xbf16>
    %cst = arith.constant dense<0.000000e+00> : vector<50x64xf32>
    %2 = tpu.matmul %0, %1, %cst {dimension_numbers = #tpu.dot_dimension_numbers<[1], [0], [0], [1], [0, 0, 1, 1], [], []>} : vector<50x288xbf16>, vector<288x64xbf16>, vector<50x64xf32> -> vector<50x64xf32>
    %c0_3 = arith.constant 0 : index
    %c0_4 = arith.constant 0 : index
    %3 = vector.load %arg3[%c0_3, %c0_4] : memref<1x64xf32, #tpu.memory_space<vmem>>, vector<1x64xf32>
    %4 = vector.broadcast %3 : vector<1x64xf32> to vector<50x64xf32>
    %5 = arith.addf %2, %4 : vector<50x64xf32>
    %cst_5 = arith.constant 0.000000e+00 : f32
    %6 = vector.broadcast %cst_5 : f32 to vector<50x64xf32>
    %7 = arith.maximumf %5, %6 : vector<50x64xf32>
    %8 = arith.truncf %7 : vector<50x64xf32> to vector<50x64xbf16>
    %c0_6 = arith.constant 0 : index
    %c0_7 = arith.constant 0 : index
    %9 = vector.load %arg4[%c0_6, %c0_7] : memref<50x64xbf16, #tpu.memory_space<vmem>>, vector<50x64xbf16>
    tpu.vector_store %arg4[%c0_6, %c0_7], %8 {strides = array<i32>} : memref<50x64xbf16, #tpu.memory_space<vmem>>, vector<50x64xbf16>,
    return
  }
  func.func @transform_0(%arg0: i32) -> (i32, i32) {
    %c0_i32 = arith.constant 0 : i32
    %c0_i32_0 = arith.constant 0 : i32
    return %arg0, %c0_i32 : i32, i32
  }
  func.func @transform_1(%arg0: i32) -> (i32, i32) {
    %c0_i32 = arith.constant 0 : i32
    %c0_i32_0 = arith.constant 0 : i32
    %c0_i32_1 = arith.constant 0 : i32
    return %c0_i32, %c0_i32_0 : i32, i32
  }
  func.func @transform_2(%arg0: i32) -> (i32, i32) {
    %c0_i32 = arith.constant 0 : i32
    %c0_i32_0 = arith.constant 0 : i32
    %c0_i32_1 = arith.constant 0 : i32
    return %c0_i32, %c0_i32_0 : i32, i32
  }
  func.func @transform_3(%arg0: i32) -> (i32, i32) {
    %c0_i32 = arith.constant 0 : i32
    %c0_i32_0 = arith.constant 0 : i32
    return %arg0, %c0_i32 : i32, i32
  }
}

module attributes {stable_mosaic.version = 11 : i64} {
  func.func @_matmul_bias_relu_kernel(%arg0: i32, %arg1: memref<18x576xbf16, #tpu.memory_space<vmem>>, %arg2: memref<576x128xbf16, #tpu.memory_space<vmem>>, %arg3: memref<1x128xf32, #tpu.memory_space<vmem>>, %arg4: memref<18x128xbf16, #tpu.memory_space<vmem>>) attributes {dimension_semantics = [#tpu.dimension_semantics<parallel>], iteration_bounds = array<i64: 1>, scalar_prefetch = 0 : i64, scratch_operands = 0 : i64, tpu.core_type = #tpu.core_type<tc>, window_params = [{transform_indices = @transform_0, window_bounds = array<i64: 18, 576>}, {pipeline_mode = #tpu.pipeline_mode<synchronous>, transform_indices = @transform_1, window_bounds = array<i64: 576, 128>}, {pipeline_mode = #tpu.pipeline_mode<synchronous>, transform_indices = @transform_2, window_bounds = array<i64: 1, 128>}, {transform_indices = @transform_3, window_bounds = array<i64: 18, 128>}]} {
    %c0 = arith.constant 0 : index
    %c0_0 = arith.constant 0 : index
    %0 = vector.load %arg1[%c0, %c0_0] : memref<18x576xbf16, #tpu.memory_space<vmem>>, vector<18x576xbf16>
    %c0_1 = arith.constant 0 : index
    %c0_2 = arith.constant 0 : index
    %1 = vector.load %arg2[%c0_1, %c0_2] : memref<576x128xbf16, #tpu.memory_space<vmem>>, vector<576x128xbf16>
    %cst = arith.constant dense<0.000000e+00> : vector<18x128xf32>
    %2 = tpu.matmul %0, %1, %cst {dimension_numbers = #tpu.dot_dimension_numbers<[1], [0], [0], [1], [0, 0, 1, 1], [], []>} : vector<18x576xbf16>, vector<576x128xbf16>, vector<18x128xf32> -> vector<18x128xf32>
    %c0_3 = arith.constant 0 : index
    %c0_4 = arith.constant 0 : index
    %3 = vector.load %arg3[%c0_3, %c0_4] : memref<1x128xf32, #tpu.memory_space<vmem>>, vector<1x128xf32>
    %4 = vector.broadcast %3 : vector<1x128xf32> to vector<18x128xf32>
    %5 = arith.addf %2, %4 : vector<18x128xf32>
    %cst_5 = arith.constant 0.000000e+00 : f32
    %6 = vector.broadcast %cst_5 : f32 to vector<18x128xf32>
    %7 = arith.maximumf %5, %6 : vector<18x128xf32>
    %8 = arith.truncf %7 : vector<18x128xf32> to vector<18x128xbf16>
    %c0_6 = arith.constant 0 : index
    %c0_7 = arith.constant 0 : index
    %9 = vector.load %arg4[%c0_6, %c0_7] : memref<18x128xbf16, #tpu.memory_space<vmem>>, vector<18x128xbf16>
    tpu.vector_store %arg4[%c0_6, %c0_7], %8 {strides = array<i32>} : memref<18x128xbf16, #tpu.memory_space<vmem>>, vector<18x128xbf16>,
    return
  }
  func.func @transform_0(%arg0: i32) -> (i32, i32) {
    %c0_i32 = arith.constant 0 : i32
    %c0_i32_0 = arith.constant 0 : i32
    return %arg0, %c0_i32 : i32, i32
  }
  func.func @transform_1(%arg0: i32) -> (i32, i32) {
    %c0_i32 = arith.constant 0 : i32
    %c0_i32_0 = arith.constant 0 : i32
    %c0_i32_1 = arith.constant 0 : i32
    return %c0_i32, %c0_i32_0 : i32, i32
  }
  func.func @transform_2(%arg0: i32) -> (i32, i32) {
    %c0_i32 = arith.constant 0 : i32
    %c0_i32_0 = arith.constant 0 : i32
    %c0_i32_1 = arith.constant 0 : i32
    return %c0_i32, %c0_i32_0 : i32, i32
  }
  func.func @transform_3(%arg0: i32) -> (i32, i32) {
    %c0_i32 = arith.constant 0 : i32
    %c0_i32_0 = arith.constant 0 : i32
    return %arg0, %c0_i32 : i32, i32
  }
}

module attributes {stable_mosaic.version = 11 : i64} {
  func.func @_matmul_bias_relu_kernel(%arg0: i32, %arg1: memref<2x1152xbf16, #tpu.memory_space<vmem>>, %arg2: memref<1152x256xbf16, #tpu.memory_space<vmem>>, %arg3: memref<1x256xf32, #tpu.memory_space<vmem>>, %arg4: memref<2x256xbf16, #tpu.memory_space<vmem>>) attributes {dimension_semantics = [#tpu.dimension_semantics<parallel>], iteration_bounds = array<i64: 1>, scalar_prefetch = 0 : i64, scratch_operands = 0 : i64, tpu.core_type = #tpu.core_type<tc>, window_params = [{transform_indices = @transform_0, window_bounds = array<i64: 2, 1152>}, {pipeline_mode = #tpu.pipeline_mode<synchronous>, transform_indices = @transform_1, window_bounds = array<i64: 1152, 256>}, {pipeline_mode = #tpu.pipeline_mode<synchronous>, transform_indices = @transform_2, window_bounds = array<i64: 1, 256>}, {transform_indices = @transform_3, window_bounds = array<i64: 2, 256>}]} {
    %c0 = arith.constant 0 : index
    %c0_0 = arith.constant 0 : index
    %0 = vector.load %arg1[%c0, %c0_0] : memref<2x1152xbf16, #tpu.memory_space<vmem>>, vector<2x1152xbf16>
    %c0_1 = arith.constant 0 : index
    %c0_2 = arith.constant 0 : index
    %1 = vector.load %arg2[%c0_1, %c0_2] : memref<1152x256xbf16, #tpu.memory_space<vmem>>, vector<1152x256xbf16>
    %cst = arith.constant dense<0.000000e+00> : vector<2x256xf32>
    %2 = tpu.matmul %0, %1, %cst {dimension_numbers = #tpu.dot_dimension_numbers<[1], [0], [0], [1], [0, 0, 1, 1], [], []>} : vector<2x1152xbf16>, vector<1152x256xbf16>, vector<2x256xf32> -> vector<2x256xf32>
    %c0_3 = arith.constant 0 : index
    %c0_4 = arith.constant 0 : index
    %3 = vector.load %arg3[%c0_3, %c0_4] : memref<1x256xf32, #tpu.memory_space<vmem>>, vector<1x256xf32>
    %4 = vector.broadcast %3 : vector<1x256xf32> to vector<2x256xf32>
    %5 = arith.addf %2, %4 : vector<2x256xf32>
    %cst_5 = arith.constant 0.000000e+00 : f32
    %6 = vector.broadcast %cst_5 : f32 to vector<2x256xf32>
    %7 = arith.maximumf %5, %6 : vector<2x256xf32>
    %8 = arith.truncf %7 : vector<2x256xf32> to vector<2x256xbf16>
    %c0_6 = arith.constant 0 : index
    %c0_7 = arith.constant 0 : index
    %9 = vector.load %arg4[%c0_6, %c0_7] : memref<2x256xbf16, #tpu.memory_space<vmem>>, vector<2x256xbf16>
    tpu.vector_store %arg4[%c0_6, %c0_7], %8 {strides = array<i32>} : memref<2x256xbf16, #tpu.memory_space<vmem>>, vector<2x256xbf16>,
    return
  }
  func.func @transform_0(%arg0: i32) -> (i32, i32) {
    %c0_i32 = arith.constant 0 : i32
    %c0_i32_0 = arith.constant 0 : i32
    return %arg0, %c0_i32 : i32, i32
  }
  func.func @transform_1(%arg0: i32) -> (i32, i32) {
    %c0_i32 = arith.constant 0 : i32
    %c0_i32_0 = arith.constant 0 : i32
    %c0_i32_1 = arith.constant 0 : i32
    return %c0_i32, %c0_i32_0 : i32, i32
  }
  func.func @transform_2(%arg0: i32) -> (i32, i32) {
    %c0_i32 = arith.constant 0 : i32
    %c0_i32_0 = arith.constant 0 : i32
    %c0_i32_1 = arith.constant 0 : i32
    return %c0_i32, %c0_i32_0 : i32, i32
  }
  func.func @transform_3(%arg0: i32) -> (i32, i32) {
    %c0_i32 = arith.constant 0 : i32
    %c0_i32_0 = arith.constant 0 : i32
    return %arg0, %c0_i32 : i32, i32
  }
}

module attributes {stable_mosaic.version = 11 : i64} {
  func.func @_head_kernel(%arg0: i32, %arg1: memref<2x256xbf16, #tpu.memory_space<vmem>>, %arg2: memref<256x256xbf16, #tpu.memory_space<vmem>>, %arg3: memref<1x256xf32, #tpu.memory_space<vmem>>, %arg4: memref<128x6xf32, #tpu.memory_space<vmem>>, %arg5: memref<1x6xf32, #tpu.memory_space<vmem>>, %arg6: memref<128x1xf32, #tpu.memory_space<vmem>>, %arg7: memref<1x1xf32, #tpu.memory_space<vmem>>, %arg8: memref<2x6xf32, #tpu.memory_space<vmem>>, %arg9: memref<2x1xf32, #tpu.memory_space<vmem>>) attributes {dimension_semantics = [#tpu.dimension_semantics<arbitrary>], iteration_bounds = array<i64: 1>, scalar_prefetch = 0 : i64, scratch_operands = 0 : i64, tpu.core_type = #tpu.core_type<tc>, window_params = [{pipeline_mode = #tpu.pipeline_mode<synchronous>, transform_indices = @transform_0, window_bounds = array<i64: 2, 256>}, {pipeline_mode = #tpu.pipeline_mode<synchronous>, transform_indices = @transform_1, window_bounds = array<i64: 256, 256>}, {pipeline_mode = #tpu.pipeline_mode<synchronous>, transform_indices = @transform_2, window_bounds = array<i64: 1, 256>}, {pipeline_mode = #tpu.pipeline_mode<synchronous>, transform_indices = @transform_3, window_bounds = array<i64: 128, 6>}, {pipeline_mode = #tpu.pipeline_mode<synchronous>, transform_indices = @transform_4, window_bounds = array<i64: 1, 6>}, {pipeline_mode = #tpu.pipeline_mode<synchronous>, transform_indices = @transform_5, window_bounds = array<i64: 128, 1>}, {pipeline_mode = #tpu.pipeline_mode<synchronous>, transform_indices = @transform_6, window_bounds = array<i64: 1, 1>}, {pipeline_mode = #tpu.pipeline_mode<synchronous>, transform_indices = @transform_7, window_bounds = array<i64: 2, 6>}, {pipeline_mode = #tpu.pipeline_mode<synchronous>, transform_indices = @transform_8, window_bounds = array<i64: 2, 1>}]} {
    %c0 = arith.constant 0 : index
    %c0_0 = arith.constant 0 : index
    %0 = vector.load %arg1[%c0, %c0_0] : memref<2x256xbf16, #tpu.memory_space<vmem>>, vector<2x256xbf16>
    %c0_1 = arith.constant 0 : index
    %c0_2 = arith.constant 0 : index
    %1 = vector.load %arg2[%c0_1, %c0_2] : memref<256x256xbf16, #tpu.memory_space<vmem>>, vector<256x256xbf16>
    %cst = arith.constant dense<0.000000e+00> : vector<2x256xf32>
    %2 = tpu.matmul %0, %1, %cst {dimension_numbers = #tpu.dot_dimension_numbers<[1], [0], [0], [1], [0, 0, 1, 1], [], []>} : vector<2x256xbf16>, vector<256x256xbf16>, vector<2x256xf32> -> vector<2x256xf32>
    %c0_3 = arith.constant 0 : index
    %c0_4 = arith.constant 0 : index
    %3 = vector.load %arg3[%c0_3, %c0_4] : memref<1x256xf32, #tpu.memory_space<vmem>>, vector<1x256xf32>
    %4 = vector.broadcast %3 : vector<1x256xf32> to vector<2x256xf32>
    %5 = arith.addf %2, %4 : vector<2x256xf32>
    %cst_5 = arith.constant 0.000000e+00 : f32
    %6 = vector.broadcast %cst_5 : f32 to vector<2x256xf32>
    %7 = arith.maximumf %5, %6 : vector<2x256xf32>
    %8 = vector.extract_strided_slice %7 {offsets = [0, 0], sizes = [2, 128], strides = [1, 1]} : vector<2x256xf32> to vector<2x128xf32>
    %9 = vector.extract_strided_slice %7 {offsets = [0, 128], sizes = [2, 128], strides = [1, 1]} : vector<2x256xf32> to vector<2x128xf32>
    %c0_6 = arith.constant 0 : index
    %c0_7 = arith.constant 0 : index
    %10 = vector.load %arg4[%c0_6, %c0_7] : memref<128x6xf32, #tpu.memory_space<vmem>>, vector<128x6xf32>
    %cst_8 = arith.constant dense<0.000000e+00> : vector<2x6xf32>
    %11 = tpu.matmul %8, %10, %cst_8 {dimension_numbers = #tpu.dot_dimension_numbers<[1], [0], [0], [1], [0, 0, 1, 1], [], []>} : vector<2x128xf32>, vector<128x6xf32>, vector<2x6xf32> -> vector<2x6xf32>
    %c0_9 = arith.constant 0 : index
    %c0_10 = arith.constant 0 : index
    %12 = vector.load %arg5[%c0_9, %c0_10] : memref<1x6xf32, #tpu.memory_space<vmem>>, vector<1x6xf32>
    %13 = vector.broadcast %12 : vector<1x6xf32> to vector<2x6xf32>
    %14 = arith.addf %11, %13 : vector<2x6xf32>
    %cst_11 = arith.constant 0.000000e+00 : f32
    %15 = vector.broadcast %cst_11 : f32 to vector<2x6xf32>
    %16 = arith.maximumf %14, %15 : vector<2x6xf32>
    %17 = math.absf %14 : vector<2x6xf32>
    %cst_12 = arith.constant 0.000000e+00 : f32
    %18 = vector.broadcast %cst_12 : f32 to vector<2x6xf32>
    %19 = arith.subf %18, %17 : vector<2x6xf32>
    %20 = math.exp %19 : vector<2x6xf32>
    %21 = math.log1p %20 : vector<2x6xf32>
    %22 = arith.addf %16, %21 : vector<2x6xf32>
    %cst_13 = arith.constant 1.000000e+00 : f32
    %23 = vector.broadcast %cst_13 : f32 to vector<2x6xf32>
    %24 = arith.addf %22, %23 : vector<2x6xf32>
    %c0_14 = arith.constant 0 : index
    %c0_15 = arith.constant 0 : index
    %25 = vector.load %arg6[%c0_14, %c0_15] : memref<128x1xf32, #tpu.memory_space<vmem>>, vector<128x1xf32>
    %cst_16 = arith.constant dense<0.000000e+00> : vector<2x1xf32>
    %26 = tpu.matmul %9, %25, %cst_16 {dimension_numbers = #tpu.dot_dimension_numbers<[1], [0], [0], [1], [0, 0, 1, 1], [], []>} : vector<2x128xf32>, vector<128x1xf32>, vector<2x1xf32> -> vector<2x1xf32>
    %c0_17 = arith.constant 0 : index
    %c0_18 = arith.constant 0 : index
    %27 = vector.load %arg7[%c0_17, %c0_18] : memref<1x1xf32, #tpu.memory_space<vmem>>, vector<1x1xf32>
    %28 = vector.broadcast %27 : vector<1x1xf32> to vector<2x1xf32>
    %29 = arith.addf %26, %28 : vector<2x1xf32>
    %c0_19 = arith.constant 0 : index
    %c0_20 = arith.constant 0 : index
    %30 = vector.load %arg8[%c0_19, %c0_20] : memref<2x6xf32, #tpu.memory_space<vmem>>, vector<2x6xf32>
    tpu.vector_store %arg8[%c0_19, %c0_20], %24 {strides = array<i32>} : memref<2x6xf32, #tpu.memory_space<vmem>>, vector<2x6xf32>,
    %c0_21 = arith.constant 0 : index
    %c0_22 = arith.constant 0 : index
    %31 = vector.load %arg9[%c0_21, %c0_22] : memref<2x1xf32, #tpu.memory_space<vmem>>, vector<2x1xf32>
    tpu.vector_store %arg9[%c0_21, %c0_22], %29 {strides = array<i32>} : memref<2x1xf32, #tpu.memory_space<vmem>>, vector<2x1xf32>,
    return
  }
  func.func @transform_0(%arg0: i32) -> (i32, i32) {
    %c0_i32 = arith.constant 0 : i32
    %c0_i32_0 = arith.constant 0 : i32
    %c0_i32_1 = arith.constant 0 : i32
    return %c0_i32, %c0_i32_0 : i32, i32
  }
  func.func @transform_1(%arg0: i32) -> (i32, i32) {
    %c0_i32 = arith.constant 0 : i32
    %c0_i32_0 = arith.constant 0 : i32
    %c0_i32_1 = arith.constant 0 : i32
    return %c0_i32, %c0_i32_0 : i32, i32
  }
  func.func @transform_2(%arg0: i32) -> (i32, i32) {
    %c0_i32 = arith.constant 0 : i32
    %c0_i32_0 = arith.constant 0 : i32
    %c0_i32_1 = arith.constant 0 : i32
    return %c0_i32, %c0_i32_0 : i32, i32
  }
  func.func @transform_3(%arg0: i32) -> (i32, i32) {
    %c0_i32 = arith.constant 0 : i32
    %c0_i32_0 = arith.constant 0 : i32
    %c0_i32_1 = arith.constant 0 : i32
    return %c0_i32, %c0_i32_0 : i32, i32
  }
  func.func @transform_4(%arg0: i32) -> (i32, i32) {
    %c0_i32 = arith.constant 0 : i32
    %c0_i32_0 = arith.constant 0 : i32
    %c0_i32_1 = arith.constant 0 : i32
    return %c0_i32, %c0_i32_0 : i32, i32
  }
  func.func @transform_5(%arg0: i32) -> (i32, i32) {
    %c0_i32 = arith.constant 0 : i32
    %c0_i32_0 = arith.constant 0 : i32
    %c0_i32_1 = arith.constant 0 : i32
    return %c0_i32, %c0_i32_0 : i32, i32
  }
  func.func @transform_6(%arg0: i32) -> (i32, i32) {
    %c0_i32 = arith.constant 0 : i32
    %c0_i32_0 = arith.constant 0 : i32
    %c0_i32_1 = arith.constant 0 : i32
    return %c0_i32, %c0_i32_0 : i32, i32
  }
  func.func @transform_7(%arg0: i32) -> (i32, i32) {
    %c0_i32 = arith.constant 0 : i32
    %c0_i32_0 = arith.constant 0 : i32
    %c0_i32_1 = arith.constant 0 : i32
    return %c0_i32, %c0_i32_0 : i32, i32
  }
  func.func @transform_8(%arg0: i32) -> (i32, i32) {
    %c0_i32 = arith.constant 0 : i32
    %c0_i32_0 = arith.constant 0 : i32
    %c0_i32_1 = arith.constant 0 : i32
    return %c0_i32, %c0_i32_0 : i32, i32
  }
}

</mosaic_0001>

<llo_original>
// kernel: nn_forward.7
$region0: #{nn_forward.7}
  #allocation0 [shape = 'u32[]', space=smem, size = 0x4, offset = 0x4, fixed_abs, tag = 'smem constant byte address 0x4 - core index']
  #allocation1 [shape = 'u32[72,128]{1,0:T(1,128)}', space=vmem, size = 0x9000, scoped, tag = 'internal scratch']
  %s0 = inlined_call_operand.vmem [shape: bf16[4440,64], index: 0, kind: input, shape index: {}]
  %s1 = inlined_call_operand.vmem [shape: bf16[64,8], index: 1, kind: input, shape index: {}]
  %s2 = inlined_call_operand.vmem [shape: f32[1,8], index: 2, kind: input, shape index: {}]
  %s3 = inlined_call_operand.vmem [shape: bf16[4440,8], index: 3, kind: output, shape index: {}]
  %s4 = sld [smem:[#allocation0]]
  $region45: #{nn_forward.7} parent=0
    _
  %s6 = ssub.s32 1, %s4
  %s7 = scalar_select 0, %s6, %s4
  loop: start=0, step=1, limit=7
  $region2: #{nn_forward.7} parent=0 // loop_pre_header
    _
  $region3: #{nn_forward.7} parent=0 // loop_header
    %s9 = sphi 0, %s13
    %p10 = scmp.ge.s32.totalorder %s9, 7
    %s19 = sphi 0, %s21
    %s22 = sphi 0, %s19
    %s23 = sphi 0, %s22
    %s39 = sphi 0, %s23
    %s43 = sphi 0, %s43
    %s45 = sphi 0, %s43
    %s46 = sphi 0, %s45
    %s60 = sphi 0, %s46
    %s64 = sphi 0, %s64
    %s66 = sphi 0, %s64
    %s67 = sphi 0, %s66
    %s81 = sphi 0, %s67
    %s87 = sphi 0, %s89
    %s90 = sphi 0, %s87
    %s91 = sphi 0, %s90
    %s107 = sphi 0, %s91
  $region4: #{nn_forward.7} parent=0 // loop_header_branch
    %12 = sbr.rel (%p10) target = $region8
  $region5: #{nn_forward.7} parent=0 // loop_body
    %s14 = ssub.s32 %s9, 1
    %s15 = ssub.s32 %s9, 2
    %s16 = sadd.s32 %s9, 1
    %s17 = ssub.s32 %s9, %s16
    %p18 = scmp.eq.s32.totalorder %s17, 0
    %s20 = sadd.s32 %s19, 1
    %s21 = scalar_select %p18, %s19, %s20
    %p24 = pneg %p18
    %p25 = scmp.eq.s32.totalorder %s9, 4
    %p26 = por %p24, %p25
    %p27 = scmp.ne.s32.totalorder %s19, %s22
    %p28 = scmp.eq.s32.totalorder %s9, 0
    %p29 = por %p27, %p28
    %p30 = scmp.ne.s32.totalorder %s19, %s22
    %p31 = scmp.eq.s32.totalorder %s14, 4
    %p32 = por %p30, %p31
    %p33 = scmp.ne.s32.totalorder %s22, %s23
    %p34 = scmp.eq.s32.totalorder %s14, 0
    %p35 = por %p33, %p34
    %p36 = scmp.ne.s32.totalorder %s22, %s23
    %p37 = scmp.eq.s32.totalorder %s15, 4
    %p38 = por %p36, %p37
    %p40 = scmp.ne.s32.totalorder %s23, %s39
    %p41 = scmp.eq.s32.totalorder %s15, 0
    %p42 = por %p40, %p41
    %s44 = sadd.s32 %s43, 1
    %p47 = scmp.eq.s32.totalorder %s9, 4
    %p48 = scmp.ne.s32.totalorder %s43, %s45
    %p49 = scmp.eq.s32.totalorder %s9, 0
    %p50 = por %p48, %p49
    %p51 = scmp.ne.s32.totalorder %s43, %s45
    %p52 = scmp.eq.s32.totalorder %s14, 4
    %p53 = por %p51, %p52
    %p54 = scmp.ne.s32.totalorder %s45, %s46
    %p55 = scmp.eq.s32.totalorder %s14, 0
    %p56 = por %p54, %p55
    %p57 = scmp.ne.s32.totalorder %s45, %s46
    %p58 = scmp.eq.s32.totalorder %s15, 4
    %p59 = por %p57, %p58
    %p61 = scmp.ne.s32.totalorder %s46, %s60
    %p62 = scmp.eq.s32.totalorder %s15, 0
    %p63 = por %p61, %p62
    %s65 = sadd.s32 %s64, 1
    %p68 = scmp.eq.s32.totalorder %s9, 4
    %p69 = scmp.ne.s32.totalorder %s64, %s66
    %p70 = scmp.eq.s32.totalorder %s9, 0
    %p71 = por %p69, %p70
    %p72 = scmp.ne.s32.totalorder %s64, %s66
    %p73 = scmp.eq.s32.totalorder %s14, 4
    %p74 = por %p72, %p73
    %p75 = scmp.ne.s32.totalorder %s66, %s67
    %p76 = scmp.eq.s32.totalorder %s14, 0
    %p77 = por %p75, %p76
    %p78 = scmp.ne.s32.totalorder %s66, %s67
    %p79 = scmp.eq.s32.totalorder %s15, 4
    %p80 = por %p78, %p79
    %p82 = scmp.ne.s32.totalorder %s67, %s81
    %p83 = scmp.eq.s32.totalorder %s15, 0
    %p84 = por %p82, %p83
    %s85 = ssub.s32 %s9, %s16
    %p86 = scmp.eq.s32.totalorder %s85, 0
    %s88 = sadd.s32 %s87, 1
    %s89 = scalar_select %p86, %s87, %s88
    %p92 = pneg %p86
    %p93 = scmp.eq.s32.totalorder %s9, 4
    %p94 = por %p92, %p93
    %p95 = scmp.ne.s32.totalorder %s87, %s90
    %p96 = scmp.eq.s32.totalorder %s9, 0
    %p97 = por %p95, %p96
    %p98 = scmp.ne.s32.totalorder %s87, %s90
    %p99 = scmp.eq.s32.totalorder %s14, 4
    %p100 = por %p98, %p99
    %p101 = scmp.ne.s32.totalorder %s90, %s91
    %p102 = scmp.eq.s32.totalorder %s14, 0
    %p103 = por %p101, %p102
    %p104 = scmp.ne.s32.totalorder %s90, %s91
    %p105 = scmp.eq.s32.totalorder %s15, 4
    %p106 = por %p104, %p105
    %p108 = scmp.ne.s32.totalorder %s91, %s107
    %p109 = scmp.eq.s32.totalorder %s15, 0
    %p110 = por %p108, %p109
    %p111 = scmp.le.s32.totalorder 1, %s9
    %p112 = scmp.lt.s32.totalorder %s9, 6
    %p113 = pnand %p111, %p112
    %p114 = pneg %p113
    // Predicated region
    $region9: #{nn_forward.7} parent=5 // pred_check
      _
    $region10: #{nn_forward.7} parent=5 // pred_check_branch
      %116 = sbr.rel (%p113) target = $region12
    $region11: #{nn_forward.7} parent=5 // pred_region
      %s117 = ssub.s32 %s9, 1
      // Predicated region
      $region13: #{nn_forward.7} parent=11 // pred_check
        %p118 = pneg %p56
      $region14: #{nn_forward.7} parent=11 // pred_check_branch
        %120 = sbr.rel (%p118) target = $region16
      $region15: #{nn_forward.7} parent=11 // pred_region
        _
      $region16: #{nn_forward.7} parent=11 // pred_fallthru
        _
      // Predicated region
      $region17: #{nn_forward.7} parent=11 // pred_check
        %p121 = pneg %p77
      $region18: #{nn_forward.7} parent=11 // pred_check_branch
        %123 = sbr.rel (%p121) target = $region20
      $region19: #{nn_forward.7} parent=11 // pred_region
        _
      $region20: #{nn_forward.7} parent=11 // pred_fallthru
        _
    $region12: #{nn_forward.7} parent=5 // pred_fallthru
      _
    %p124 = scmp.lt.s32.totalorder %s9, 5
    // Predicated region
    $region21: #{nn_forward.7} parent=5 // pred_check
      %p125 = pneg %p124
    $region22: #{nn_forward.7} parent=5 // pred_check_branch
      %127 = sbr.rel (%p125) target = $region24
    $region23: #{nn_forward.7} parent=5 // pred_region
      // Predicated region
      $region25: #{nn_forward.7} parent=23 // pred_check
        %p128 = pneg %p29
      $region26: #{nn_forward.7} parent=23 // pred_check_branch
        %130 = sbr.rel (%p128) target = $region28
      $region27: #{nn_forward.7} parent=23 // pred_region
        %s131 = smul.u32 111, %s9
        %p132 = scmp.lt.s32.totalorder %s131, 554
        %s133 = scalar_select %p132, %s131, 554
        %s134 = smul.addr %s133, 4
        %s135 = scalar_lea.vmem %s0, %s134
        %s136 = smul.u32 111, %s9
      $region28: #{nn_forward.7} parent=23 // pred_fallthru
        _
    $region24: #{nn_forward.7} parent=5 // pred_fallthru
      _
    %p137 = scmp.le.s32.totalorder 1, %s9
    %p138 = scmp.lt.s32.totalorder %s9, 6
    %p139 = pnand %p137, %p138
    %p140 = pneg %p139
    // Predicated region
    $region29: #{nn_forward.7} parent=5 // pred_check
      _
    $region30: #{nn_forward.7} parent=5 // pred_check_branch
      %142 = sbr.rel (%p139) target = $region32
    $region31: #{nn_forward.7} parent=5 // pred_region
      %s143 = ssub.s32 %s9, 1
      %s144 = smul.u32 111, %s14
      %p145 = scmp.lt.s32.totalorder %s144, 554
      %s146 = scalar_select %p145, %s144, 554
      %s147 = smul.addr %s146, 4
      %s148 = scalar_lea.vmem %s0, %s147
      %p149 = pneg %p35
      %p150 = pneg %p32
      %p151 = pneg %p56
      %p152 = pneg %p53
      %p153 = pneg %p77
      %p154 = pneg %p74
      %p155 = pneg %p103
      %p156 = pneg %p100
      %s157 = smul.u32 111, %s14
      %p158 = scmp.lt.s32.totalorder %s157, 554
      %s159 = scalar_select %p158, %s157, 554
      %s160 = smul.addr %s159, 4
      %s161 = scalar_lea.vmem %s3, %s160
      %s162 = smul.u32 111, %s14
      %p163 = scmp.lt.s32.totalorder %s162, 554
      %s164 = scalar_select %p163, %s162, 554
      %s165 = smul.addr %s164, 4
      %s166 = scalar_lea.vmem %s0, %s165
      %s167 = smul.u32 111, %s14
      %s168 = smul.u32 111, %s14
      %p169 = scmp.lt.s32.totalorder %s168, 554
      %s170 = scalar_select %p169, %s168, 554
      %s171 = smul.addr %s170, 4
      %s172 = scalar_lea.vmem %s3, %s171
      %s173 = smul.u32 111, %s14
      %v175 = vld [vmem:[%s166] sm:$0xf]
      %v176 = vld [vmem:[%s166 + $0x4] sm:$0xf]
      %v177 = vld [vmem:[%s166 + $0x8] sm:$0xf]
      %v178 = vld [vmem:[%s166 + $0xc] sm:$0xf]
      %v179 = vld [vmem:[%s166 + $0x10] sm:$0xf]
      %v180 = vld [vmem:[%s166 + $0x14] sm:$0xf]
      %v181 = vld [vmem:[%s166 + $0x18] sm:$0xf]
      %v182 = vld [vmem:[%s166 + $0x1c] sm:$0xf]
      %v183 = vld [vmem:[%s166 + $0x20] sm:$0xf]
      %v184 = vld [vmem:[%s166 + $0x24] sm:$0xf]
      %v185 = vld [vmem:[%s166 + $0x28] sm:$0xf]
      %v186 = vld [vmem:[%s166 + $0x2c] sm:$0xf]
      %v187 = vld [vmem:[%s166 + $0x30] sm:$0xf]
      %v188 = vld [vmem:[%s166 + $0x34] sm:$0xf]
      %v189 = vld [vmem:[%s166 + $0x38] sm:$0xf]
      %v190 = vld [vmem:[%s166 + $0x3c] sm:$0xf]
      %v191 = vld [vmem:[%s166 + $0x40] sm:$0xf]
      %v192 = vld [vmem:[%s166 + $0x44] sm:$0xf]
      %v193 = vld [vmem:[%s166 + $0x48] sm:$0xf]
      %v194 = vld [vmem:[%s166 + $0x4c] sm:$0xf]
      %v195 = vld [vmem:[%s166 + $0x50] sm:$0xf]
      %v196 = vld [vmem:[%s166 + $0x54] sm:$0xf]
      %v197 = vld [vmem:[%s166 + $0x58] sm:$0xf]
      %v198 = vld [vmem:[%s166 + $0x5c] sm:$0xf]
      %v199 = vld [vmem:[%s166 + $0x60] sm:$0xf]
      %v200 = vld [vmem:[%s166 + $0x64] sm:$0xf]
      %v201 = vld [vmem:[%s166 + $0x68] sm:$0xf]
      %v202 = vld [vmem:[%s166 + $0x6c] sm:$0xf]
      %v203 = vld [vmem:[%s166 + $0x70] sm:$0xf]
      %v204 = vld [vmem:[%s166 + $0x74] sm:$0xf]
      %v205 = vld [vmem:[%s166 + $0x78] sm:$0xf]
      %v206 = vld [vmem:[%s166 + $0x7c] sm:$0xf]
      %v207 = vld [vmem:[%s166 + $0x80] sm:$0xf]
      %v208 = vld [vmem:[%s166 + $0x84] sm:$0xf]
      %v209 = vld [vmem:[%s166 + $0x88] sm:$0xf]
      %v210 = vld [vmem:[%s166 + $0x8c] sm:$0xf]
      %v211 = vld [vmem:[%s166 + $0x90] sm:$0xf]
      %v212 = vld [vmem:[%s166 + $0x94] sm:$0xf]
      %v213 = vld [vmem:[%s166 + $0x98] sm:$0xf]
      %v214 = vld [vmem:[%s166 + $0x9c] sm:$0xf]
      %v215 = vld [vmem:[%s166 + $0xa0] sm:$0xf]
      %v216 = vld [vmem:[%s166 + $0xa4] sm:$0xf]
      %v217 = vld [vmem:[%s166 + $0xa8] sm:$0xf]
      %v218 = vld [vmem:[%s166 + $0xac] sm:$0xf]
      %v219 = vld [vmem:[%s166 + $0xb0] sm:$0xf]
      %v220 = vld [vmem:[%s166 + $0xb4] sm:$0xf]
      %v221 = vld [vmem:[%s166 + $0xb8] sm:$0xf]
      %v222 = vld [vmem:[%s166 + $0xbc] sm:$0xf]
      %v223 = vld [vmem:[%s166 + $0xc0] sm:$0xf]
      %v224 = vld [vmem:[%s166 + $0xc4] sm:$0xf]
      %v225 = vld [vmem:[%s166 + $0xc8] sm:$0xf]
      %v226 = vld [vmem:[%s166 + $0xcc] sm:$0xf]
      %v227 = vld [vmem:[%s166 + $0xd0] sm:$0xf]
      %v228 = vld [vmem:[%s166 + $0xd4] sm:$0xf]
      %v229 = vld [vmem:[%s166 + $0xd8] sm:$0xf]
      %v230 = vld [vmem:[%s166 + $0xdc] sm:$0xf]
      %v231 = vld [vmem:[%s166 + $0xe0] sm:$0xf]
      %v232 = vld [vmem:[%s166 + $0xe4] sm:$0xf]
      %v233 = vld [vmem:[%s166 + $0xe8] sm:$0xf]
      %v234 = vld [vmem:[%s166 + $0xec] sm:$0xf]
      %v235 = vld [vmem:[%s166 + $0xf0] sm:$0xf]
      %v236 = vld [vmem:[%s166 + $0xf4] sm:$0xf]
      %v237 = vld [vmem:[%s166 + $0xf8] sm:$0xf]
      %v238 = vld [vmem:[%s166 + $0xfc] sm:$0xf]
      %v239 = vld [vmem:[%s166 + $0x100] sm:$0xf]
      %v240 = vld [vmem:[%s166 + $0x104] sm:$0xf]
      %v241 = vld [vmem:[%s166 + $0x108] sm:$0xf]
      %v242 = vld [vmem:[%s166 + $0x10c] sm:$0xf]
      %v243 = vld [vmem:[%s166 + $0x110] sm:$0xf]
      %v244 = vld [vmem:[%s166 + $0x114] sm:$0xf]
      %v245 = vld [vmem:[%s166 + $0x118] sm:$0xf]
      %v246 = vld [vmem:[%s166 + $0x11c] sm:$0xf]
      %v247 = vld [vmem:[%s166 + $0x120] sm:$0xf]
      %v248 = vld [vmem:[%s166 + $0x124] sm:$0xf]
      %v249 = vld [vmem:[%s166 + $0x128] sm:$0xf]
      %v250 = vld [vmem:[%s166 + $0x12c] sm:$0xf]
      %v251 = vld [vmem:[%s166 + $0x130] sm:$0xf]
      %v252 = vld [vmem:[%s166 + $0x134] sm:$0xf]
      %v253 = vld [vmem:[%s166 + $0x138] sm:$0xf]
      %v254 = vld [vmem:[%s166 + $0x13c] sm:$0xf]
      %v255 = vld [vmem:[%s166 + $0x140] sm:$0xf]
      %v256 = vld [vmem:[%s166 + $0x144] sm:$0xf]
      %v257 = vld [vmem:[%s166 + $0x148] sm:$0xf]
      %v258 = vld [vmem:[%s166 + $0x14c] sm:$0xf]
      %v259 = vld [vmem:[%s166 + $0x150] sm:$0xf]
      %v260 = vld [vmem:[%s166 + $0x154] sm:$0xf]
      %v261 = vld [vmem:[%s166 + $0x158] sm:$0xf]
      %v262 = vld [vmem:[%s166 + $0x15c] sm:$0xf]
      %v263 = vld [vmem:[%s166 + $0x160] sm:$0xf]
      %v264 = vld [vmem:[%s166 + $0x164] sm:$0xf]
      %v265 = vld [vmem:[%s166 + $0x168] sm:$0xf]
      %v266 = vld [vmem:[%s166 + $0x16c] sm:$0xf]
      %v267 = vld [vmem:[%s166 + $0x170] sm:$0xf]
      %v268 = vld [vmem:[%s166 + $0x174] sm:$0xf]
      %v269 = vld [vmem:[%s166 + $0x178] sm:$0xf]
      %v270 = vld [vmem:[%s166 + $0x17c] sm:$0xf]
      %v271 = vld [vmem:[%s166 + $0x180] sm:$0xf]
      %v272 = vld [vmem:[%s166 + $0x184] sm:$0xf]
      %v273 = vld [vmem:[%s166 + $0x188] sm:$0xf]
      %v274 = vld [vmem:[%s166 + $0x18c] sm:$0xf]
      %v275 = vld [vmem:[%s166 + $0x190] sm:$0xf]
      %v276 = vld [vmem:[%s166 + $0x194] sm:$0xf]
      %v277 = vld [vmem:[%s166 + $0x198] sm:$0xf]
      %v278 = vld [vmem:[%s166 + $0x19c] sm:$0xf]
      %v279 = vld [vmem:[%s166 + $0x1a0] sm:$0xf]
      %v280 = vld [vmem:[%s166 + $0x1a4] sm:$0xf]
      %v281 = vld [vmem:[%s166 + $0x1a8] sm:$0xf]
      %v282 = vld [vmem:[%s166 + $0x1ac] sm:$0xf]
      %v283 = vld [vmem:[%s166 + $0x1b0] sm:$0xf]
      %v284 = vld [vmem:[%s166 + $0x1b4] sm:$0xf]
      %v285 = vld [vmem:[%s166 + $0x1b8] sm:$0xf]
      %v286 = vld [vmem:[%s1] sm:$0xf]
      %v287 = vld [vmem:[%s1 + $0x4] sm:$0xf]
      %v288 = vld [vmem:[%s1 + $0x8] sm:$0xf]
      %v289 = vld [vmem:[%s1 + $0xc] sm:$0xf]
      %v290 = vld [vmem:[%s1 + $0x10] sm:$0xf]
      %v291 = vld [vmem:[%s1 + $0x14] sm:$0xf]
      %v292 = vld [vmem:[%s1 + $0x18] sm:$0xf]
      %v293 = vld [vmem:[%s1 + $0x1c] sm:$0xf]
      %v294 = vld [vmem:[%s2] sm:$0x1]
      %v296 = vperm.slane %v294, 0
      %v409 = vunpack.c.l.b16 %v175
      %v410 = vunpack.c.l.b16 %v176
      %v411 = vunpack.c.l.b16 %v177
      %v412 = vunpack.c.l.b16 %v178
      %v413 = vunpack.c.l.b16 %v179
      %v414 = vunpack.c.l.b16 %v180
      %v415 = vunpack.c.l.b16 %v181
      %v416 = vunpack.c.l.b16 %v182
      %v417 = vunpack.c.l.b16 %v183
      %v418 = vunpack.c.l.b16 %v184
      %v419 = vunpack.c.l.b16 %v185
      %v420 = vunpack.c.l.b16 %v186
      %v421 = vunpack.c.l.b16 %v187
      %v422 = vunpack.c.l.b16 %v188
      %v423 = vunpack.c.l.b16 %v189
      %v424 = vunpack.c.l.b16 %v190
      %v425 = vunpack.c.l.b16 %v191
      %v426 = vunpack.c.l.b16 %v192
      %v427 = vunpack.c.l.b16 %v193
      %v428 = vunpack.c.l.b16 %v194
      %v429 = vunpack.c.l.b16 %v195
      %v430 = vunpack.c.l.b16 %v196
      %v431 = vunpack.c.l.b16 %v197
      %v432 = vunpack.c.l.b16 %v198
      %v433 = vunpack.c.l.b16 %v199
      %v434 = vunpack.c.l.b16 %v200
      %v435 = vunpack.c.l.b16 %v201
      %v436 = vunpack.c.l.b16 %v202
      %v437 = vunpack.c.l.b16 %v203
      %v438 = vunpack.c.l.b16 %v204
      %v439 = vunpack.c.l.b16 %v205
      %v440 = vunpack.c.l.b16 %v206
      %v441 = vunpack.c.l.b16 %v207
      %v442 = vunpack.c.l.b16 %v208
      %v443 = vunpack.c.l.b16 %v209
      %v444 = vunpack.c.l.b16 %v210
      %v445 = vunpack.c.l.b16 %v211
      %v446 = vunpack.c.l.b16 %v212
      %v447 = vunpack.c.l.b16 %v213
      %v448 = vunpack.c.l.b16 %v214
      %v449 = vunpack.c.l.b16 %v215
      %v450 = vunpack.c.l.b16 %v216
      %v451 = vunpack.c.l.b16 %v217
      %v452 = vunpack.c.l.b16 %v218
      %v453 = vunpack.c.l.b16 %v219
      %v454 = vunpack.c.l.b16 %v220
      %v455 = vunpack.c.l.b16 %v221
      %v456 = vunpack.c.l.b16 %v222
      %v457 = vunpack.c.l.b16 %v223
      %v458 = vunpack.c.l.b16 %v224
      %v459 = vunpack.c.l.b16 %v225
      %v460 = vunpack.c.l.b16 %v226
      %v461 = vunpack.c.l.b16 %v227
      %v462 = vunpack.c.l.b16 %v228
      %v463 = vunpack.c.l.b16 %v229
      %v464 = vunpack.c.l.b16 %v230
      %v465 = vunpack.c.l.b16 %v231
      %v466 = vunpack.c.l.b16 %v232
      %v467 = vunpack.c.l.b16 %v233
      %v468 = vunpack.c.l.b16 %v234
      %v469 = vunpack.c.l.b16 %v235
      %v470 = vunpack.c.l.b16 %v236
      %v471 = vunpack.c.l.b16 %v237
      %v472 = vunpack.c.l.b16 %v238
      %v473 = vunpack.c.l.b16 %v239
      %v474 = vunpack.c.l.b16 %v240
      %v475 = vunpack.c.l.b16 %v241
      %v476 = vunpack.c.l.b16 %v242
      %v477 = vunpack.c.l.b16 %v243
      %v478 = vunpack.c.l.b16 %v244
      %v479 = vunpack.c.l.b16 %v245
      %v480 = vunpack.c.l.b16 %v246
      %v481 = vunpack.c.l.b16 %v247
      %v482 = vunpack.c.l.b16 %v248
      %v483 = vunpack.c.l.b16 %v249
      %v484 = vunpack.c.l.b16 %v250
      %v485 = vunpack.c.l.b16 %v251
      %v486 = vunpack.c.l.b16 %v252
      %v487 = vunpack.c.l.b16 %v253
      %v488 = vunpack.c.l.b16 %v254
      %v489 = vunpack.c.l.b16 %v255
      %v490 = vunpack.c.l.b16 %v256
      %v491 = vunpack.c.l.b16 %v257
      %v492 = vunpack.c.l.b16 %v258
      %v493 = vunpack.c.l.b16 %v259
      %v494 = vunpack.c.l.b16 %v260
      %v495 = vunpack.c.l.b16 %v261
      %v496 = vunpack.c.l.b16 %v262
      %v497 = vunpack.c.l.b16 %v263
      %v498 = vunpack.c.l.b16 %v264
      %v499 = vunpack.c.l.b16 %v265
      %v500 = vunpack.c.l.b16 %v266
      %v501 = vunpack.c.l.b16 %v267
      %v502 = vunpack.c.l.b16 %v268
      %v503 = vunpack.c.l.b16 %v269
      %v504 = vunpack.c.l.b16 %v270
      %v505 = vunpack.c.l.b16 %v271
      %v506 = vunpack.c.l.b16 %v272
      %v507 = vunpack.c.l.b16 %v273
      %v508 = vunpack.c.l.b16 %v274
      %v509 = vunpack.c.l.b16 %v275
      %v510 = vunpack.c.l.b16 %v276
      %v511 = vunpack.c.l.b16 %v277
      %v512 = vunpack.c.l.b16 %v278
      %v513 = vunpack.c.l.b16 %v279
      %v514 = vunpack.c.l.b16 %v280
      %v515 = vunpack.c.l.b16 %v281
      %v516 = vunpack.c.l.b16 %v282
      %v517 = vunpack.c.l.b16 %v283
      %v518 = vunpack.c.l.b16 %v284
      %v519 = vunpack.c.l.b16 %v285
      %v520 = vpack.c.b16 %v410, %v409
      %v521 = vpack.c.b16 %v412, %v411
      %v522 = vpack.c.b16 %v414, %v413
      %v523 = vpack.c.b16 %v416, %v415
      %v524 = vpack.c.b16 %v418, %v417
      %v525 = vpack.c.b16 %v420, %v419
      %v526 = vpack.c.b16 %v422, %v421
      %v527 = vpack.c.b16 %v424, %v423
      %v528 = vpack.c.b16 %v426, %v425
      %v529 = vpack.c.b16 %v428, %v427
      %v530 = vpack.c.b16 %v430, %v429
      %v531 = vpack.c.b16 %v432, %v431
      %v532 = vpack.c.b16 %v434, %v433
      %v533 = vpack.c.b16 %v436, %v435
      %v534 = vpack.c.b16 %v438, %v437
      %v535 = vpack.c.b16 %v440, %v439
      %v536 = vpack.c.b16 %v442, %v441
      %v537 = vpack.c.b16 %v444, %v443
      %v538 = vpack.c.b16 %v446, %v445
      %v539 = vpack.c.b16 %v448, %v447
      %v540 = vpack.c.b16 %v450, %v449
      %v541 = vpack.c.b16 %v452, %v451
      %v542 = vpack.c.b16 %v454, %v453
      %v543 = vpack.c.b16 %v456, %v455
      %v544 = vpack.c.b16 %v458, %v457
      %v545 = vpack.c.b16 %v460, %v459
      %v546 = vpack.c.b16 %v462, %v461
      %v547 = vpack.c.b16 %v464, %v463
      %v548 = vpack.c.b16 %v466, %v465
      %v549 = vpack.c.b16 %v468, %v467
      %v550 = vpack.c.b16 %v470, %v469
      %v551 = vpack.c.b16 %v472, %v471
      %v552 = vpack.c.b16 %v474, %v473
      %v553 = vpack.c.b16 %v476, %v475
      %v554 = vpack.c.b16 %v478, %v477
      %v555 = vpack.c.b16 %v480, %v479
      %v556 = vpack.c.b16 %v482, %v481
      %v557 = vpack.c.b16 %v484, %v483
      %v558 = vpack.c.b16 %v486, %v485
      %v559 = vpack.c.b16 %v488, %v487
      %v560 = vpack.c.b16 %v490, %v489
      %v561 = vpack.c.b16 %v492, %v491
      %v562 = vpack.c.b16 %v494, %v493
      %v563 = vpack.c.b16 %v496, %v495
      %v564 = vpack.c.b16 %v498, %v497
      %v565 = vpack.c.b16 %v500, %v499
      %v566 = vpack.c.b16 %v502, %v501
      %v567 = vpack.c.b16 %v504, %v503
      %v568 = vpack.c.b16 %v506, %v505
      %v569 = vpack.c.b16 %v508, %v507
      %v570 = vpack.c.b16 %v510, %v509
      %v571 = vpack.c.b16 %v512, %v511
      %v572 = vpack.c.b16 %v514, %v513
      %v573 = vpack.c.b16 %v516, %v515
      %v574 = vpack.c.b16 %v518, %v517
      %v575 = vpack.c.b16 %v519, %v519
      %v584 = vunpack.c.l.b16 %v286
      %v585 = vunpack.c.l.b16 %v287
      %v586 = vunpack.c.l.b16 %v288
      %v587 = vunpack.c.l.b16 %v289
      %v588 = vunpack.c.l.b16 %v290
      %v589 = vunpack.c.l.b16 %v291
      %v590 = vunpack.c.l.b16 %v292
      %v591 = vunpack.c.l.b16 %v293
      %v592 = vpack.c.b16 %v585, %v584
      %v593 = vpack.c.b16 %v587, %v586
      %v594 = vpack.c.b16 %v589, %v588
      %v595 = vpack.c.b16 %v591, %v590
      %vm600 = vcmask 523264
      %v602 = vsel %vm600, %v520, 0
      %v605 = vsel %vm600, %v521, 0
      %v608 = vsel %vm600, %v522, 0
      %v611 = vsel %vm600, %v523, 0
      %v614 = vsel %vm600, %v524, 0
      %v617 = vsel %vm600, %v525, 0
      %v620 = vsel %vm600, %v526, 0
      %v623 = vsel %vm600, %v527, 0
      %v626 = vsel %vm600, %v528, 0
      %v629 = vsel %vm600, %v529, 0
      %v632 = vsel %vm600, %v530, 0
      %v635 = vsel %vm600, %v531, 0
      %v638 = vsel %vm600, %v532, 0
      %v641 = vsel %vm600, %v533, 0
      %v644 = vsel %vm600, %v534, 0
      %v647 = vsel %vm600, %v535, 0
      %v650 = vsel %vm600, %v536, 0
      %v653 = vsel %vm600, %v537, 0
      %v656 = vsel %vm600, %v538, 0
      %v659 = vsel %vm600, %v539, 0
      %v662 = vsel %vm600, %v540, 0
      %v665 = vsel %vm600, %v541, 0
      %v668 = vsel %vm600, %v542, 0
      %v671 = vsel %vm600, %v543, 0
      %v674 = vsel %vm600, %v544, 0
      %v677 = vsel %vm600, %v545, 0
      %v680 = vsel %vm600, %v546, 0
      %v683 = vsel %vm600, %v547, 0
      %v686 = vsel %vm600, %v548, 0
      %v689 = vsel %vm600, %v549, 0
      %v692 = vsel %vm600, %v550, 0
      %v695 = vsel %vm600, %v551, 0
      %v698 = vsel %vm600, %v552, 0
      %v701 = vsel %vm600, %v553, 0
      %v704 = vsel %vm600, %v554, 0
      %v707 = vsel %vm600, %v555, 0
      %v710 = vsel %vm600, %v556, 0
      %v713 = vsel %vm600, %v557, 0
      %v716 = vsel %vm600, %v558, 0
      %v719 = vsel %vm600, %v559, 0
      %v722 = vsel %vm600, %v560, 0
      %v725 = vsel %vm600, %v561, 0
      %v728 = vsel %vm600, %v562, 0
      %v731 = vsel %vm600, %v563, 0
      %v734 = vsel %vm600, %v564, 0
      %v737 = vsel %vm600, %v565, 0
      %v740 = vsel %vm600, %v566, 0
      %v743 = vsel %vm600, %v567, 0
      %v746 = vsel %vm600, %v568, 0
      %v749 = vsel %vm600, %v569, 0
      %v752 = vsel %vm600, %v570, 0
      %v755 = vsel %vm600, %v571, 0
      %v758 = vsel %vm600, %v572, 0
      %v761 = vsel %vm600, %v573, 0
      %v764 = vsel %vm600, %v574, 0
      %v767 = vsel %vm600, %v575, 0
      %769 = vmatpush.bf16.msra.mxu0 0
      %770 = vmatpush.bf16.msra.mxu0 0
      %771 = vmatpush.bf16.msra.mxu0 0
      %772 = vmatpush.bf16.msra.mxu0 0
      %773 = vmatpush.bf16.msra.mxu0 %v595
      %774 = vmatpush.bf16.msra.mxu0 %v594
      %775 = vmatpush.bf16.msra.mxu0 %v593
      %776 = vmatpush.bf16.msra.mxu0 %v592
      %777 = vmatmul.bf16.gmra.mxu0 %v602
      %v778 = vpop.f32.mrf.mxu0
      %v779 = vadd.f32 %v296, %v778
      %v780 = vpop.f32.mrf.mxu0
      %v781 = vadd.f32 %v296, %v780
      %782 = vmatmul.bf16.gmra.mxu0 %v605
      %v783 = vpop.f32.mrf.mxu0
      %v784 = vadd.f32 %v296, %v783
      %v785 = vpop.f32.mrf.mxu0
      %v786 = vadd.f32 %v296, %v785
      %787 = vmatmul.bf16.gmra.mxu0 %v608
      %v788 = vpop.f32.mrf.mxu0
      %v789 = vadd.f32 %v296, %v788
      %v790 = vpop.f32.mrf.mxu0
      %v791 = vadd.f32 %v296, %v790
      %792 = vmatmul.bf16.gmra.mxu0 %v611
      %v793 = vpop.f32.mrf.mxu0
      %v794 = vadd.f32 %v296, %v793
      %v795 = vpop.f32.mrf.mxu0
      %v796 = vadd.f32 %v296, %v795
      %797 = vmatmul.bf16.gmra.mxu0 %v614
      %v798 = vpop.f32.mrf.mxu0
      %v799 = vadd.f32 %v296, %v798
      %v800 = vpop.f32.mrf.mxu0
      %v801 = vadd.f32 %v296, %v800
      %802 = vmatmul.bf16.gmra.mxu0 %v617
      %v803 = vpop.f32.mrf.mxu0
      %v804 = vadd.f32 %v296, %v803
      %v805 = vpop.f32.mrf.mxu0
      %v806 = vadd.f32 %v296, %v805
      %807 = vmatmul.bf16.gmra.mxu0 %v620
      %v808 = vpop.f32.mrf.mxu0
      %v809 = vadd.f32 %v296, %v808
      %v810 = vpop.f32.mrf.mxu0
      %v811 = vadd.f32 %v296, %v810
      %812 = vmatmul.bf16.gmra.mxu0 %v623
      %v813 = vpop.f32.mrf.mxu0
      %v814 = vadd.f32 %v296, %v813
      %v815 = vpop.f32.mrf.mxu0
      %v816 = vadd.f32 %v296, %v815
      %817 = vmatmul.bf16.gmra.mxu0 %v626
      %v818 = vpop.f32.mrf.mxu0
      %v819 = vadd.f32 %v296, %v818
      %v820 = vpop.f32.mrf.mxu0
      %v821 = vadd.f32 %v296, %v820
      %822 = vmatmul.bf16.gmra.mxu0 %v629
      %v823 = vpop.f32.mrf.mxu0
      %v824 = vadd.f32 %v296, %v823
      %v825 = vpop.f32.mrf.mxu0
      %v826 = vadd.f32 %v296, %v825
      %827 = vmatmul.bf16.gmra.mxu0 %v632
      %v828 = vpop.f32.mrf.mxu0
      %v829 = vadd.f32 %v296, %v828
      %v830 = vpop.f32.mrf.mxu0
      %v831 = vadd.f32 %v296, %v830
      %832 = vmatmul.bf16.gmra.mxu0 %v635
      %v833 = vpop.f32.mrf.mxu0
      %v834 = vadd.f32 %v296, %v833
      %v835 = vpop.f32.mrf.mxu0
      %v836 = vadd.f32 %v296, %v835
      %837 = vmatmul.bf16.gmra.mxu0 %v638
      %v838 = vpop.f32.mrf.mxu0
      %v839 = vadd.f32 %v296, %v838
      %v840 = vpop.f32.mrf.mxu0
      %v841 = vadd.f32 %v296, %v840
      %842 = vmatmul.bf16.gmra.mxu0 %v641
      %v843 = vpop.f32.mrf.mxu0
      %v844 = vadd.f32 %v296, %v843
      %v845 = vpop.f32.mrf.mxu0
      %v846 = vadd.f32 %v296, %v845
      %847 = vmatmul.bf16.gmra.mxu0 %v644
      %v848 = vpop.f32.mrf.mxu0
      %v849 = vadd.f32 %v296, %v848
      %v850 = vpop.f32.mrf.mxu0
      %v851 = vadd.f32 %v296, %v850
      %852 = vmatmul.bf16.gmra.mxu0 %v647
      %v853 = vpop.f32.mrf.mxu0
      %v854 = vadd.f32 %v296, %v853
      %v855 = vpop.f32.mrf.mxu0
      %v856 = vadd.f32 %v296, %v855
      %857 = vmatmul.bf16.gmra.mxu0 %v650
      %v858 = vpop.f32.mrf.mxu0
      %v859 = vadd.f32 %v296, %v858
      %v860 = vpop.f32.mrf.mxu0
      %v861 = vadd.f32 %v296, %v860
      %862 = vmatmul.bf16.gmra.mxu0 %v653
      %v863 = vpop.f32.mrf.mxu0
      %v864 = vadd.f32 %v296, %v863
      %v865 = vpop.f32.mrf.mxu0
      %v866 = vadd.f32 %v296, %v865
      %867 = vmatmul.bf16.gmra.mxu0 %v656
      %v868 = vpop.f32.mrf.mxu0
      %v869 = vadd.f32 %v296, %v868
      %v870 = vpop.f32.mrf.mxu0
      %v871 = vadd.f32 %v296, %v870
      %872 = vmatmul.bf16.gmra.mxu0 %v659
      %v873 = vpop.f32.mrf.mxu0
      %v874 = vadd.f32 %v296, %v873
      %v875 = vpop.f32.mrf.mxu0
      %v876 = vadd.f32 %v296, %v875
      %877 = vmatmul.bf16.gmra.mxu0 %v662
      %v878 = vpop.f32.mrf.mxu0
      %v879 = vadd.f32 %v296, %v878
      %v880 = vpop.f32.mrf.mxu0
      %v881 = vadd.f32 %v296, %v880
      %882 = vmatmul.bf16.gmra.mxu0 %v665
      %v883 = vpop.f32.mrf.mxu0
      %v884 = vadd.f32 %v296, %v883
      %v885 = vpop.f32.mrf.mxu0
      %v886 = vadd.f32 %v296, %v885
      %887 = vmatmul.bf16.gmra.mxu0 %v668
      %v888 = vpop.f32.mrf.mxu0
      %v889 = vadd.f32 %v296, %v888
      %v890 = vpop.f32.mrf.mxu0
      %v891 = vadd.f32 %v296, %v890
      %892 = vmatmul.bf16.gmra.mxu0 %v671
      %v893 = vpop.f32.mrf.mxu0
      %v894 = vadd.f32 %v296, %v893
      %v895 = vpop.f32.mrf.mxu0
      %v896 = vadd.f32 %v296, %v895
      %897 = vmatmul.bf16.gmra.mxu0 %v674
      %v898 = vpop.f32.mrf.mxu0
      %v899 = vadd.f32 %v296, %v898
      %v900 = vpop.f32.mrf.mxu0
      %v901 = vadd.f32 %v296, %v900
      %902 = vmatmul.bf16.gmra.mxu0 %v677
      %v903 = vpop.f32.mrf.mxu0
      %v904 = vadd.f32 %v296, %v903
      %v905 = vpop.f32.mrf.mxu0
      %v906 = vadd.f32 %v296, %v905
      %907 = vmatmul.bf16.gmra.mxu0 %v680
      %v908 = vpop.f32.mrf.mxu0
      %v909 = vadd.f32 %v296, %v908
      %v910 = vpop.f32.mrf.mxu0
      %v911 = vadd.f32 %v296, %v910
      %912 = vmatmul.bf16.gmra.mxu0 %v683
      %v913 = vpop.f32.mrf.mxu0
      %v914 = vadd.f32 %v296, %v913
      %v915 = vpop.f32.mrf.mxu0
      %v916 = vadd.f32 %v296, %v915
      %917 = vmatmul.bf16.gmra.mxu0 %v686
      %v918 = vpop.f32.mrf.mxu0
      %v919 = vadd.f32 %v296, %v918
      %v920 = vpop.f32.mrf.mxu0
      %v921 = vadd.f32 %v296, %v920
      %922 = vmatmul.bf16.gmra.mxu0 %v689
      %v923 = vpop.f32.mrf.mxu0
      %v924 = vadd.f32 %v296, %v923
      %v925 = vpop.f32.mrf.mxu0
      %v926 = vadd.f32 %v296, %v925
      %927 = vmatmul.bf16.gmra.mxu0 %v692
      %v928 = vpop.f32.mrf.mxu0
      %v929 = vadd.f32 %v296, %v928
      %v930 = vpop.f32.mrf.mxu0
      %v931 = vadd.f32 %v296, %v930
      %932 = vmatmul.bf16.gmra.mxu0 %v695
      %v933 = vpop.f32.mrf.mxu0
      %v934 = vadd.f32 %v296, %v933
      %v935 = vpop.f32.mrf.mxu0
      %v936 = vadd.f32 %v296, %v935
      %937 = vmatmul.bf16.gmra.mxu0 %v698
      %v938 = vpop.f32.mrf.mxu0
      %v939 = vadd.f32 %v296, %v938
      %v940 = vpop.f32.mrf.mxu0
      %v941 = vadd.f32 %v296, %v940
      %942 = vmatmul.bf16.gmra.mxu0 %v701
      %v943 = vpop.f32.mrf.mxu0
      %v944 = vadd.f32 %v296, %v943
      %v945 = vpop.f32.mrf.mxu0
      %v946 = vadd.f32 %v296, %v945
      %947 = vmatmul.bf16.gmra.mxu0 %v704
      %v948 = vpop.f32.mrf.mxu0
      %v949 = vadd.f32 %v296, %v948
      %v950 = vpop.f32.mrf.mxu0
      %v951 = vadd.f32 %v296, %v950
      %952 = vmatmul.bf16.gmra.mxu0 %v707
      %v953 = vpop.f32.mrf.mxu0
      %v954 = vadd.f32 %v296, %v953
      %v955 = vpop.f32.mrf.mxu0
      %v956 = vadd.f32 %v296, %v955
      %957 = vmatmul.bf16.gmra.mxu0 %v710
      %v958 = vpop.f32.mrf.mxu0
      %v959 = vadd.f32 %v296, %v958
      %v960 = vpop.f32.mrf.mxu0
      %v961 = vadd.f32 %v296, %v960
      %962 = vmatmul.bf16.gmra.mxu0 %v713
      %v963 = vpop.f32.mrf.mxu0
      %v964 = vadd.f32 %v296, %v963
      %v965 = vpop.f32.mrf.mxu0
      %v966 = vadd.f32 %v296, %v965
      %967 = vmatmul.bf16.gmra.mxu0 %v716
      %v968 = vpop.f32.mrf.mxu0
      %v969 = vadd.f32 %v296, %v968
      %v970 = vpop.f32.mrf.mxu0
      %v971 = vadd.f32 %v296, %v970
      %972 = vmatmul.bf16.gmra.mxu0 %v719
      %v973 = vpop.f32.mrf.mxu0
      %v974 = vadd.f32 %v296, %v973
      %v975 = vpop.f32.mrf.mxu0
      %v976 = vadd.f32 %v296, %v975
      %977 = vmatmul.bf16.gmra.mxu0 %v722
      %v978 = vpop.f32.mrf.mxu0
      %v979 = vadd.f32 %v296, %v978
      %v980 = vpop.f32.mrf.mxu0
      %v981 = vadd.f32 %v296, %v980
      %982 = vmatmul.bf16.gmra.mxu0 %v725
      %v983 = vpop.f32.mrf.mxu0
      %v984 = vadd.f32 %v296, %v983
      %v985 = vpop.f32.mrf.mxu0
      %v986 = vadd.f32 %v296, %v985
      %987 = vmatmul.bf16.gmra.mxu0 %v728
      %v988 = vpop.f32.mrf.mxu0
      %v989 = vadd.f32 %v296, %v988
      %v990 = vpop.f32.mrf.mxu0
      %v991 = vadd.f32 %v296, %v990
      %992 = vmatmul.bf16.gmra.mxu0 %v731
      %v993 = vpop.f32.mrf.mxu0
      %v994 = vadd.f32 %v296, %v993
      %v995 = vpop.f32.mrf.mxu0
      %v996 = vadd.f32 %v296, %v995
      %997 = vmatmul.bf16.gmra.mxu0 %v734
      %v998 = vpop.f32.mrf.mxu0
      %v999 = vadd.f32 %v296, %v998
      %v1000 = vpop.f32.mrf.mxu0
      %v1001 = vadd.f32 %v296, %v1000
      %1002 = vmatmul.bf16.gmra.mxu0 %v737
      %v1003 = vpop.f32.mrf.mxu0
      %v1004 = vadd.f32 %v296, %v1003
      %v1005 = vpop.f32.mrf.mxu0
      %v1006 = vadd.f32 %v296, %v1005
      %1007 = vmatmul.bf16.gmra.mxu0 %v740
      %v1008 = vpop.f32.mrf.mxu0
      %v1009 = vadd.f32 %v296, %v1008
      %v1010 = vpop.f32.mrf.mxu0
      %v1011 = vadd.f32 %v296, %v1010
      %1012 = vmatmul.bf16.gmra.mxu0 %v743
      %v1013 = vpop.f32.mrf.mxu0
      %v1014 = vadd.f32 %v296, %v1013
      %v1015 = vpop.f32.mrf.mxu0
      %v1016 = vadd.f32 %v296, %v1015
      %1017 = vmatmul.bf16.gmra.mxu0 %v746
      %v1018 = vpop.f32.mrf.mxu0
      %v1019 = vadd.f32 %v296, %v1018
      %v1020 = vpop.f32.mrf.mxu0
      %v1021 = vadd.f32 %v296, %v1020
      %1022 = vmatmul.bf16.gmra.mxu0 %v749
      %v1023 = vpop.f32.mrf.mxu0
      %v1024 = vadd.f32 %v296, %v1023
      %v1025 = vpop.f32.mrf.mxu0
      %v1026 = vadd.f32 %v296, %v1025
      %1027 = vmatmul.bf16.gmra.mxu0 %v752
      %v1028 = vpop.f32.mrf.mxu0
      %v1029 = vadd.f32 %v296, %v1028
      %v1030 = vpop.f32.mrf.mxu0
      %v1031 = vadd.f32 %v296, %v1030
      %1032 = vmatmul.bf16.gmra.mxu0 %v755
      %v1033 = vpop.f32.mrf.mxu0
      %v1034 = vadd.f32 %v296, %v1033
      %v1035 = vpop.f32.mrf.mxu0
      %v1036 = vadd.f32 %v296, %v1035
      %1037 = vmatmul.bf16.gmra.mxu0 %v758
      %v1038 = vpop.f32.mrf.mxu0
      %v1039 = vadd.f32 %v296, %v1038
      %v1040 = vpop.f32.mrf.mxu0
      %v1041 = vadd.f32 %v296, %v1040
      %1042 = vmatmul.bf16.gmra.mxu0 %v761
      %v1043 = vpop.f32.mrf.mxu0
      %v1044 = vadd.f32 %v296, %v1043
      %v1045 = vpop.f32.mrf.mxu0
      %v1046 = vadd.f32 %v296, %v1045
      %1047 = vmatmul.bf16.gmra.mxu0 %v764
      %v1048 = vpop.f32.mrf.mxu0
      %v1049 = vadd.f32 %v296, %v1048
      %v1050 = vpop.f32.mrf.mxu0
      %v1051 = vadd.f32 %v296, %v1050
      %1052 = vmatmul.bf16.gmra.mxu0 %v767
      %v1053 = vpop.f32.mrf.mxu0
      %v1054 = vadd.f32 %v296, %v1053
      %v1055 = vpop.f32.mrf.mxu0
      %1056 = vdwg.mxu0
      %v1057 = vmax.f32 %v779, 0.0
      %v1058 = vmax.f32 %v781, 0.0
      %v1059 = vmax.f32 %v784, 0.0
      %v1060 = vmax.f32 %v786, 0.0
      %v1061 = vmax.f32 %v789, 0.0
      %v1062 = vmax.f32 %v791, 0.0
      %v1063 = vmax.f32 %v794, 0.0
      %v1064 = vmax.f32 %v796, 0.0
      %v1065 = vmax.f32 %v799, 0.0
      %v1066 = vmax.f32 %v801, 0.0
      %v1067 = vmax.f32 %v804, 0.0
      %v1068 = vmax.f32 %v806, 0.0
      %v1069 = vmax.f32 %v809, 0.0
      %v1070 = vmax.f32 %v811, 0.0
      %v1071 = vmax.f32 %v814, 0.0
      %v1072 = vmax.f32 %v816, 0.0
      %v1073 = vmax.f32 %v819, 0.0
      %v1074 = vmax.f32 %v821, 0.0
      %v1075 = vmax.f32 %v824, 0.0
      %v1076 = vmax.f32 %v826, 0.0
      %v1077 = vmax.f32 %v829, 0.0
      %v1078 = vmax.f32 %v831, 0.0
      %v1079 = vmax.f32 %v834, 0.0
      %v1080 = vmax.f32 %v836, 0.0
      %v1081 = vmax.f32 %v839, 0.0
      %v1082 = vmax.f32 %v841, 0.0
      %v1083 = vmax.f32 %v844, 0.0
      %v1084 = vmax.f32 %v846, 0.0
      %v1085 = vmax.f32 %v849, 0.0
      %v1086 = vmax.f32 %v851, 0.0
      %v1087 = vmax.f32 %v854, 0.0
      %v1088 = vmax.f32 %v856, 0.0
      %v1089 = vmax.f32 %v859, 0.0
      %v1090 = vmax.f32 %v861, 0.0
      %v1091 = vmax.f32 %v864, 0.0
      %v1092 = vmax.f32 %v866, 0.0
      %v1093 = vmax.f32 %v869, 0.0
      %v1094 = vmax.f32 %v871, 0.0
      %v1095 = vmax.f32 %v874, 0.0
      %v1096 = vmax.f32 %v876, 0.0
      %v1097 = vmax.f32 %v879, 0.0
      %v1098 = vmax.f32 %v881, 0.0
      %v1099 = vmax.f32 %v884, 0.0
      %v1100 = vmax.f32 %v886, 0.0
      %v1101 = vmax.f32 %v889, 0.0
      %v1102 = vmax.f32 %v891, 0.0
      %v1103 = vmax.f32 %v894, 0.0
      %v1104 = vmax.f32 %v896, 0.0
      %v1105 = vmax.f32 %v899, 0.0
      %v1106 = vmax.f32 %v901, 0.0
      %v1107 = vmax.f32 %v904, 0.0
      %v1108 = vmax.f32 %v906, 0.0
      %v1109 = vmax.f32 %v909, 0.0
      %v1110 = vmax.f32 %v911, 0.0
      %v1111 = vmax.f32 %v914, 0.0
      %v1112 = vmax.f32 %v916, 0.0
      %v1113 = vmax.f32 %v919, 0.0
      %v1114 = vmax.f32 %v921, 0.0
      %v1115 = vmax.f32 %v924, 0.0
      %v1116 = vmax.f32 %v926, 0.0
      %v1117 = vmax.f32 %v929, 0.0
      %v1118 = vmax.f32 %v931, 0.0
      %v1119 = vmax.f32 %v934, 0.0
      %v1120 = vmax.f32 %v936, 0.0
      %v1121 = vmax.f32 %v939, 0.0
      %v1122 = vmax.f32 %v941, 0.0
      %v1123 = vmax.f32 %v944, 0.0
      %v1124 = vmax.f32 %v946, 0.0
      %v1125 = vmax.f32 %v949, 0.0
      %v1126 = vmax.f32 %v951, 0.0
      %v1127 = vmax.f32 %v954, 0.0
      %v1128 = vmax.f32 %v956, 0.0
      %v1129 = vmax.f32 %v959, 0.0
      %v1130 = vmax.f32 %v961, 0.0
      %v1131 = vmax.f32 %v964, 0.0
      %v1132 = vmax.f32 %v966, 0.0
      %v1133 = vmax.f32 %v969, 0.0
      %v1134 = vmax.f32 %v971, 0.0
      %v1135 = vmax.f32 %v974, 0.0
      %v1136 = vmax.f32 %v976, 0.0
      %v1137 = vmax.f32 %v979, 0.0
      %v1138 = vmax.f32 %v981, 0.0
      %v1139 = vmax.f32 %v984, 0.0
      %v1140 = vmax.f32 %v986, 0.0
      %v1141 = vmax.f32 %v989, 0.0
      %v1142 = vmax.f32 %v991, 0.0
      %v1143 = vmax.f32 %v994, 0.0
      %v1144 = vmax.f32 %v996, 0.0
      %v1145 = vmax.f32 %v999, 0.0
      %v1146 = vmax.f32 %v1001, 0.0
      %v1147 = vmax.f32 %v1004, 0.0
      %v1148 = vmax.f32 %v1006, 0.0
      %v1149 = vmax.f32 %v1009, 0.0
      %v1150 = vmax.f32 %v1011, 0.0
      %v1151 = vmax.f32 %v1014, 0.0
      %v1152 = vmax.f32 %v1016, 0.0
      %v1153 = vmax.f32 %v1019, 0.0
      %v1154 = vmax.f32 %v1021, 0.0
      %v1155 = vmax.f32 %v1024, 0.0
      %v1156 = vmax.f32 %v1026, 0.0
      %v1157 = vmax.f32 %v1029, 0.0
      %v1158 = vmax.f32 %v1031, 0.0
      %v1159 = vmax.f32 %v1034, 0.0
      %v1160 = vmax.f32 %v1036, 0.0
      %v1161 = vmax.f32 %v1039, 0.0
      %v1162 = vmax.f32 %v1041, 0.0
      %v1163 = vmax.f32 %v1044, 0.0
      %v1164 = vmax.f32 %v1046, 0.0
      %v1165 = vmax.f32 %v1049, 0.0
      %v1166 = vmax.f32 %v1051, 0.0
      %v1167 = vmax.f32 %v1054, 0.0
      %v1168 = vpack.c.bf16 %v1057, %v1057
      %v1169 = vpack.c.bf16 %v1058, %v1058
      %v1170 = vpack.c.bf16 %v1059, %v1059
      %v1171 = vpack.c.bf16 %v1060, %v1060
      %v1172 = vpack.c.bf16 %v1061, %v1061
      %v1173 = vpack.c.bf16 %v1062, %v1062
      %v1174 = vpack.c.bf16 %v1063, %v1063
      %v1175 = vpack.c.bf16 %v1064, %v1064
      %v1176 = vpack.c.bf16 %v1065, %v1065
      %v1177 = vpack.c.bf16 %v1066, %v1066
      %v1178 = vpack.c.bf16 %v1067, %v1067
      %v1179 = vpack.c.bf16 %v1068, %v1068
      %v1180 = vpack.c.bf16 %v1069, %v1069
      %v1181 = vpack.c.bf16 %v1070, %v1070
      %v1182 = vpack.c.bf16 %v1071, %v1071
      %v1183 = vpack.c.bf16 %v1072, %v1072
      %v1184 = vpack.c.bf16 %v1073, %v1073
      %v1185 = vpack.c.bf16 %v1074, %v1074
      %v1186 = vpack.c.bf16 %v1075, %v1075
      %v1187 = vpack.c.bf16 %v1076, %v1076
      %v1188 = vpack.c.bf16 %v1077, %v1077
      %v1189 = vpack.c.bf16 %v1078, %v1078
      %v1190 = vpack.c.bf16 %v1079, %v1079
      %v1191 = vpack.c.bf16 %v1080, %v1080
      %v1192 = vpack.c.bf16 %v1081, %v1081
      %v1193 = vpack.c.bf16 %v1082, %v1082
      %v1194 = vpack.c.bf16 %v1083, %v1083
      %v1195 = vpack.c.bf16 %v1084, %v1084
      %v1196 = vpack.c.bf16 %v1085, %v1085
      %v1197 = vpack.c.bf16 %v1086, %v1086
      %v1198 = vpack.c.bf16 %v1087, %v1087
      %v1199 = vpack.c.bf16 %v1088, %v1088
      %v1200 = vpack.c.bf16 %v1089, %v1089
      %v1201 = vpack.c.bf16 %v1090, %v1090
      %v1202 = vpack.c.bf16 %v1091, %v1091
      %v1203 = vpack.c.bf16 %v1092, %v1092
      %v1204 = vpack.c.bf16 %v1093, %v1093
      %v1205 = vpack.c.bf16 %v1094, %v1094
      %v1206 = vpack.c.bf16 %v1095, %v1095
      %v1207 = vpack.c.bf16 %v1096, %v1096
      %v1208 = vpack.c.bf16 %v1097, %v1097
      %v1209 = vpack.c.bf16 %v1098, %v1098
      %v1210 = vpack.c.bf16 %v1099, %v1099
      %v1211 = vpack.c.bf16 %v1100, %v1100
      %v1212 = vpack.c.bf16 %v1101, %v1101
      %v1213 = vpack.c.bf16 %v1102, %v1102
      %v1214 = vpack.c.bf16 %v1103, %v1103
      %v1215 = vpack.c.bf16 %v1104, %v1104
      %v1216 = vpack.c.bf16 %v1105, %v1105
      %v1217 = vpack.c.bf16 %v1106, %v1106
      %v1218 = vpack.c.bf16 %v1107, %v1107
      %v1219 = vpack.c.bf16 %v1108, %v1108
      %v1220 = vpack.c.bf16 %v1109, %v1109
      %v1221 = vpack.c.bf16 %v1110, %v1110
      %v1222 = vpack.c.bf16 %v1111, %v1111
      %v1223 = vpack.c.bf16 %v1112, %v1112
      %v1224 = vpack.c.bf16 %v1113, %v1113
      %v1225 = vpack.c.bf16 %v1114, %v1114
      %v1226 = vpack.c.bf16 %v1115, %v1115
      %v1227 = vpack.c.bf16 %v1116, %v1116
      %v1228 = vpack.c.bf16 %v1117, %v1117
      %v1229 = vpack.c.bf16 %v1118, %v1118
      %v1230 = vpack.c.bf16 %v1119, %v1119
      %v1231 = vpack.c.bf16 %v1120, %v1120
      %v1232 = vpack.c.bf16 %v1121, %v1121
      %v1233 = vpack.c.bf16 %v1122, %v1122
      %v1234 = vpack.c.bf16 %v1123, %v1123
      %v1235 = vpack.c.bf16 %v1124, %v1124
      %v1236 = vpack.c.bf16 %v1125, %v1125
      %v1237 = vpack.c.bf16 %v1126, %v1126
      %v1238 = vpack.c.bf16 %v1127, %v1127
      %v1239 = vpack.c.bf16 %v1128, %v1128
      %v1240 = vpack.c.bf16 %v1129, %v1129
      %v1241 = vpack.c.bf16 %v1130, %v1130
      %v1242 = vpack.c.bf16 %v1131, %v1131
      %v1243 = vpack.c.bf16 %v1132, %v1132
      %v1244 = vpack.c.bf16 %v1133, %v1133
      %v1245 = vpack.c.bf16 %v1134, %v1134
      %v1246 = vpack.c.bf16 %v1135, %v1135
      %v1247 = vpack.c.bf16 %v1136, %v1136
      %v1248 = vpack.c.bf16 %v1137, %v1137
      %v1249 = vpack.c.bf16 %v1138, %v1138
      %v1250 = vpack.c.bf16 %v1139, %v1139
      %v1251 = vpack.c.bf16 %v1140, %v1140
      %v1252 = vpack.c.bf16 %v1141, %v1141
      %v1253 = vpack.c.bf16 %v1142, %v1142
      %v1254 = vpack.c.bf16 %v1143, %v1143
      %v1255 = vpack.c.bf16 %v1144, %v1144
      %v1256 = vpack.c.bf16 %v1145, %v1145
      %v1257 = vpack.c.bf16 %v1146, %v1146
      %v1258 = vpack.c.bf16 %v1147, %v1147
      %v1259 = vpack.c.bf16 %v1148, %v1148
      %v1260 = vpack.c.bf16 %v1149, %v1149
      %v1261 = vpack.c.bf16 %v1150, %v1150
      %v1262 = vpack.c.bf16 %v1151, %v1151
      %v1263 = vpack.c.bf16 %v1152, %v1152
      %v1264 = vpack.c.bf16 %v1153, %v1153
      %v1265 = vpack.c.bf16 %v1154, %v1154
      %v1266 = vpack.c.bf16 %v1155, %v1155
      %v1267 = vpack.c.bf16 %v1156, %v1156
      %v1268 = vpack.c.bf16 %v1157, %v1157
      %v1269 = vpack.c.bf16 %v1158, %v1158
      %v1270 = vpack.c.bf16 %v1159, %v1159
      %v1271 = vpack.c.bf16 %v1160, %v1160
      %v1272 = vpack.c.bf16 %v1161, %v1161
      %v1273 = vpack.c.bf16 %v1162, %v1162
      %v1274 = vpack.c.bf16 %v1163, %v1163
      %v1275 = vpack.c.bf16 %v1164, %v1164
      %v1276 = vpack.c.bf16 %v1165, %v1165
      %v1277 = vpack.c.bf16 %v1166, %v1166
      %v1278 = vpack.c.bf16 %v1167, %v1167
      %vm1279 = vcmask 60416
      %1280 = vst.msk [vmem:[%s172] sm:$0xf] %vm1279, %v1168
      %1281 = vst.msk [vmem:[%s172 + $0x4] sm:$0xf] %vm1279, %v1169
      %1282 = vst.msk [vmem:[%s172 + $0x8] sm:$0xf] %vm1279, %v1170
      %1283 = vst.msk [vmem:[%s172 + $0xc] sm:$0xf] %vm1279, %v1171
      %1284 = vst.msk [vmem:[%s172 + $0x10] sm:$0xf] %vm1279, %v1172
      %1285 = vst.msk [vmem:[%s172 + $0x14] sm:$0xf] %vm1279, %v1173
      %1286 = vst.msk [vmem:[%s172 + $0x18] sm:$0xf] %vm1279, %v1174
      %1287 = vst.msk [vmem:[%s172 + $0x1c] sm:$0xf] %vm1279, %v1175
      %1288 = vst.msk [vmem:[%s172 + $0x20] sm:$0xf] %vm1279, %v1176
      %1289 = vst.msk [vmem:[%s172 + $0x24] sm:$0xf] %vm1279, %v1177
      %1290 = vst.msk [vmem:[%s172 + $0x28] sm:$0xf] %vm1279, %v1178
      %1291 = vst.msk [vmem:[%s172 + $0x2c] sm:$0xf] %vm1279, %v1179
      %1292 = vst.msk [vmem:[%s172 + $0x30] sm:$0xf] %vm1279, %v1180
      %1293 = vst.msk [vmem:[%s172 + $0x34] sm:$0xf] %vm1279, %v1181
      %1294 = vst.msk [vmem:[%s172 + $0x38] sm:$0xf] %vm1279, %v1182
      %1295 = vst.msk [vmem:[%s172 + $0x3c] sm:$0xf] %vm1279, %v1183
      %1296 = vst.msk [vmem:[%s172 + $0x40] sm:$0xf] %vm1279, %v1184
      %1297 = vst.msk [vmem:[%s172 + $0x44] sm:$0xf] %vm1279, %v1185
      %1298 = vst.msk [vmem:[%s172 + $0x48] sm:$0xf] %vm1279, %v1186
      %1299 = vst.msk [vmem:[%s172 + $0x4c] sm:$0xf] %vm1279, %v1187
      %1300 = vst.msk [vmem:[%s172 + $0x50] sm:$0xf] %vm1279, %v1188
      %1301 = vst.msk [vmem:[%s172 + $0x54] sm:$0xf] %vm1279, %v1189
      %1302 = vst.msk [vmem:[%s172 + $0x58] sm:$0xf] %vm1279, %v1190
      %1303 = vst.msk [vmem:[%s172 + $0x5c] sm:$0xf] %vm1279, %v1191
      %1304 = vst.msk [vmem:[%s172 + $0x60] sm:$0xf] %vm1279, %v1192
      %1305 = vst.msk [vmem:[%s172 + $0x64] sm:$0xf] %vm1279, %v1193
      %1306 = vst.msk [vmem:[%s172 + $0x68] sm:$0xf] %vm1279, %v1194
      %1307 = vst.msk [vmem:[%s172 + $0x6c] sm:$0xf] %vm1279, %v1195
      %1308 = vst.msk [vmem:[%s172 + $0x70] sm:$0xf] %vm1279, %v1196
      %1309 = vst.msk [vmem:[%s172 + $0x74] sm:$0xf] %vm1279, %v1197
      %1310 = vst.msk [vmem:[%s172 + $0x78] sm:$0xf] %vm1279, %v1198
      %1311 = vst.msk [vmem:[%s172 + $0x7c] sm:$0xf] %vm1279, %v1199
      %1312 = vst.msk [vmem:[%s172 + $0x80] sm:$0xf] %vm1279, %v1200
      %1313 = vst.msk [vmem:[%s172 + $0x84] sm:$0xf] %vm1279, %v1201
      %1314 = vst.msk [vmem:[%s172 + $0x88] sm:$0xf] %vm1279, %v1202
      %1315 = vst.msk [vmem:[%s172 + $0x8c] sm:$0xf] %vm1279, %v1203
      %1316 = vst.msk [vmem:[%s172 + $0x90] sm:$0xf] %vm1279, %v1204
      %1317 = vst.msk [vmem:[%s172 + $0x94] sm:$0xf] %vm1279, %v1205
      %1318 = vst.msk [vmem:[%s172 + $0x98] sm:$0xf] %vm1279, %v1206
      %1319 = vst.msk [vmem:[%s172 + $0x9c] sm:$0xf] %vm1279, %v1207
      %1320 = vst.msk [vmem:[%s172 + $0xa0] sm:$0xf] %vm1279, %v1208
      %1321 = vst.msk [vmem:[%s172 + $0xa4] sm:$0xf] %vm1279, %v1209
      %1322 = vst.msk [vmem:[%s172 + $0xa8] sm:$0xf] %vm1279, %v1210
      %1323 = vst.msk [vmem:[%s172 + $0xac] sm:$0xf] %vm1279, %v1211
      %1324 = vst.msk [vmem:[%s172 + $0xb0] sm:$0xf] %vm1279, %v1212
      %1325 = vst.msk [vmem:[%s172 + $0xb4] sm:$0xf] %vm1279, %v1213
      %1326 = vst.msk [vmem:[%s172 + $0xb8] sm:$0xf] %vm1279, %v1214
      %1327 = vst.msk [vmem:[%s172 + $0xbc] sm:$0xf] %vm1279, %v1215
      %1328 = vst.msk [vmem:[%s172 + $0xc0] sm:$0xf] %vm1279, %v1216
      %1329 = vst.msk [vmem:[%s172 + $0xc4] sm:$0xf] %vm1279, %v1217
      %1330 = vst.msk [vmem:[%s172 + $0xc8] sm:$0xf] %vm1279, %v1218
      %1331 = vst.msk [vmem:[%s172 + $0xcc] sm:$0xf] %vm1279, %v1219
      %1332 = vst.msk [vmem:[%s172 + $0xd0] sm:$0xf] %vm1279, %v1220
      %1333 = vst.msk [vmem:[%s172 + $0xd4] sm:$0xf] %vm1279, %v1221
      %1334 = vst.msk [vmem:[%s172 + $0xd8] sm:$0xf] %vm1279, %v1222
      %1335 = vst.msk [vmem:[%s172 + $0xdc] sm:$0xf] %vm1279, %v1223
      %1336 = vst.msk [vmem:[%s172 + $0xe0] sm:$0xf] %vm1279, %v1224
      %1337 = vst.msk [vmem:[%s172 + $0xe4] sm:$0xf] %vm1279, %v1225
      %1338 = vst.msk [vmem:[%s172 + $0xe8] sm:$0xf] %vm1279, %v1226
      %1339 = vst.msk [vmem:[%s172 + $0xec] sm:$0xf] %vm1279, %v1227
      %1340 = vst.msk [vmem:[%s172 + $0xf0] sm:$0xf] %vm1279, %v1228
      %1341 = vst.msk [vmem:[%s172 + $0xf4] sm:$0xf] %vm1279, %v1229
      %1342 = vst.msk [vmem:[%s172 + $0xf8] sm:$0xf] %vm1279, %v1230
      %1343 = vst.msk [vmem:[%s172 + $0xfc] sm:$0xf] %vm1279, %v1231
      %1344 = vst.msk [vmem:[%s172 + $0x100] sm:$0xf] %vm1279, %v1232
      %1345 = vst.msk [vmem:[%s172 + $0x104] sm:$0xf] %vm1279, %v1233
      %1346 = vst.msk [vmem:[%s172 + $0x108] sm:$0xf] %vm1279, %v1234
      %1347 = vst.msk [vmem:[%s172 + $0x10c] sm:$0xf] %vm1279, %v1235
      %1348 = vst.msk [vmem:[%s172 + $0x110] sm:$0xf] %vm1279, %v1236
      %1349 = vst.msk [vmem:[%s172 + $0x114] sm:$0xf] %vm1279, %v1237
      %1350 = vst.msk [vmem:[%s172 + $0x118] sm:$0xf] %vm1279, %v1238
      %1351 = vst.msk [vmem:[%s172 + $0x11c] sm:$0xf] %vm1279, %v1239
      %1352 = vst.msk [vmem:[%s172 + $0x120] sm:$0xf] %vm1279, %v1240
      %1353 = vst.msk [vmem:[%s172 + $0x124] sm:$0xf] %vm1279, %v1241
      %1354 = vst.msk [vmem:[%s172 + $0x128] sm:$0xf] %vm1279, %v1242
      %1355 = vst.msk [vmem:[%s172 + $0x12c] sm:$0xf] %vm1279, %v1243
      %1356 = vst.msk [vmem:[%s172 + $0x130] sm:$0xf] %vm1279, %v1244
      %1357 = vst.msk [vmem:[%s172 + $0x134] sm:$0xf] %vm1279, %v1245
      %1358 = vst.msk [vmem:[%s172 + $0x138] sm:$0xf] %vm1279, %v1246
      %1359 = vst.msk [vmem:[%s172 + $0x13c] sm:$0xf] %vm1279, %v1247
      %1360 = vst.msk [vmem:[%s172 + $0x140] sm:$0xf] %vm1279, %v1248
      %1361 = vst.msk [vmem:[%s172 + $0x144] sm:$0xf] %vm1279, %v1249
      %1362 = vst.msk [vmem:[%s172 + $0x148] sm:$0xf] %vm1279, %v1250
      %1363 = vst.msk [vmem:[%s172 + $0x14c] sm:$0xf] %vm1279, %v1251
      %1364 = vst.msk [vmem:[%s172 + $0x150] sm:$0xf] %vm1279, %v1252
      %1365 = vst.msk [vmem:[%s172 + $0x154] sm:$0xf] %vm1279, %v1253
      %1366 = vst.msk [vmem:[%s172 + $0x158] sm:$0xf] %vm1279, %v1254
      %1367 = vst.msk [vmem:[%s172 + $0x15c] sm:$0xf] %vm1279, %v1255
      %1368 = vst.msk [vmem:[%s172 + $0x160] sm:$0xf] %vm1279, %v1256
      %1369 = vst.msk [vmem:[%s172 + $0x164] sm:$0xf] %vm1279, %v1257
      %1370 = vst.msk [vmem:[%s172 + $0x168] sm:$0xf] %vm1279, %v1258
      %1371 = vst.msk [vmem:[%s172 + $0x16c] sm:$0xf] %vm1279, %v1259
      %1372 = vst.msk [vmem:[%s172 + $0x170] sm:$0xf] %vm1279, %v1260
      %1373 = vst.msk [vmem:[%s172 + $0x174] sm:$0xf] %vm1279, %v1261
      %1374 = vst.msk [vmem:[%s172 + $0x178] sm:$0xf] %vm1279, %v1262
      %1375 = vst.msk [vmem:[%s172 + $0x17c] sm:$0xf] %vm1279, %v1263
      %1376 = vst.msk [vmem:[%s172 + $0x180] sm:$0xf] %vm1279, %v1264
      %1377 = vst.msk [vmem:[%s172 + $0x184] sm:$0xf] %vm1279, %v1265
      %1378 = vst.msk [vmem:[%s172 + $0x188] sm:$0xf] %vm1279, %v1266
      %1379 = vst.msk [vmem:[%s172 + $0x18c] sm:$0xf] %vm1279, %v1267
      %1380 = vst.msk [vmem:[%s172 + $0x190] sm:$0xf] %vm1279, %v1268
      %1381 = vst.msk [vmem:[%s172 + $0x194] sm:$0xf] %vm1279, %v1269
      %1382 = vst.msk [vmem:[%s172 + $0x198] sm:$0xf] %vm1279, %v1270
      %1383 = vst.msk [vmem:[%s172 + $0x19c] sm:$0xf] %vm1279, %v1271
      %1384 = vst.msk [vmem:[%s172 + $0x1a0] sm:$0xf] %vm1279, %v1272
      %1385 = vst.msk [vmem:[%s172 + $0x1a4] sm:$0xf] %vm1279, %v1273
      %1386 = vst.msk [vmem:[%s172 + $0x1a8] sm:$0xf] %vm1279, %v1274
      %1387 = vst.msk [vmem:[%s172 + $0x1ac] sm:$0xf] %vm1279, %v1275
      %1388 = vst.msk [vmem:[%s172 + $0x1b0] sm:$0xf] %vm1279, %v1276
      %1389 = vst.msk [vmem:[%s172 + $0x1b4] sm:$0xf] %vm1279, %v1277
      %1390 = vst.msk [vmem:[%s172 + $0x1b8] sm:$0xf] %vm1279, %v1278
      %s1391 = smul.u32 111, %s14
      %p1392 = scmp.lt.s32.totalorder %s1391, 554
      %s1393 = scalar_select %p1392, %s1391, 554
      %s1394 = smul.addr %s1393, 4
      %s1395 = scalar_lea.vmem %s3, %s1394
      // Predicated region
      $region33: #{nn_forward.7} parent=31 // pred_check
        %p1396 = pneg %p100
      $region34: #{nn_forward.7} parent=31 // pred_check_branch
        %1398 = sbr.rel (%p1396) target = $region36
      $region35: #{nn_forward.7} parent=31 // pred_region
        %s1399 = smul.u32 111, %s14
      $region36: #{nn_forward.7} parent=31 // pred_fallthru
        _
    $region32: #{nn_forward.7} parent=5 // pred_fallthru
      _
    %p1400 = scmp.le.s32.totalorder 2, %s9
    // Predicated region
    $region37: #{nn_forward.7} parent=5 // pred_check
      %p1401 = pneg %p1400
    $region38: #{nn_forward.7} parent=5 // pred_check_branch
      %1403 = sbr.rel (%p1401) target = $region40
    $region39: #{nn_forward.7} parent=5 // pred_region
      %s1404 = ssub.s32 %s9, 2
      // Predicated region
      $region41: #{nn_forward.7} parent=39 // pred_check
        %p1405 = pneg %p106
      $region42: #{nn_forward.7} parent=39 // pred_check_branch
        %1407 = sbr.rel (%p1405) target = $region44
      $region43: #{nn_forward.7} parent=39 // pred_region
        %s1408 = smul.u32 111, %s15
        %p1409 = scmp.lt.s32.totalorder %s1408, 554
        %s1410 = scalar_select %p1409, %s1408, 554
        %s1411 = smul.addr %s1410, 4
        %s1412 = scalar_lea.vmem %s3, %s1411
      $region44: #{nn_forward.7} parent=39 // pred_fallthru
        _
    $region40: #{nn_forward.7} parent=5 // pred_fallthru
      _
  $region6: #{nn_forward.7} parent=0 // loop_footer
    %s13 = sadd.s32 1, %s9
  $region7: #{nn_forward.7} parent=0 // loop_footer_branch
    %8 = sbr.rel target = $region3
  $region8: #{nn_forward.7} parent=0 // loop_exit
    _

// kernel: nn_forward.8
$region0: #{nn_forward.8}
  #allocation0 [shape = 'u32[]', space=smem, size = 0x4, offset = 0x4, fixed_abs, tag = 'smem constant byte address 0x4 - core index']
  #allocation1 [shape = 'u32[72,128]{1,0:T(1,128)}', space=vmem, size = 0x9000, scoped, tag = 'internal scratch']
  %s0 = inlined_call_operand.vmem [shape: bf16[1072,72], index: 0, kind: input, shape index: {}]
  %s1 = inlined_call_operand.vmem [shape: bf16[72,16], index: 1, kind: input, shape index: {}]
  %s2 = inlined_call_operand.vmem [shape: f32[1,16], index: 2, kind: input, shape index: {}]
  %s3 = inlined_call_operand.vmem [shape: bf16[1072,16], index: 3, kind: output, shape index: {}]
  %s4 = sld [smem:[#allocation0]]
  $region45: #{nn_forward.8} parent=0
    _
  %s6 = ssub.s32 1, %s4
  %s7 = scalar_select 0, %s6, %s4
  loop: start=0, step=1, limit=4
  $region2: #{nn_forward.8} parent=0 // loop_pre_header
    _
  $region3: #{nn_forward.8} parent=0 // loop_header
    %s9 = sphi 0, %s13
    %p10 = scmp.ge.s32.totalorder %s9, 4
    %s19 = sphi 0, %s21
    %s22 = sphi 0, %s19
    %s23 = sphi 0, %s22
    %s39 = sphi 0, %s23
    %s43 = sphi 0, %s43
    %s45 = sphi 0, %s43
    %s46 = sphi 0, %s45
    %s60 = sphi 0, %s46
    %s64 = sphi 0, %s64
    %s66 = sphi 0, %s64
    %s67 = sphi 0, %s66
    %s81 = sphi 0, %s67
    %s87 = sphi 0, %s89
    %s90 = sphi 0, %s87
    %s91 = sphi 0, %s90
    %s107 = sphi 0, %s91
  $region4: #{nn_forward.8} parent=0 // loop_header_branch
    %12 = sbr.rel (%p10) target = $region8
  $region5: #{nn_forward.8} parent=0 // loop_body
    %s14 = ssub.s32 %s9, 1
    %s15 = ssub.s32 %s9, 2
    %s16 = sadd.s32 %s9, 1
    %s17 = ssub.s32 %s9, %s16
    %p18 = scmp.eq.s32.totalorder %s17, 0
    %s20 = sadd.s32 %s19, 1
    %s21 = scalar_select %p18, %s19, %s20
    %p24 = pneg %p18
    %p25 = scmp.eq.s32.totalorder %s9, 1
    %p26 = por %p24, %p25
    %p27 = scmp.ne.s32.totalorder %s19, %s22
    %p28 = scmp.eq.s32.totalorder %s9, 0
    %p29 = por %p27, %p28
    %p30 = scmp.ne.s32.totalorder %s19, %s22
    %p31 = scmp.eq.s32.totalorder %s14, 1
    %p32 = por %p30, %p31
    %p33 = scmp.ne.s32.totalorder %s22, %s23
    %p34 = scmp.eq.s32.totalorder %s14, 0
    %p35 = por %p33, %p34
    %p36 = scmp.ne.s32.totalorder %s22, %s23
    %p37 = scmp.eq.s32.totalorder %s15, 1
    %p38 = por %p36, %p37
    %p40 = scmp.ne.s32.totalorder %s23, %s39
    %p41 = scmp.eq.s32.totalorder %s15, 0
    %p42 = por %p40, %p41
    %s44 = sadd.s32 %s43, 1
    %p47 = scmp.eq.s32.totalorder %s9, 1
    %p48 = scmp.ne.s32.totalorder %s43, %s45
    %p49 = scmp.eq.s32.totalorder %s9, 0
    %p50 = por %p48, %p49
    %p51 = scmp.ne.s32.totalorder %s43, %s45
    %p52 = scmp.eq.s32.totalorder %s14, 1
    %p53 = por %p51, %p52
    %p54 = scmp.ne.s32.totalorder %s45, %s46
    %p55 = scmp.eq.s32.totalorder %s14, 0
    %p56 = por %p54, %p55
    %p57 = scmp.ne.s32.totalorder %s45, %s46
    %p58 = scmp.eq.s32.totalorder %s15, 1
    %p59 = por %p57, %p58
    %p61 = scmp.ne.s32.totalorder %s46, %s60
    %p62 = scmp.eq.s32.totalorder %s15, 0
    %p63 = por %p61, %p62
    %s65 = sadd.s32 %s64, 1
    %p68 = scmp.eq.s32.totalorder %s9, 1
    %p69 = scmp.ne.s32.totalorder %s64, %s66
    %p70 = scmp.eq.s32.totalorder %s9, 0
    %p71 = por %p69, %p70
    %p72 = scmp.ne.s32.totalorder %s64, %s66
    %p73 = scmp.eq.s32.totalorder %s14, 1
    %p74 = por %p72, %p73
    %p75 = scmp.ne.s32.totalorder %s66, %s67
    %p76 = scmp.eq.s32.totalorder %s14, 0
    %p77 = por %p75, %p76
    %p78 = scmp.ne.s32.totalorder %s66, %s67
    %p79 = scmp.eq.s32.totalorder %s15, 1
    %p80 = por %p78, %p79
    %p82 = scmp.ne.s32.totalorder %s67, %s81
    %p83 = scmp.eq.s32.totalorder %s15, 0
    %p84 = por %p82, %p83
    %s85 = ssub.s32 %s9, %s16
    %p86 = scmp.eq.s32.totalorder %s85, 0
    %s88 = sadd.s32 %s87, 1
    %s89 = scalar_select %p86, %s87, %s88
    %p92 = pneg %p86
    %p93 = scmp.eq.s32.totalorder %s9, 1
    %p94 = por %p92, %p93
    %p95 = scmp.ne.s32.totalorder %s87, %s90
    %p96 = scmp.eq.s32.totalorder %s9, 0
    %p97 = por %p95, %p96
    %p98 = scmp.ne.s32.totalorder %s87, %s90
    %p99 = scmp.eq.s32.totalorder %s14, 1
    %p100 = por %p98, %p99
    %p101 = scmp.ne.s32.totalorder %s90, %s91
    %p102 = scmp.eq.s32.totalorder %s14, 0
    %p103 = por %p101, %p102
    %p104 = scmp.ne.s32.totalorder %s90, %s91
    %p105 = scmp.eq.s32.totalorder %s15, 1
    %p106 = por %p104, %p105
    %p108 = scmp.ne.s32.totalorder %s91, %s107
    %p109 = scmp.eq.s32.totalorder %s15, 0
    %p110 = por %p108, %p109
    %p111 = scmp.le.s32.totalorder 1, %s9
    %p112 = scmp.lt.s32.totalorder %s9, 3
    %p113 = pnand %p111, %p112
    %p114 = pneg %p113
    // Predicated region
    $region9: #{nn_forward.8} parent=5 // pred_check
      _
    $region10: #{nn_forward.8} parent=5 // pred_check_branch
      %116 = sbr.rel (%p113) target = $region12
    $region11: #{nn_forward.8} parent=5 // pred_region
      %s117 = ssub.s32 %s9, 1
      // Predicated region
      $region13: #{nn_forward.8} parent=11 // pred_check
        %p118 = pneg %p56
      $region14: #{nn_forward.8} parent=11 // pred_check_branch
        %120 = sbr.rel (%p118) target = $region16
      $region15: #{nn_forward.8} parent=11 // pred_region
        _
      $region16: #{nn_forward.8} parent=11 // pred_fallthru
        _
      // Predicated region
      $region17: #{nn_forward.8} parent=11 // pred_check
        %p121 = pneg %p77
      $region18: #{nn_forward.8} parent=11 // pred_check_branch
        %123 = sbr.rel (%p121) target = $region20
      $region19: #{nn_forward.8} parent=11 // pred_region
        _
      $region20: #{nn_forward.8} parent=11 // pred_fallthru
        _
    $region12: #{nn_forward.8} parent=5 // pred_fallthru
      _
    %p124 = scmp.lt.s32.totalorder %s9, 2
    // Predicated region
    $region21: #{nn_forward.8} parent=5 // pred_check
      %p125 = pneg %p124
    $region22: #{nn_forward.8} parent=5 // pred_check_branch
      %127 = sbr.rel (%p125) target = $region24
    $region23: #{nn_forward.8} parent=5 // pred_region
      // Predicated region
      $region25: #{nn_forward.8} parent=23 // pred_check
        %p128 = pneg %p29
      $region26: #{nn_forward.8} parent=23 // pred_check_branch
        %130 = sbr.rel (%p128) target = $region28
      $region27: #{nn_forward.8} parent=23 // pred_region
        %s131 = smul.u32 67, %s9
        %p132 = scmp.lt.s32.totalorder %s131, 133
        %s133 = scalar_select %p132, %s131, 133
        %s134 = smul.addr %s133, 4
        %s135 = scalar_lea.vmem %s0, %s134
        %s136 = smul.u32 67, %s9
      $region28: #{nn_forward.8} parent=23 // pred_fallthru
        _
    $region24: #{nn_forward.8} parent=5 // pred_fallthru
      _
    %p137 = scmp.le.s32.totalorder 1, %s9
    %p138 = scmp.lt.s32.totalorder %s9, 3
    %p139 = pnand %p137, %p138
    %p140 = pneg %p139
    // Predicated region
    $region29: #{nn_forward.8} parent=5 // pred_check
      _
    $region30: #{nn_forward.8} parent=5 // pred_check_branch
      %142 = sbr.rel (%p139) target = $region32
    $region31: #{nn_forward.8} parent=5 // pred_region
      %s143 = ssub.s32 %s9, 1
      %s144 = smul.u32 67, %s14
      %p145 = scmp.lt.s32.totalorder %s144, 133
      %s146 = scalar_select %p145, %s144, 133
      %s147 = smul.addr %s146, 4
      %s148 = scalar_lea.vmem %s0, %s147
      %p149 = pneg %p35
      %p150 = pneg %p32
      %p151 = pneg %p56
      %p152 = pneg %p53
      %p153 = pneg %p77
      %p154 = pneg %p74
      %p155 = pneg %p103
      %p156 = pneg %p100
      %s157 = smul.u32 67, %s14
      %p158 = scmp.lt.s32.totalorder %s157, 133
      %s159 = scalar_select %p158, %s157, 133
      %s160 = smul.addr %s159, 4
      %s161 = scalar_lea.vmem %s3, %s160
      %s162 = smul.u32 67, %s14
      %p163 = scmp.lt.s32.totalorder %s162, 133
      %s164 = scalar_select %p163, %s162, 133
      %s165 = smul.addr %s164, 4
      %s166 = scalar_lea.vmem %s0, %s165
      %s167 = smul.u32 67, %s14
      %s168 = smul.u32 67, %s14
      %p169 = scmp.lt.s32.totalorder %s168, 133
      %s170 = scalar_select %p169, %s168, 133
      %s171 = smul.addr %s170, 4
      %s172 = scalar_lea.vmem %s3, %s171
      %s173 = smul.u32 67, %s14
      %v175 = vld [vmem:[%s166] sm:$0xf]
      %v176 = vld [vmem:[%s166 + $0x4] sm:$0xf]
      %v177 = vld [vmem:[%s166 + $0x8] sm:$0xf]
      %v178 = vld [vmem:[%s166 + $0xc] sm:$0xf]
      %v179 = vld [vmem:[%s166 + $0x10] sm:$0xf]
      %v180 = vld [vmem:[%s166 + $0x14] sm:$0xf]
      %v181 = vld [vmem:[%s166 + $0x18] sm:$0xf]
      %v182 = vld [vmem:[%s166 + $0x1c] sm:$0xf]
      %v183 = vld [vmem:[%s166 + $0x20] sm:$0xf]
      %v184 = vld [vmem:[%s166 + $0x24] sm:$0xf]
      %v185 = vld [vmem:[%s166 + $0x28] sm:$0xf]
      %v186 = vld [vmem:[%s166 + $0x2c] sm:$0xf]
      %v187 = vld [vmem:[%s166 + $0x30] sm:$0xf]
      %v188 = vld [vmem:[%s166 + $0x34] sm:$0xf]
      %v189 = vld [vmem:[%s166 + $0x38] sm:$0xf]
      %v190 = vld [vmem:[%s166 + $0x3c] sm:$0xf]
      %v191 = vld [vmem:[%s166 + $0x40] sm:$0xf]
      %v192 = vld [vmem:[%s166 + $0x44] sm:$0xf]
      %v193 = vld [vmem:[%s166 + $0x48] sm:$0xf]
      %v194 = vld [vmem:[%s166 + $0x4c] sm:$0xf]
      %v195 = vld [vmem:[%s166 + $0x50] sm:$0xf]
      %v196 = vld [vmem:[%s166 + $0x54] sm:$0xf]
      %v197 = vld [vmem:[%s166 + $0x58] sm:$0xf]
      %v198 = vld [vmem:[%s166 + $0x5c] sm:$0xf]
      %v199 = vld [vmem:[%s166 + $0x60] sm:$0xf]
      %v200 = vld [vmem:[%s166 + $0x64] sm:$0xf]
      %v201 = vld [vmem:[%s166 + $0x68] sm:$0xf]
      %v202 = vld [vmem:[%s166 + $0x6c] sm:$0xf]
      %v203 = vld [vmem:[%s166 + $0x70] sm:$0xf]
      %v204 = vld [vmem:[%s166 + $0x74] sm:$0xf]
      %v205 = vld [vmem:[%s166 + $0x78] sm:$0xf]
      %v206 = vld [vmem:[%s166 + $0x7c] sm:$0xf]
      %v207 = vld [vmem:[%s166 + $0x80] sm:$0xf]
      %v208 = vld [vmem:[%s166 + $0x84] sm:$0xf]
      %v209 = vld [vmem:[%s166 + $0x88] sm:$0xf]
      %v210 = vld [vmem:[%s166 + $0x8c] sm:$0xf]
      %v211 = vld [vmem:[%s166 + $0x90] sm:$0xf]
      %v212 = vld [vmem:[%s166 + $0x94] sm:$0xf]
      %v213 = vld [vmem:[%s166 + $0x98] sm:$0xf]
      %v214 = vld [vmem:[%s166 + $0x9c] sm:$0xf]
      %v215 = vld [vmem:[%s166 + $0xa0] sm:$0xf]
      %v216 = vld [vmem:[%s166 + $0xa4] sm:$0xf]
      %v217 = vld [vmem:[%s166 + $0xa8] sm:$0xf]
      %v218 = vld [vmem:[%s166 + $0xac] sm:$0xf]
      %v219 = vld [vmem:[%s166 + $0xb0] sm:$0xf]
      %v220 = vld [vmem:[%s166 + $0xb4] sm:$0xf]
      %v221 = vld [vmem:[%s166 + $0xb8] sm:$0xf]
      %v222 = vld [vmem:[%s166 + $0xbc] sm:$0xf]
      %v223 = vld [vmem:[%s166 + $0xc0] sm:$0xf]
      %v224 = vld [vmem:[%s166 + $0xc4] sm:$0xf]
      %v225 = vld [vmem:[%s166 + $0xc8] sm:$0xf]
      %v226 = vld [vmem:[%s166 + $0xcc] sm:$0xf]
      %v227 = vld [vmem:[%s166 + $0xd0] sm:$0xf]
      %v228 = vld [vmem:[%s166 + $0xd4] sm:$0xf]
      %v229 = vld [vmem:[%s166 + $0xd8] sm:$0xf]
      %v230 = vld [vmem:[%s166 + $0xdc] sm:$0xf]
      %v231 = vld [vmem:[%s166 + $0xe0] sm:$0xf]
      %v232 = vld [vmem:[%s166 + $0xe4] sm:$0xf]
      %v233 = vld [vmem:[%s166 + $0xe8] sm:$0xf]
      %v234 = vld [vmem:[%s166 + $0xec] sm:$0xf]
      %v235 = vld [vmem:[%s166 + $0xf0] sm:$0xf]
      %v236 = vld [vmem:[%s166 + $0xf4] sm:$0xf]
      %v237 = vld [vmem:[%s166 + $0xf8] sm:$0xf]
      %v238 = vld [vmem:[%s166 + $0xfc] sm:$0xf]
      %v239 = vld [vmem:[%s166 + $0x100] sm:$0xf]
      %v240 = vld [vmem:[%s166 + $0x104] sm:$0xf]
      %v241 = vld [vmem:[%s166 + $0x108] sm:$0xf]
      %v242 = vld [vmem:[%s1] sm:$0xf]
      %v243 = vld [vmem:[%s1 + $0x4] sm:$0xf]
      %v244 = vld [vmem:[%s1 + $0x8] sm:$0xf]
      %v245 = vld [vmem:[%s1 + $0xc] sm:$0xf]
      %v246 = vld [vmem:[%s1 + $0x10] sm:$0xf]
      %v247 = vld [vmem:[%s1 + $0x14] sm:$0xf]
      %v248 = vld [vmem:[%s1 + $0x18] sm:$0xf]
      %v249 = vld [vmem:[%s1 + $0x1c] sm:$0xf]
      %v250 = vld [vmem:[%s1 + $0x20] sm:$0xf]
      %v251 = vld [vmem:[%s2] sm:$0x1]
      %v253 = vperm.slane %v251, 0
      %v322 = vunpack.c.l.b16 %v175
      %v323 = vunpack.c.l.b16 %v176
      %v324 = vunpack.c.l.b16 %v177
      %v325 = vunpack.c.l.b16 %v178
      %v326 = vunpack.c.l.b16 %v179
      %v327 = vunpack.c.l.b16 %v180
      %v328 = vunpack.c.l.b16 %v181
      %v329 = vunpack.c.l.b16 %v182
      %v330 = vunpack.c.l.b16 %v183
      %v331 = vunpack.c.l.b16 %v184
      %v332 = vunpack.c.l.b16 %v185
      %v333 = vunpack.c.l.b16 %v186
      %v334 = vunpack.c.l.b16 %v187
      %v335 = vunpack.c.l.b16 %v188
      %v336 = vunpack.c.l.b16 %v189
      %v337 = vunpack.c.l.b16 %v190
      %v338 = vunpack.c.l.b16 %v191
      %v339 = vunpack.c.l.b16 %v192
      %v340 = vunpack.c.l.b16 %v193
      %v341 = vunpack.c.l.b16 %v194
      %v342 = vunpack.c.l.b16 %v195
      %v343 = vunpack.c.l.b16 %v196
      %v344 = vunpack.c.l.b16 %v197
      %v345 = vunpack.c.l.b16 %v198
      %v346 = vunpack.c.l.b16 %v199
      %v347 = vunpack.c.l.b16 %v200
      %v348 = vunpack.c.l.b16 %v201
      %v349 = vunpack.c.l.b16 %v202
      %v350 = vunpack.c.l.b16 %v203
      %v351 = vunpack.c.l.b16 %v204
      %v352 = vunpack.c.l.b16 %v205
      %v353 = vunpack.c.l.b16 %v206
      %v354 = vunpack.c.l.b16 %v207
      %v355 = vunpack.c.l.b16 %v208
      %v356 = vunpack.c.l.b16 %v209
      %v357 = vunpack.c.l.b16 %v210
      %v358 = vunpack.c.l.b16 %v211
      %v359 = vunpack.c.l.b16 %v212
      %v360 = vunpack.c.l.b16 %v213
      %v361 = vunpack.c.l.b16 %v214
      %v362 = vunpack.c.l.b16 %v215
      %v363 = vunpack.c.l.b16 %v216
      %v364 = vunpack.c.l.b16 %v217
      %v365 = vunpack.c.l.b16 %v218
      %v366 = vunpack.c.l.b16 %v219
      %v367 = vunpack.c.l.b16 %v220
      %v368 = vunpack.c.l.b16 %v221
      %v369 = vunpack.c.l.b16 %v222
      %v370 = vunpack.c.l.b16 %v223
      %v371 = vunpack.c.l.b16 %v224
      %v372 = vunpack.c.l.b16 %v225
      %v373 = vunpack.c.l.b16 %v226
      %v374 = vunpack.c.l.b16 %v227
      %v375 = vunpack.c.l.b16 %v228
      %v376 = vunpack.c.l.b16 %v229
      %v377 = vunpack.c.l.b16 %v230
      %v378 = vunpack.c.l.b16 %v231
      %v379 = vunpack.c.l.b16 %v232
      %v380 = vunpack.c.l.b16 %v233
      %v381 = vunpack.c.l.b16 %v234
      %v382 = vunpack.c.l.b16 %v235
      %v383 = vunpack.c.l.b16 %v236
      %v384 = vunpack.c.l.b16 %v237
      %v385 = vunpack.c.l.b16 %v238
      %v386 = vunpack.c.l.b16 %v239
      %v387 = vunpack.c.l.b16 %v240
      %v388 = vunpack.c.l.b16 %v241
      %v389 = vpack.c.b16 %v323, %v322
      %v390 = vpack.c.b16 %v325, %v324
      %v391 = vpack.c.b16 %v327, %v326
      %v392 = vpack.c.b16 %v329, %v328
      %v393 = vpack.c.b16 %v331, %v330
      %v394 = vpack.c.b16 %v333, %v332
      %v395 = vpack.c.b16 %v335, %v334
      %v396 = vpack.c.b16 %v337, %v336
      %v397 = vpack.c.b16 %v339, %v338
      %v398 = vpack.c.b16 %v341, %v340
      %v399 = vpack.c.b16 %v343, %v342
      %v400 = vpack.c.b16 %v345, %v344
      %v401 = vpack.c.b16 %v347, %v346
      %v402 = vpack.c.b16 %v349, %v348
      %v403 = vpack.c.b16 %v351, %v350
      %v404 = vpack.c.b16 %v353, %v352
      %v405 = vpack.c.b16 %v355, %v354
      %v406 = vpack.c.b16 %v357, %v356
      %v407 = vpack.c.b16 %v359, %v358
      %v408 = vpack.c.b16 %v361, %v360
      %v409 = vpack.c.b16 %v363, %v362
      %v410 = vpack.c.b16 %v365, %v364
      %v411 = vpack.c.b16 %v367, %v366
      %v412 = vpack.c.b16 %v369, %v368
      %v413 = vpack.c.b16 %v371, %v370
      %v414 = vpack.c.b16 %v373, %v372
      %v415 = vpack.c.b16 %v375, %v374
      %v416 = vpack.c.b16 %v377, %v376
      %v417 = vpack.c.b16 %v379, %v378
      %v418 = vpack.c.b16 %v381, %v380
      %v419 = vpack.c.b16 %v383, %v382
      %v420 = vpack.c.b16 %v385, %v384
      %v421 = vpack.c.b16 %v387, %v386
      %v422 = vpack.c.b16 %v388, %v388
      %v432 = vunpack.c.l.b16 %v242
      %v433 = vunpack.c.l.b16 %v243
      %v434 = vunpack.c.l.b16 %v244
      %v435 = vunpack.c.l.b16 %v245
      %v436 = vunpack.c.l.b16 %v246
      %v437 = vunpack.c.l.b16 %v247
      %v438 = vunpack.c.l.b16 %v248
      %v439 = vunpack.c.l.b16 %v249
      %v440 = vunpack.c.l.b16 %v250
      %v441 = vpack.c.b16 %v433, %v432
      %v442 = vpack.c.b16 %v435, %v434
      %v443 = vpack.c.b16 %v437, %v436
      %v444 = vpack.c.b16 %v439, %v438
      %v445 = vpack.c.b16 %v440, %v440
      %vm450 = vcmask 588800
      %v452 = vsel %vm450, %v389, 0
      %v455 = vsel %vm450, %v390, 0
      %v458 = vsel %vm450, %v391, 0
      %v461 = vsel %vm450, %v392, 0
      %v464 = vsel %vm450, %v393, 0
      %v467 = vsel %vm450, %v394, 0
      %v470 = vsel %vm450, %v395, 0
      %v473 = vsel %vm450, %v396, 0
      %v476 = vsel %vm450, %v397, 0
      %v479 = vsel %vm450, %v398, 0
      %v482 = vsel %vm450, %v399, 0
      %v485 = vsel %vm450, %v400, 0
      %v488 = vsel %vm450, %v401, 0
      %v491 = vsel %vm450, %v402, 0
      %v494 = vsel %vm450, %v403, 0
      %v497 = vsel %vm450, %v404, 0
      %v500 = vsel %vm450, %v405, 0
      %v503 = vsel %vm450, %v406, 0
      %v506 = vsel %vm450, %v407, 0
      %v509 = vsel %vm450, %v408, 0
      %v512 = vsel %vm450, %v409, 0
      %v515 = vsel %vm450, %v410, 0
      %v518 = vsel %vm450, %v411, 0
      %v521 = vsel %vm450, %v412, 0
      %v524 = vsel %vm450, %v413, 0
      %v527 = vsel %vm450, %v414, 0
      %v530 = vsel %vm450, %v415, 0
      %v533 = vsel %vm450, %v416, 0
      %v536 = vsel %vm450, %v417, 0
      %v539 = vsel %vm450, %v418, 0
      %v542 = vsel %vm450, %v419, 0
      %v545 = vsel %vm450, %v420, 0
      %v548 = vsel %vm450, %v421, 0
      %v551 = vsel %vm450, %v422, 0
      %vm553 = vcmask 1043456
      %v555 = vsel %vm553, %v445, 0
      %557 = vmatpush.bf16.msra.mxu0 0
      %558 = vmatpush.bf16.msra.mxu0 0
      %559 = vmatpush.bf16.msra.mxu0 0
      %560 = vmatpush.bf16.msra.mxu0 %v555
      %561 = vmatpush.bf16.msra.mxu0 %v444
      %562 = vmatpush.bf16.msra.mxu0 %v443
      %563 = vmatpush.bf16.msra.mxu0 %v442
      %564 = vmatpush.bf16.msra.mxu0 %v441
      %565 = vmatmul.bf16.gmra.mxu0 %v452
      %v566 = vpop.f32.mrf.mxu0
      %v567 = vadd.f32 %v253, %v566
      %v568 = vpop.f32.mrf.mxu0
      %v569 = vadd.f32 %v253, %v568
      %570 = vmatmul.bf16.gmra.mxu0 %v455
      %v571 = vpop.f32.mrf.mxu0
      %v572 = vadd.f32 %v253, %v571
      %v573 = vpop.f32.mrf.mxu0
      %v574 = vadd.f32 %v253, %v573
      %575 = vmatmul.bf16.gmra.mxu0 %v458
      %v576 = vpop.f32.mrf.mxu0
      %v577 = vadd.f32 %v253, %v576
      %v578 = vpop.f32.mrf.mxu0
      %v579 = vadd.f32 %v253, %v578
      %580 = vmatmul.bf16.gmra.mxu0 %v461
      %v581 = vpop.f32.mrf.mxu0
      %v582 = vadd.f32 %v253, %v581
      %v583 = vpop.f32.mrf.mxu0
      %v584 = vadd.f32 %v253, %v583
      %585 = vmatmul.bf16.gmra.mxu0 %v464
      %v586 = vpop.f32.mrf.mxu0
      %v587 = vadd.f32 %v253, %v586
      %v588 = vpop.f32.mrf.mxu0
      %v589 = vadd.f32 %v253, %v588
      %590 = vmatmul.bf16.gmra.mxu0 %v467
      %v591 = vpop.f32.mrf.mxu0
      %v592 = vadd.f32 %v253, %v591
      %v593 = vpop.f32.mrf.mxu0
      %v594 = vadd.f32 %v253, %v593
      %595 = vmatmul.bf16.gmra.mxu0 %v470
      %v596 = vpop.f32.mrf.mxu0
      %v597 = vadd.f32 %v253, %v596
      %v598 = vpop.f32.mrf.mxu0
      %v599 = vadd.f32 %v253, %v598
      %600 = vmatmul.bf16.gmra.mxu0 %v473
      %v601 = vpop.f32.mrf.mxu0
      %v602 = vadd.f32 %v253, %v601
      %v603 = vpop.f32.mrf.mxu0
      %v604 = vadd.f32 %v253, %v603
      %605 = vmatmul.bf16.gmra.mxu0 %v476
      %v606 = vpop.f32.mrf.mxu0
      %v607 = vadd.f32 %v253, %v606
      %v608 = vpop.f32.mrf.mxu0
      %v609 = vadd.f32 %v253, %v608
      %610 = vmatmul.bf16.gmra.mxu0 %v479
      %v611 = vpop.f32.mrf.mxu0
      %v612 = vadd.f32 %v253, %v611
      %v613 = vpop.f32.mrf.mxu0
      %v614 = vadd.f32 %v253, %v613
      %615 = vmatmul.bf16.gmra.mxu0 %v482
      %v616 = vpop.f32.mrf.mxu0
      %v617 = vadd.f32 %v253, %v616
      %v618 = vpop.f32.mrf.mxu0
      %v619 = vadd.f32 %v253, %v618
      %620 = vmatmul.bf16.gmra.mxu0 %v485
      %v621 = vpop.f32.mrf.mxu0
      %v622 = vadd.f32 %v253, %v621
      %v623 = vpop.f32.mrf.mxu0
      %v624 = vadd.f32 %v253, %v623
      %625 = vmatmul.bf16.gmra.mxu0 %v488
      %v626 = vpop.f32.mrf.mxu0
      %v627 = vadd.f32 %v253, %v626
      %v628 = vpop.f32.mrf.mxu0
      %v629 = vadd.f32 %v253, %v628
      %630 = vmatmul.bf16.gmra.mxu0 %v491
      %v631 = vpop.f32.mrf.mxu0
      %v632 = vadd.f32 %v253, %v631
      %v633 = vpop.f32.mrf.mxu0
      %v634 = vadd.f32 %v253, %v633
      %635 = vmatmul.bf16.gmra.mxu0 %v494
      %v636 = vpop.f32.mrf.mxu0
      %v637 = vadd.f32 %v253, %v636
      %v638 = vpop.f32.mrf.mxu0
      %v639 = vadd.f32 %v253, %v638
      %640 = vmatmul.bf16.gmra.mxu0 %v497
      %v641 = vpop.f32.mrf.mxu0
      %v642 = vadd.f32 %v253, %v641
      %v643 = vpop.f32.mrf.mxu0
      %v644 = vadd.f32 %v253, %v643
      %645 = vmatmul.bf16.gmra.mxu0 %v500
      %v646 = vpop.f32.mrf.mxu0
      %v647 = vadd.f32 %v253, %v646
      %v648 = vpop.f32.mrf.mxu0
      %v649 = vadd.f32 %v253, %v648
      %650 = vmatmul.bf16.gmra.mxu0 %v503
      %v651 = vpop.f32.mrf.mxu0
      %v652 = vadd.f32 %v253, %v651
      %v653 = vpop.f32.mrf.mxu0
      %v654 = vadd.f32 %v253, %v653
      %655 = vmatmul.bf16.gmra.mxu0 %v506
      %v656 = vpop.f32.mrf.mxu0
      %v657 = vadd.f32 %v253, %v656
      %v658 = vpop.f32.mrf.mxu0
      %v659 = vadd.f32 %v253, %v658
      %660 = vmatmul.bf16.gmra.mxu0 %v509
      %v661 = vpop.f32.mrf.mxu0
      %v662 = vadd.f32 %v253, %v661
      %v663 = vpop.f32.mrf.mxu0
      %v664 = vadd.f32 %v253, %v663
      %665 = vmatmul.bf16.gmra.mxu0 %v512
      %v666 = vpop.f32.mrf.mxu0
      %v667 = vadd.f32 %v253, %v666
      %v668 = vpop.f32.mrf.mxu0
      %v669 = vadd.f32 %v253, %v668
      %670 = vmatmul.bf16.gmra.mxu0 %v515
      %v671 = vpop.f32.mrf.mxu0
      %v672 = vadd.f32 %v253, %v671
      %v673 = vpop.f32.mrf.mxu0
      %v674 = vadd.f32 %v253, %v673
      %675 = vmatmul.bf16.gmra.mxu0 %v518
      %v676 = vpop.f32.mrf.mxu0
      %v677 = vadd.f32 %v253, %v676
      %v678 = vpop.f32.mrf.mxu0
      %v679 = vadd.f32 %v253, %v678
      %680 = vmatmul.bf16.gmra.mxu0 %v521
      %v681 = vpop.f32.mrf.mxu0
      %v682 = vadd.f32 %v253, %v681
      %v683 = vpop.f32.mrf.mxu0
      %v684 = vadd.f32 %v253, %v683
      %685 = vmatmul.bf16.gmra.mxu0 %v524
      %v686 = vpop.f32.mrf.mxu0
      %v687 = vadd.f32 %v253, %v686
      %v688 = vpop.f32.mrf.mxu0
      %v689 = vadd.f32 %v253, %v688
      %690 = vmatmul.bf16.gmra.mxu0 %v527
      %v691 = vpop.f32.mrf.mxu0
      %v692 = vadd.f32 %v253, %v691
      %v693 = vpop.f32.mrf.mxu0
      %v694 = vadd.f32 %v253, %v693
      %695 = vmatmul.bf16.gmra.mxu0 %v530
      %v696 = vpop.f32.mrf.mxu0
      %v697 = vadd.f32 %v253, %v696
      %v698 = vpop.f32.mrf.mxu0
      %v699 = vadd.f32 %v253, %v698
      %700 = vmatmul.bf16.gmra.mxu0 %v533
      %v701 = vpop.f32.mrf.mxu0
      %v702 = vadd.f32 %v253, %v701
      %v703 = vpop.f32.mrf.mxu0
      %v704 = vadd.f32 %v253, %v703
      %705 = vmatmul.bf16.gmra.mxu0 %v536
      %v706 = vpop.f32.mrf.mxu0
      %v707 = vadd.f32 %v253, %v706
      %v708 = vpop.f32.mrf.mxu0
      %v709 = vadd.f32 %v253, %v708
      %710 = vmatmul.bf16.gmra.mxu0 %v539
      %v711 = vpop.f32.mrf.mxu0
      %v712 = vadd.f32 %v253, %v711
      %v713 = vpop.f32.mrf.mxu0
      %v714 = vadd.f32 %v253, %v713
      %715 = vmatmul.bf16.gmra.mxu0 %v542
      %v716 = vpop.f32.mrf.mxu0
      %v717 = vadd.f32 %v253, %v716
      %v718 = vpop.f32.mrf.mxu0
      %v719 = vadd.f32 %v253, %v718
      %720 = vmatmul.bf16.gmra.mxu0 %v545
      %v721 = vpop.f32.mrf.mxu0
      %v722 = vadd.f32 %v253, %v721
      %v723 = vpop.f32.mrf.mxu0
      %v724 = vadd.f32 %v253, %v723
      %725 = vmatmul.bf16.gmra.mxu0 %v548
      %v726 = vpop.f32.mrf.mxu0
      %v727 = vadd.f32 %v253, %v726
      %v728 = vpop.f32.mrf.mxu0
      %v729 = vadd.f32 %v253, %v728
      %730 = vmatmul.bf16.gmra.mxu0 %v551
      %v731 = vpop.f32.mrf.mxu0
      %v732 = vadd.f32 %v253, %v731
      %v733 = vpop.f32.mrf.mxu0
      %734 = vdwg.mxu0
      %v735 = vmax.f32 %v567, 0.0
      %v736 = vmax.f32 %v569, 0.0
      %v737 = vmax.f32 %v572, 0.0
      %v738 = vmax.f32 %v574, 0.0
      %v739 = vmax.f32 %v577, 0.0
      %v740 = vmax.f32 %v579, 0.0
      %v741 = vmax.f32 %v582, 0.0
      %v742 = vmax.f32 %v584, 0.0
      %v743 = vmax.f32 %v587, 0.0
      %v744 = vmax.f32 %v589, 0.0
      %v745 = vmax.f32 %v592, 0.0
      %v746 = vmax.f32 %v594, 0.0
      %v747 = vmax.f32 %v597, 0.0
      %v748 = vmax.f32 %v599, 0.0
      %v749 = vmax.f32 %v602, 0.0
      %v750 = vmax.f32 %v604, 0.0
      %v751 = vmax.f32 %v607, 0.0
      %v752 = vmax.f32 %v609, 0.0
      %v753 = vmax.f32 %v612, 0.0
      %v754 = vmax.f32 %v614, 0.0
      %v755 = vmax.f32 %v617, 0.0
      %v756 = vmax.f32 %v619, 0.0
      %v757 = vmax.f32 %v622, 0.0
      %v758 = vmax.f32 %v624, 0.0
      %v759 = vmax.f32 %v627, 0.0
      %v760 = vmax.f32 %v629, 0.0
      %v761 = vmax.f32 %v632, 0.0
      %v762 = vmax.f32 %v634, 0.0
      %v763 = vmax.f32 %v637, 0.0
      %v764 = vmax.f32 %v639, 0.0
      %v765 = vmax.f32 %v642, 0.0
      %v766 = vmax.f32 %v644, 0.0
      %v767 = vmax.f32 %v647, 0.0
      %v768 = vmax.f32 %v649, 0.0
      %v769 = vmax.f32 %v652, 0.0
      %v770 = vmax.f32 %v654, 0.0
      %v771 = vmax.f32 %v657, 0.0
      %v772 = vmax.f32 %v659, 0.0
      %v773 = vmax.f32 %v662, 0.0
      %v774 = vmax.f32 %v664, 0.0
      %v775 = vmax.f32 %v667, 0.0
      %v776 = vmax.f32 %v669, 0.0
      %v777 = vmax.f32 %v672, 0.0
      %v778 = vmax.f32 %v674, 0.0
      %v779 = vmax.f32 %v677, 0.0
      %v780 = vmax.f32 %v679, 0.0
      %v781 = vmax.f32 %v682, 0.0
      %v782 = vmax.f32 %v684, 0.0
      %v783 = vmax.f32 %v687, 0.0
      %v784 = vmax.f32 %v689, 0.0
      %v785 = vmax.f32 %v692, 0.0
      %v786 = vmax.f32 %v694, 0.0
      %v787 = vmax.f32 %v697, 0.0
      %v788 = vmax.f32 %v699, 0.0
      %v789 = vmax.f32 %v702, 0.0
      %v790 = vmax.f32 %v704, 0.0
      %v791 = vmax.f32 %v707, 0.0
      %v792 = vmax.f32 %v709, 0.0
      %v793 = vmax.f32 %v712, 0.0
      %v794 = vmax.f32 %v714, 0.0
      %v795 = vmax.f32 %v717, 0.0
      %v796 = vmax.f32 %v719, 0.0
      %v797 = vmax.f32 %v722, 0.0
      %v798 = vmax.f32 %v724, 0.0
      %v799 = vmax.f32 %v727, 0.0
      %v800 = vmax.f32 %v729, 0.0
      %v801 = vmax.f32 %v732, 0.0
      %v802 = vpack.c.bf16 %v735, %v735
      %v803 = vpack.c.bf16 %v736, %v736
      %v804 = vpack.c.bf16 %v737, %v737
      %v805 = vpack.c.bf16 %v738, %v738
      %v806 = vpack.c.bf16 %v739, %v739
      %v807 = vpack.c.bf16 %v740, %v740
      %v808 = vpack.c.bf16 %v741, %v741
      %v809 = vpack.c.bf16 %v742, %v742
      %v810 = vpack.c.bf16 %v743, %v743
      %v811 = vpack.c.bf16 %v744, %v744
      %v812 = vpack.c.bf16 %v745, %v745
      %v813 = vpack.c.bf16 %v746, %v746
      %v814 = vpack.c.bf16 %v747, %v747
      %v815 = vpack.c.bf16 %v748, %v748
      %v816 = vpack.c.bf16 %v749, %v749
      %v817 = vpack.c.bf16 %v750, %v750
      %v818 = vpack.c.bf16 %v751, %v751
      %v819 = vpack.c.bf16 %v752, %v752
      %v820 = vpack.c.bf16 %v753, %v753
      %v821 = vpack.c.bf16 %v754, %v754
      %v822 = vpack.c.bf16 %v755, %v755
      %v823 = vpack.c.bf16 %v756, %v756
      %v824 = vpack.c.bf16 %v757, %v757
      %v825 = vpack.c.bf16 %v758, %v758
      %v826 = vpack.c.bf16 %v759, %v759
      %v827 = vpack.c.bf16 %v760, %v760
      %v828 = vpack.c.bf16 %v761, %v761
      %v829 = vpack.c.bf16 %v762, %v762
      %v830 = vpack.c.bf16 %v763, %v763
      %v831 = vpack.c.bf16 %v764, %v764
      %v832 = vpack.c.bf16 %v765, %v765
      %v833 = vpack.c.bf16 %v766, %v766
      %v834 = vpack.c.bf16 %v767, %v767
      %v835 = vpack.c.bf16 %v768, %v768
      %v836 = vpack.c.bf16 %v769, %v769
      %v837 = vpack.c.bf16 %v770, %v770
      %v838 = vpack.c.bf16 %v771, %v771
      %v839 = vpack.c.bf16 %v772, %v772
      %v840 = vpack.c.bf16 %v773, %v773
      %v841 = vpack.c.bf16 %v774, %v774
      %v842 = vpack.c.bf16 %v775, %v775
      %v843 = vpack.c.bf16 %v776, %v776
      %v844 = vpack.c.bf16 %v777, %v777
      %v845 = vpack.c.bf16 %v778, %v778
      %v846 = vpack.c.bf16 %v779, %v779
      %v847 = vpack.c.bf16 %v780, %v780
      %v848 = vpack.c.bf16 %v781, %v781
      %v849 = vpack.c.bf16 %v782, %v782
      %v850 = vpack.c.bf16 %v783, %v783
      %v851 = vpack.c.bf16 %v784, %v784
      %v852 = vpack.c.bf16 %v785, %v785
      %v853 = vpack.c.bf16 %v786, %v786
      %v854 = vpack.c.bf16 %v787, %v787
      %v855 = vpack.c.bf16 %v788, %v788
      %v856 = vpack.c.bf16 %v789, %v789
      %v857 = vpack.c.bf16 %v790, %v790
      %v858 = vpack.c.bf16 %v791, %v791
      %v859 = vpack.c.bf16 %v792, %v792
      %v860 = vpack.c.bf16 %v793, %v793
      %v861 = vpack.c.bf16 %v794, %v794
      %v862 = vpack.c.bf16 %v795, %v795
      %v863 = vpack.c.bf16 %v796, %v796
      %v864 = vpack.c.bf16 %v797, %v797
      %v865 = vpack.c.bf16 %v798, %v798
      %v866 = vpack.c.bf16 %v799, %v799
      %v867 = vpack.c.bf16 %v800, %v800
      %v868 = vpack.c.bf16 %v801, %v801
      %vm869 = vcmask 125952
      %870 = vst.msk [vmem:[%s172] sm:$0xf] %vm869, %v802
      %871 = vst.msk [vmem:[%s172 + $0x4] sm:$0xf] %vm869, %v803
      %872 = vst.msk [vmem:[%s172 + $0x8] sm:$0xf] %vm869, %v804
      %873 = vst.msk [vmem:[%s172 + $0xc] sm:$0xf] %vm869, %v805
      %874 = vst.msk [vmem:[%s172 + $0x10] sm:$0xf] %vm869, %v806
      %875 = vst.msk [vmem:[%s172 + $0x14] sm:$0xf] %vm869, %v807
      %876 = vst.msk [vmem:[%s172 + $0x18] sm:$0xf] %vm869, %v808
      %877 = vst.msk [vmem:[%s172 + $0x1c] sm:$0xf] %vm869, %v809
      %878 = vst.msk [vmem:[%s172 + $0x20] sm:$0xf] %vm869, %v810
      %879 = vst.msk [vmem:[%s172 + $0x24] sm:$0xf] %vm869, %v811
      %880 = vst.msk [vmem:[%s172 + $0x28] sm:$0xf] %vm869, %v812
      %881 = vst.msk [vmem:[%s172 + $0x2c] sm:$0xf] %vm869, %v813
      %882 = vst.msk [vmem:[%s172 + $0x30] sm:$0xf] %vm869, %v814
      %883 = vst.msk [vmem:[%s172 + $0x34] sm:$0xf] %vm869, %v815
      %884 = vst.msk [vmem:[%s172 + $0x38] sm:$0xf] %vm869, %v816
      %885 = vst.msk [vmem:[%s172 + $0x3c] sm:$0xf] %vm869, %v817
      %886 = vst.msk [vmem:[%s172 + $0x40] sm:$0xf] %vm869, %v818
      %887 = vst.msk [vmem:[%s172 + $0x44] sm:$0xf] %vm869, %v819
      %888 = vst.msk [vmem:[%s172 + $0x48] sm:$0xf] %vm869, %v820
      %889 = vst.msk [vmem:[%s172 + $0x4c] sm:$0xf] %vm869, %v821
      %890 = vst.msk [vmem:[%s172 + $0x50] sm:$0xf] %vm869, %v822
      %891 = vst.msk [vmem:[%s172 + $0x54] sm:$0xf] %vm869, %v823
      %892 = vst.msk [vmem:[%s172 + $0x58] sm:$0xf] %vm869, %v824
      %893 = vst.msk [vmem:[%s172 + $0x5c] sm:$0xf] %vm869, %v825
      %894 = vst.msk [vmem:[%s172 + $0x60] sm:$0xf] %vm869, %v826
      %895 = vst.msk [vmem:[%s172 + $0x64] sm:$0xf] %vm869, %v827
      %896 = vst.msk [vmem:[%s172 + $0x68] sm:$0xf] %vm869, %v828
      %897 = vst.msk [vmem:[%s172 + $0x6c] sm:$0xf] %vm869, %v829
      %898 = vst.msk [vmem:[%s172 + $0x70] sm:$0xf] %vm869, %v830
      %899 = vst.msk [vmem:[%s172 + $0x74] sm:$0xf] %vm869, %v831
      %900 = vst.msk [vmem:[%s172 + $0x78] sm:$0xf] %vm869, %v832
      %901 = vst.msk [vmem:[%s172 + $0x7c] sm:$0xf] %vm869, %v833
      %902 = vst.msk [vmem:[%s172 + $0x80] sm:$0xf] %vm869, %v834
      %903 = vst.msk [vmem:[%s172 + $0x84] sm:$0xf] %vm869, %v835
      %904 = vst.msk [vmem:[%s172 + $0x88] sm:$0xf] %vm869, %v836
      %905 = vst.msk [vmem:[%s172 + $0x8c] sm:$0xf] %vm869, %v837
      %906 = vst.msk [vmem:[%s172 + $0x90] sm:$0xf] %vm869, %v838
      %907 = vst.msk [vmem:[%s172 + $0x94] sm:$0xf] %vm869, %v839
      %908 = vst.msk [vmem:[%s172 + $0x98] sm:$0xf] %vm869, %v840
      %909 = vst.msk [vmem:[%s172 + $0x9c] sm:$0xf] %vm869, %v841
      %910 = vst.msk [vmem:[%s172 + $0xa0] sm:$0xf] %vm869, %v842
      %911 = vst.msk [vmem:[%s172 + $0xa4] sm:$0xf] %vm869, %v843
      %912 = vst.msk [vmem:[%s172 + $0xa8] sm:$0xf] %vm869, %v844
      %913 = vst.msk [vmem:[%s172 + $0xac] sm:$0xf] %vm869, %v845
      %914 = vst.msk [vmem:[%s172 + $0xb0] sm:$0xf] %vm869, %v846
      %915 = vst.msk [vmem:[%s172 + $0xb4] sm:$0xf] %vm869, %v847
      %916 = vst.msk [vmem:[%s172 + $0xb8] sm:$0xf] %vm869, %v848
      %917 = vst.msk [vmem:[%s172 + $0xbc] sm:$0xf] %vm869, %v849
      %918 = vst.msk [vmem:[%s172 + $0xc0] sm:$0xf] %vm869, %v850
      %919 = vst.msk [vmem:[%s172 + $0xc4] sm:$0xf] %vm869, %v851
      %920 = vst.msk [vmem:[%s172 + $0xc8] sm:$0xf] %vm869, %v852
      %921 = vst.msk [vmem:[%s172 + $0xcc] sm:$0xf] %vm869, %v853
      %922 = vst.msk [vmem:[%s172 + $0xd0] sm:$0xf] %vm869, %v854
      %923 = vst.msk [vmem:[%s172 + $0xd4] sm:$0xf] %vm869, %v855
      %924 = vst.msk [vmem:[%s172 + $0xd8] sm:$0xf] %vm869, %v856
      %925 = vst.msk [vmem:[%s172 + $0xdc] sm:$0xf] %vm869, %v857
      %926 = vst.msk [vmem:[%s172 + $0xe0] sm:$0xf] %vm869, %v858
      %927 = vst.msk [vmem:[%s172 + $0xe4] sm:$0xf] %vm869, %v859
      %928 = vst.msk [vmem:[%s172 + $0xe8] sm:$0xf] %vm869, %v860
      %929 = vst.msk [vmem:[%s172 + $0xec] sm:$0xf] %vm869, %v861
      %930 = vst.msk [vmem:[%s172 + $0xf0] sm:$0xf] %vm869, %v862
      %931 = vst.msk [vmem:[%s172 + $0xf4] sm:$0xf] %vm869, %v863
      %932 = vst.msk [vmem:[%s172 + $0xf8] sm:$0xf] %vm869, %v864
      %933 = vst.msk [vmem:[%s172 + $0xfc] sm:$0xf] %vm869, %v865
      %934 = vst.msk [vmem:[%s172 + $0x100] sm:$0xf] %vm869, %v866
      %935 = vst.msk [vmem:[%s172 + $0x104] sm:$0xf] %vm869, %v867
      %936 = vst.msk [vmem:[%s172 + $0x108] sm:$0xf] %vm869, %v868
      %s937 = smul.u32 67, %s14
      %p938 = scmp.lt.s32.totalorder %s937, 133
      %s939 = scalar_select %p938, %s937, 133
      %s940 = smul.addr %s939, 4
      %s941 = scalar_lea.vmem %s3, %s940
      // Predicated region
      $region33: #{nn_forward.8} parent=31 // pred_check
        %p942 = pneg %p100
      $region34: #{nn_forward.8} parent=31 // pred_check_branch
        %944 = sbr.rel (%p942) target = $region36
      $region35: #{nn_forward.8} parent=31 // pred_region
        %s945 = smul.u32 67, %s14
      $region36: #{nn_forward.8} parent=31 // pred_fallthru
        _
    $region32: #{nn_forward.8} parent=5 // pred_fallthru
      _
    %p946 = scmp.le.s32.totalorder 2, %s9
    // Predicated region
    $region37: #{nn_forward.8} parent=5 // pred_check
      %p947 = pneg %p946
    $region38: #{nn_forward.8} parent=5 // pred_check_branch
      %949 = sbr.rel (%p947) target = $region40
    $region39: #{nn_forward.8} parent=5 // pred_region
      %s950 = ssub.s32 %s9, 2
      // Predicated region
      $region41: #{nn_forward.8} parent=39 // pred_check
        %p951 = pneg %p106
      $region42: #{nn_forward.8} parent=39 // pred_check_branch
        %953 = sbr.rel (%p951) target = $region44
      $region43: #{nn_forward.8} parent=39 // pred_region
        %s954 = smul.u32 67, %s15
        %p955 = scmp.lt.s32.totalorder %s954, 133
        %s956 = scalar_select %p955, %s954, 133
        %s957 = smul.addr %s956, 4
        %s958 = scalar_lea.vmem %s3, %s957
      $region44: #{nn_forward.8} parent=39 // pred_fallthru
        _
    $region40: #{nn_forward.8} parent=5 // pred_fallthru
      _
  $region6: #{nn_forward.8} parent=0 // loop_footer
    %s13 = sadd.s32 1, %s9
  $region7: #{nn_forward.8} parent=0 // loop_footer_branch
    %8 = sbr.rel target = $region3
  $region8: #{nn_forward.8} parent=0 // loop_exit
    _

// kernel: nn_forward.9
$region0: #{nn_forward.9}
  #allocation0 [shape = 'u32[]', space=smem, size = 0x4, offset = 0x4, fixed_abs, tag = 'smem constant byte address 0x4 - core index']
  #allocation1 [shape = 'u32[72,128]{1,0:T(1,128)}', space=vmem, size = 0x9000, scoped, tag = 'internal scratch']
  %s0 = inlined_call_operand.vmem [shape: bf16[242,144], index: 0, kind: input, shape index: {}]
  %s1 = inlined_call_operand.vmem [shape: bf16[144,32], index: 1, kind: input, shape index: {}]
  %s2 = inlined_call_operand.vmem [shape: f32[1,32], index: 2, kind: input, shape index: {}]
  %s3 = inlined_call_operand.vmem [shape: bf16[242,32], index: 3, kind: output, shape index: {}]
  %s4 = sld [smem:[#allocation0]]
  $region22: #{nn_forward.9} parent=0
    _
  %s6 = ssub.s32 1, %s4
  %s7 = scalar_select 0, %s6, %s4
  // Predicated region
  $region2: #{nn_forward.9} parent=0 // pred_check
    _
  $region3: #{nn_forward.9} parent=0 // pred_check_branch
    %9 = sbr.rel (0) target = $region5
  $region4: #{nn_forward.9} parent=0 // pred_region
    _
  $region5: #{nn_forward.9} parent=0 // pred_fallthru
    _
  // Predicated region
  $region6: #{nn_forward.9} parent=0 // pred_check
    _
  $region7: #{nn_forward.9} parent=0 // pred_check_branch
    %11 = sbr.rel (0) target = $region9
  $region8: #{nn_forward.9} parent=0 // pred_region
    _
  $region9: #{nn_forward.9} parent=0 // pred_fallthru
    _
  // Predicated region
  $region10: #{nn_forward.9} parent=0 // pred_check
    _
  $region11: #{nn_forward.9} parent=0 // pred_check_branch
    %13 = sbr.rel (0) target = $region13
  $region12: #{nn_forward.9} parent=0 // pred_region
    _
  $region13: #{nn_forward.9} parent=0 // pred_fallthru
    _
  %v15 = vld [vmem:[%s0] sm:$0xff]
  %v16 = vld [vmem:[%s0 + $0x8] sm:$0xff]
  %v17 = vld [vmem:[%s0 + $0x10] sm:$0xff]
  %v18 = vld [vmem:[%s0 + $0x18] sm:$0xff]
  %v19 = vld [vmem:[%s0 + $0x20] sm:$0xff]
  %v20 = vld [vmem:[%s0 + $0x28] sm:$0xff]
  %v21 = vld [vmem:[%s0 + $0x30] sm:$0xff]
  %v22 = vld [vmem:[%s0 + $0x38] sm:$0xff]
  %v23 = vld [vmem:[%s0 + $0x40] sm:$0xff]
  %v24 = vld [vmem:[%s0 + $0x48] sm:$0xff]
  %v25 = vld [vmem:[%s0 + $0x50] sm:$0xff]
  %v26 = vld [vmem:[%s0 + $0x58] sm:$0xff]
  %v27 = vld [vmem:[%s0 + $0x60] sm:$0xff]
  %v28 = vld [vmem:[%s0 + $0x68] sm:$0xff]
  %v29 = vld [vmem:[%s0 + $0x70] sm:$0xff]
  %v30 = vld [vmem:[%s0 + $0x78] sm:$0xff]
  %v31 = vld [vmem:[%s0 + $0x80] sm:$0xff]
  %v32 = vld [vmem:[%s0 + $0x88] sm:$0xff]
  %v33 = vld [vmem:[%s0 + $0x90] sm:$0xff]
  %v34 = vld [vmem:[%s0 + $0x98] sm:$0xff]
  %v35 = vld [vmem:[%s0 + $0xa0] sm:$0xff]
  %v36 = vld [vmem:[%s0 + $0xa8] sm:$0xff]
  %v37 = vld [vmem:[%s0 + $0xb0] sm:$0xff]
  %v38 = vld [vmem:[%s0 + $0xb8] sm:$0xff]
  %v39 = vld [vmem:[%s0 + $0xc0] sm:$0xff]
  %v40 = vld [vmem:[%s0 + $0xc8] sm:$0xff]
  %v41 = vld [vmem:[%s0 + $0xd0] sm:$0xff]
  %v42 = vld [vmem:[%s0 + $0xd8] sm:$0xff]
  %v43 = vld [vmem:[%s0 + $0xe0] sm:$0xff]
  %v44 = vld [vmem:[%s0 + $0xe8] sm:$0xff]
  %v45 = vld [vmem:[%s0 + $0xf0] sm:$0x11]
  %v46 = vld [vmem:[%s1] sm:$0xf]
  %v47 = vld [vmem:[%s1 + $0x4] sm:$0xf]
  %v48 = vld [vmem:[%s1 + $0x8] sm:$0xf]
  %v49 = vld [vmem:[%s1 + $0xc] sm:$0xf]
  %v50 = vld [vmem:[%s1 + $0x10] sm:$0xf]
  %v51 = vld [vmem:[%s1 + $0x14] sm:$0xf]
  %v52 = vld [vmem:[%s1 + $0x18] sm:$0xf]
  %v53 = vld [vmem:[%s1 + $0x1c] sm:$0xf]
  %v54 = vld [vmem:[%s1 + $0x20] sm:$0xf]
  %v55 = vld [vmem:[%s1 + $0x24] sm:$0xf]
  %v56 = vld [vmem:[%s1 + $0x28] sm:$0xf]
  %v57 = vld [vmem:[%s1 + $0x2c] sm:$0xf]
  %v58 = vld [vmem:[%s1 + $0x30] sm:$0xf]
  %v59 = vld [vmem:[%s1 + $0x34] sm:$0xf]
  %v60 = vld [vmem:[%s1 + $0x38] sm:$0xf]
  %v61 = vld [vmem:[%s1 + $0x3c] sm:$0xf]
  %v62 = vld [vmem:[%s1 + $0x40] sm:$0xf]
  %v63 = vld [vmem:[%s1 + $0x44] sm:$0xf]
  %v64 = vld [vmem:[%s2] sm:$0x1]
  %v66 = vperm.slane %v64, 0
  %v99 = vunpack.c.l.b16 %v15
  %v100 = vunpack.c.h.b16 %v15
  %v101 = vunpack.c.l.b16 %v16
  %v102 = vunpack.c.h.b16 %v16
  %v103 = vunpack.c.l.b16 %v17
  %v104 = vunpack.c.h.b16 %v17
  %v105 = vunpack.c.l.b16 %v18
  %v106 = vunpack.c.h.b16 %v18
  %v107 = vunpack.c.l.b16 %v19
  %v108 = vunpack.c.h.b16 %v19
  %v109 = vunpack.c.l.b16 %v20
  %v110 = vunpack.c.h.b16 %v20
  %v111 = vunpack.c.l.b16 %v21
  %v112 = vunpack.c.h.b16 %v21
  %v113 = vunpack.c.l.b16 %v22
  %v114 = vunpack.c.h.b16 %v22
  %v115 = vunpack.c.l.b16 %v23
  %v116 = vunpack.c.h.b16 %v23
  %v117 = vunpack.c.l.b16 %v24
  %v118 = vunpack.c.h.b16 %v24
  %v119 = vunpack.c.l.b16 %v25
  %v120 = vunpack.c.h.b16 %v25
  %v121 = vunpack.c.l.b16 %v26
  %v122 = vunpack.c.h.b16 %v26
  %v123 = vunpack.c.l.b16 %v27
  %v124 = vunpack.c.h.b16 %v27
  %v125 = vunpack.c.l.b16 %v28
  %v126 = vunpack.c.h.b16 %v28
  %v127 = vunpack.c.l.b16 %v29
  %v128 = vunpack.c.h.b16 %v29
  %v129 = vunpack.c.l.b16 %v30
  %v130 = vunpack.c.h.b16 %v30
  %v131 = vunpack.c.l.b16 %v31
  %v132 = vunpack.c.h.b16 %v31
  %v133 = vunpack.c.l.b16 %v32
  %v134 = vunpack.c.h.b16 %v32
  %v135 = vunpack.c.l.b16 %v33
  %v136 = vunpack.c.h.b16 %v33
  %v137 = vunpack.c.l.b16 %v34
  %v138 = vunpack.c.h.b16 %v34
  %v139 = vunpack.c.l.b16 %v35
  %v140 = vunpack.c.h.b16 %v35
  %v141 = vunpack.c.l.b16 %v36
  %v142 = vunpack.c.h.b16 %v36
  %v143 = vunpack.c.l.b16 %v37
  %v144 = vunpack.c.h.b16 %v37
  %v145 = vunpack.c.l.b16 %v38
  %v146 = vunpack.c.h.b16 %v38
  %v147 = vunpack.c.l.b16 %v39
  %v148 = vunpack.c.h.b16 %v39
  %v149 = vunpack.c.l.b16 %v40
  %v150 = vunpack.c.h.b16 %v40
  %v151 = vunpack.c.l.b16 %v41
  %v152 = vunpack.c.h.b16 %v41
  %v153 = vunpack.c.l.b16 %v42
  %v154 = vunpack.c.h.b16 %v42
  %v155 = vunpack.c.l.b16 %v43
  %v156 = vunpack.c.h.b16 %v43
  %v157 = vunpack.c.l.b16 %v44
  %v158 = vunpack.c.h.b16 %v44
  %v159 = vunpack.c.l.b16 %v45
  %v160 = vunpack.c.h.b16 %v45
  %v161 = vpack.c.b16 %v101, %v99
  %v162 = vpack.c.b16 %v102, %v100
  %v163 = vpack.c.b16 %v105, %v103
  %v164 = vpack.c.b16 %v106, %v104
  %v165 = vpack.c.b16 %v109, %v107
  %v166 = vpack.c.b16 %v110, %v108
  %v167 = vpack.c.b16 %v113, %v111
  %v168 = vpack.c.b16 %v114, %v112
  %v169 = vpack.c.b16 %v117, %v115
  %v170 = vpack.c.b16 %v118, %v116
  %v171 = vpack.c.b16 %v121, %v119
  %v172 = vpack.c.b16 %v122, %v120
  %v173 = vpack.c.b16 %v125, %v123
  %v174 = vpack.c.b16 %v126, %v124
  %v175 = vpack.c.b16 %v129, %v127
  %v176 = vpack.c.b16 %v130, %v128
  %v177 = vpack.c.b16 %v133, %v131
  %v178 = vpack.c.b16 %v134, %v132
  %v179 = vpack.c.b16 %v137, %v135
  %v180 = vpack.c.b16 %v138, %v136
  %v181 = vpack.c.b16 %v141, %v139
  %v182 = vpack.c.b16 %v142, %v140
  %v183 = vpack.c.b16 %v145, %v143
  %v184 = vpack.c.b16 %v146, %v144
  %v185 = vpack.c.b16 %v149, %v147
  %v186 = vpack.c.b16 %v150, %v148
  %v187 = vpack.c.b16 %v153, %v151
  %v188 = vpack.c.b16 %v154, %v152
  %v189 = vpack.c.b16 %v157, %v155
  %v190 = vpack.c.b16 %v158, %v156
  %v191 = vpack.c.b16 %v159, %v159
  %v192 = vpack.c.b16 %v160, %v160
  %v227 = vunpack.c.l.b16 %v46
  %v228 = vunpack.c.l.b16 %v47
  %v229 = vunpack.c.l.b16 %v48
  %v230 = vunpack.c.l.b16 %v49
  %v231 = vunpack.c.l.b16 %v50
  %v232 = vunpack.c.l.b16 %v51
  %v233 = vunpack.c.l.b16 %v52
  %v234 = vunpack.c.l.b16 %v53
  %v235 = vunpack.c.l.b16 %v54
  %v236 = vunpack.c.l.b16 %v55
  %v237 = vunpack.c.l.b16 %v56
  %v238 = vunpack.c.l.b16 %v57
  %v239 = vunpack.c.l.b16 %v58
  %v240 = vunpack.c.l.b16 %v59
  %v241 = vunpack.c.l.b16 %v60
  %v242 = vunpack.c.l.b16 %v61
  %v243 = vunpack.c.l.b16 %v62
  %v244 = vunpack.c.l.b16 %v63
  %v245 = vpack.c.b16 %v228, %v227
  %v246 = vpack.c.b16 %v230, %v229
  %v247 = vpack.c.b16 %v232, %v231
  %v248 = vpack.c.b16 %v234, %v233
  %v249 = vpack.c.b16 %v236, %v235
  %v250 = vpack.c.b16 %v238, %v237
  %v251 = vpack.c.b16 %v240, %v239
  %v252 = vpack.c.b16 %v242, %v241
  %v253 = vpack.c.b16 %v244, %v243
  %vm263 = vcmask 130048
  %v265 = vsel %vm263, %v162, 0
  %v268 = vsel %vm263, %v164, 0
  %v271 = vsel %vm263, %v166, 0
  %v274 = vsel %vm263, %v168, 0
  %v277 = vsel %vm263, %v170, 0
  %v280 = vsel %vm263, %v172, 0
  %v283 = vsel %vm263, %v174, 0
  %v286 = vsel %vm263, %v176, 0
  %v289 = vsel %vm263, %v178, 0
  %v292 = vsel %vm263, %v180, 0
  %v295 = vsel %vm263, %v182, 0
  %v298 = vsel %vm263, %v184, 0
  %v301 = vsel %vm263, %v186, 0
  %v304 = vsel %vm263, %v188, 0
  %v307 = vsel %vm263, %v190, 0
  %v310 = vsel %vm263, %v192, 0
  %312 = vmatpush.bf16.msra.mxu0 %v252
  %313 = vmatpush.bf16.msra.mxu0 %v251
  %314 = vmatpush.bf16.msra.mxu0 %v250
  %315 = vmatpush.bf16.msra.mxu0 %v249
  %316 = vmatpush.bf16.msra.mxu0 %v248
  %317 = vmatpush.bf16.msra.mxu0 %v247
  %318 = vmatpush.bf16.msra.mxu0 %v246
  %319 = vmatpush.bf16.msra.mxu0 %v245
  %320 = vmatmul.bf16.gmra.mxu0 %v161
  %v321 = vpop.f32.mrf.mxu0
  %v322 = vadd.f32 %v66, %v321
  %v323 = vpop.f32.mrf.mxu0
  %v324 = vadd.f32 %v66, %v323
  %325 = vmatmul.bf16.gmra.mxu0 %v163
  %v326 = vpop.f32.mrf.mxu0
  %v327 = vadd.f32 %v66, %v326
  %v328 = vpop.f32.mrf.mxu0
  %v329 = vadd.f32 %v66, %v328
  %330 = vmatmul.bf16.gmra.mxu0 %v165
  %v331 = vpop.f32.mrf.mxu0
  %v332 = vadd.f32 %v66, %v331
  %v333 = vpop.f32.mrf.mxu0
  %v334 = vadd.f32 %v66, %v333
  %335 = vmatmul.bf16.gmra.mxu0 %v167
  %v336 = vpop.f32.mrf.mxu0
  %v337 = vadd.f32 %v66, %v336
  %v338 = vpop.f32.mrf.mxu0
  %v339 = vadd.f32 %v66, %v338
  %340 = vmatmul.bf16.gmra.mxu0 %v169
  %v341 = vpop.f32.mrf.mxu0
  %v342 = vadd.f32 %v66, %v341
  %v343 = vpop.f32.mrf.mxu0
  %v344 = vadd.f32 %v66, %v343
  %345 = vmatmul.bf16.gmra.mxu0 %v171
  %v346 = vpop.f32.mrf.mxu0
  %v347 = vadd.f32 %v66, %v346
  %v348 = vpop.f32.mrf.mxu0
  %v349 = vadd.f32 %v66, %v348
  %350 = vmatmul.bf16.gmra.mxu0 %v173
  %v351 = vpop.f32.mrf.mxu0
  %v352 = vadd.f32 %v66, %v351
  %v353 = vpop.f32.mrf.mxu0
  %v354 = vadd.f32 %v66, %v353
  %355 = vmatmul.bf16.gmra.mxu0 %v175
  %v356 = vpop.f32.mrf.mxu0
  %v357 = vadd.f32 %v66, %v356
  %v358 = vpop.f32.mrf.mxu0
  %v359 = vadd.f32 %v66, %v358
  %360 = vmatmul.bf16.gmra.mxu0 %v177
  %v361 = vpop.f32.mrf.mxu0
  %v362 = vadd.f32 %v66, %v361
  %v363 = vpop.f32.mrf.mxu0
  %v364 = vadd.f32 %v66, %v363
  %365 = vmatmul.bf16.gmra.mxu0 %v179
  %v366 = vpop.f32.mrf.mxu0
  %v367 = vadd.f32 %v66, %v366
  %v368 = vpop.f32.mrf.mxu0
  %v369 = vadd.f32 %v66, %v368
  %370 = vmatmul.bf16.gmra.mxu0 %v181
  %v371 = vpop.f32.mrf.mxu0
  %v372 = vadd.f32 %v66, %v371
  %v373 = vpop.f32.mrf.mxu0
  %v374 = vadd.f32 %v66, %v373
  %375 = vmatmul.bf16.gmra.mxu0 %v183
  %v376 = vpop.f32.mrf.mxu0
  %v377 = vadd.f32 %v66, %v376
  %v378 = vpop.f32.mrf.mxu0
  %v379 = vadd.f32 %v66, %v378
  %380 = vmatmul.bf16.gmra.mxu0 %v185
  %v381 = vpop.f32.mrf.mxu0
  %v382 = vadd.f32 %v66, %v381
  %v383 = vpop.f32.mrf.mxu0
  %v384 = vadd.f32 %v66, %v383
  %385 = vmatmul.bf16.gmra.mxu0 %v187
  %v386 = vpop.f32.mrf.mxu0
  %v387 = vadd.f32 %v66, %v386
  %v388 = vpop.f32.mrf.mxu0
  %v389 = vadd.f32 %v66, %v388
  %390 = vmatmul.bf16.gmra.mxu0 %v189
  %v391 = vpop.f32.mrf.mxu0
  %v392 = vadd.f32 %v66, %v391
  %v393 = vpop.f32.mrf.mxu0
  %v394 = vadd.f32 %v66, %v393
  %395 = vmatmul.bf16.gmra.mxu0 %v191
  %v396 = vpop.f32.mrf.mxu0
  %v397 = vadd.f32 %v66, %v396
  %v398 = vpop.f32.mrf.mxu0
  %399 = vdwg.mxu0
  %400 = vmatpush.bf16.msra.mxu0 0
  %401 = vmatpush.bf16.msra.mxu0 0
  %402 = vmatpush.bf16.msra.mxu0 0
  %403 = vmatpush.bf16.msra.mxu0 0
  %404 = vmatpush.bf16.msra.mxu0 0
  %405 = vmatpush.bf16.msra.mxu0 0
  %406 = vmatpush.bf16.msra.mxu0 0
  %407 = vmatpush.bf16.msra.mxu0 %v253
  %408 = vmatmul.bf16.gmra.mxu0 %v265
  %v409 = vpop.f32.mrf.mxu0
  %v410 = vadd.f32 %v322, %v409
  %v411 = vpop.f32.mrf.mxu0
  %v412 = vadd.f32 %v324, %v411
  %413 = vmatmul.bf16.gmra.mxu0 %v268
  %v414 = vpop.f32.mrf.mxu0
  %v415 = vadd.f32 %v327, %v414
  %v416 = vpop.f32.mrf.mxu0
  %v417 = vadd.f32 %v329, %v416
  %418 = vmatmul.bf16.gmra.mxu0 %v271
  %v419 = vpop.f32.mrf.mxu0
  %v420 = vadd.f32 %v332, %v419
  %v421 = vpop.f32.mrf.mxu0
  %v422 = vadd.f32 %v334, %v421
  %423 = vmatmul.bf16.gmra.mxu0 %v274
  %v424 = vpop.f32.mrf.mxu0
  %v425 = vadd.f32 %v337, %v424
  %v426 = vpop.f32.mrf.mxu0
  %v427 = vadd.f32 %v339, %v426
  %428 = vmatmul.bf16.gmra.mxu0 %v277
  %v429 = vpop.f32.mrf.mxu0
  %v430 = vadd.f32 %v342, %v429
  %v431 = vpop.f32.mrf.mxu0
  %v432 = vadd.f32 %v344, %v431
  %433 = vmatmul.bf16.gmra.mxu0 %v280
  %v434 = vpop.f32.mrf.mxu0
  %v435 = vadd.f32 %v347, %v434
  %v436 = vpop.f32.mrf.mxu0
  %v437 = vadd.f32 %v349, %v436
  %438 = vmatmul.bf16.gmra.mxu0 %v283
  %v439 = vpop.f32.mrf.mxu0
  %v440 = vadd.f32 %v352, %v439
  %v441 = vpop.f32.mrf.mxu0
  %v442 = vadd.f32 %v354, %v441
  %443 = vmatmul.bf16.gmra.mxu0 %v286
  %v444 = vpop.f32.mrf.mxu0
  %v445 = vadd.f32 %v357, %v444
  %v446 = vpop.f32.mrf.mxu0
  %v447 = vadd.f32 %v359, %v446
  %448 = vmatmul.bf16.gmra.mxu0 %v289
  %v449 = vpop.f32.mrf.mxu0
  %v450 = vadd.f32 %v362, %v449
  %v451 = vpop.f32.mrf.mxu0
  %v452 = vadd.f32 %v364, %v451
  %453 = vmatmul.bf16.gmra.mxu0 %v292
  %v454 = vpop.f32.mrf.mxu0
  %v455 = vadd.f32 %v367, %v454
  %v456 = vpop.f32.mrf.mxu0
  %v457 = vadd.f32 %v369, %v456
  %458 = vmatmul.bf16.gmra.mxu0 %v295
  %v459 = vpop.f32.mrf.mxu0
  %v460 = vadd.f32 %v372, %v459
  %v461 = vpop.f32.mrf.mxu0
  %v462 = vadd.f32 %v374, %v461
  %463 = vmatmul.bf16.gmra.mxu0 %v298
  %v464 = vpop.f32.mrf.mxu0
  %v465 = vadd.f32 %v377, %v464
  %v466 = vpop.f32.mrf.mxu0
  %v467 = vadd.f32 %v379, %v466
  %468 = vmatmul.bf16.gmra.mxu0 %v301
  %v469 = vpop.f32.mrf.mxu0
  %v470 = vadd.f32 %v382, %v469
  %v471 = vpop.f32.mrf.mxu0
  %v472 = vadd.f32 %v384, %v471
  %473 = vmatmul.bf16.gmra.mxu0 %v304
  %v474 = vpop.f32.mrf.mxu0
  %v475 = vadd.f32 %v387, %v474
  %v476 = vpop.f32.mrf.mxu0
  %v477 = vadd.f32 %v389, %v476
  %478 = vmatmul.bf16.gmra.mxu0 %v307
  %v479 = vpop.f32.mrf.mxu0
  %v480 = vadd.f32 %v392, %v479
  %v481 = vpop.f32.mrf.mxu0
  %v482 = vadd.f32 %v394, %v481
  %483 = vmatmul.bf16.gmra.mxu0 %v310
  %v484 = vpop.f32.mrf.mxu0
  %v485 = vadd.f32 %v397, %v484
  %v486 = vpop.f32.mrf.mxu0
  %487 = vdwg.mxu0
  %v488 = vmax.f32 %v410, 0.0
  %v489 = vmax.f32 %v412, 0.0
  %v490 = vmax.f32 %v415, 0.0
  %v491 = vmax.f32 %v417, 0.0
  %v492 = vmax.f32 %v420, 0.0
  %v493 = vmax.f32 %v422, 0.0
  %v494 = vmax.f32 %v425, 0.0
  %v495 = vmax.f32 %v427, 0.0
  %v496 = vmax.f32 %v430, 0.0
  %v497 = vmax.f32 %v432, 0.0
  %v498 = vmax.f32 %v435, 0.0
  %v499 = vmax.f32 %v437, 0.0
  %v500 = vmax.f32 %v440, 0.0
  %v501 = vmax.f32 %v442, 0.0
  %v502 = vmax.f32 %v445, 0.0
  %v503 = vmax.f32 %v447, 0.0
  %v504 = vmax.f32 %v450, 0.0
  %v505 = vmax.f32 %v452, 0.0
  %v506 = vmax.f32 %v455, 0.0
  %v507 = vmax.f32 %v457, 0.0
  %v508 = vmax.f32 %v460, 0.0
  %v509 = vmax.f32 %v462, 0.0
  %v510 = vmax.f32 %v465, 0.0
  %v511 = vmax.f32 %v467, 0.0
  %v512 = vmax.f32 %v470, 0.0
  %v513 = vmax.f32 %v472, 0.0
  %v514 = vmax.f32 %v475, 0.0
  %v515 = vmax.f32 %v477, 0.0
  %v516 = vmax.f32 %v480, 0.0
  %v517 = vmax.f32 %v482, 0.0
  %v518 = vmax.f32 %v485, 0.0
  %v519 = vpack.c.bf16 %v488, %v488
  %v520 = vpack.c.bf16 %v489, %v489
  %v521 = vpack.c.bf16 %v490, %v490
  %v522 = vpack.c.bf16 %v491, %v491
  %v523 = vpack.c.bf16 %v492, %v492
  %v524 = vpack.c.bf16 %v493, %v493
  %v525 = vpack.c.bf16 %v494, %v494
  %v526 = vpack.c.bf16 %v495, %v495
  %v527 = vpack.c.bf16 %v496, %v496
  %v528 = vpack.c.bf16 %v497, %v497
  %v529 = vpack.c.bf16 %v498, %v498
  %v530 = vpack.c.bf16 %v499, %v499
  %v531 = vpack.c.bf16 %v500, %v500
  %v532 = vpack.c.bf16 %v501, %v501
  %v533 = vpack.c.bf16 %v502, %v502
  %v534 = vpack.c.bf16 %v503, %v503
  %v535 = vpack.c.bf16 %v504, %v504
  %v536 = vpack.c.bf16 %v505, %v505
  %v537 = vpack.c.bf16 %v506, %v506
  %v538 = vpack.c.bf16 %v507, %v507
  %v539 = vpack.c.bf16 %v508, %v508
  %v540 = vpack.c.bf16 %v509, %v509
  %v541 = vpack.c.bf16 %v510, %v510
  %v542 = vpack.c.bf16 %v511, %v511
  %v543 = vpack.c.bf16 %v512, %v512
  %v544 = vpack.c.bf16 %v513, %v513
  %v545 = vpack.c.bf16 %v514, %v514
  %v546 = vpack.c.bf16 %v515, %v515
  %v547 = vpack.c.bf16 %v516, %v516
  %v548 = vpack.c.bf16 %v517, %v517
  %v549 = vpack.c.bf16 %v518, %v518
  %vm550 = vcmask 257024
  %551 = vst.msk [vmem:[%s3] sm:$0xf] %vm550, %v519
  %552 = vst.msk [vmem:[%s3 + $0x4] sm:$0xf] %vm550, %v520
  %553 = vst.msk [vmem:[%s3 + $0x8] sm:$0xf] %vm550, %v521
  %554 = vst.msk [vmem:[%s3 + $0xc] sm:$0xf] %vm550, %v522
  %555 = vst.msk [vmem:[%s3 + $0x10] sm:$0xf] %vm550, %v523
  %556 = vst.msk [vmem:[%s3 + $0x14] sm:$0xf] %vm550, %v524
  %557 = vst.msk [vmem:[%s3 + $0x18] sm:$0xf] %vm550, %v525
  %558 = vst.msk [vmem:[%s3 + $0x1c] sm:$0xf] %vm550, %v526
  %559 = vst.msk [vmem:[%s3 + $0x20] sm:$0xf] %vm550, %v527
  %560 = vst.msk [vmem:[%s3 + $0x24] sm:$0xf] %vm550, %v528
  %561 = vst.msk [vmem:[%s3 + $0x28] sm:$0xf] %vm550, %v529
  %562 = vst.msk [vmem:[%s3 + $0x2c] sm:$0xf] %vm550, %v530
  %563 = vst.msk [vmem:[%s3 + $0x30] sm:$0xf] %vm550, %v531
  %564 = vst.msk [vmem:[%s3 + $0x34] sm:$0xf] %vm550, %v532
  %565 = vst.msk [vmem:[%s3 + $0x38] sm:$0xf] %vm550, %v533
  %566 = vst.msk [vmem:[%s3 + $0x3c] sm:$0xf] %vm550, %v534
  %567 = vst.msk [vmem:[%s3 + $0x40] sm:$0xf] %vm550, %v535
  %568 = vst.msk [vmem:[%s3 + $0x44] sm:$0xf] %vm550, %v536
  %569 = vst.msk [vmem:[%s3 + $0x48] sm:$0xf] %vm550, %v537
  %570 = vst.msk [vmem:[%s3 + $0x4c] sm:$0xf] %vm550, %v538
  %571 = vst.msk [vmem:[%s3 + $0x50] sm:$0xf] %vm550, %v539
  %572 = vst.msk [vmem:[%s3 + $0x54] sm:$0xf] %vm550, %v540
  %573 = vst.msk [vmem:[%s3 + $0x58] sm:$0xf] %vm550, %v541
  %574 = vst.msk [vmem:[%s3 + $0x5c] sm:$0xf] %vm550, %v542
  %575 = vst.msk [vmem:[%s3 + $0x60] sm:$0xf] %vm550, %v543
  %576 = vst.msk [vmem:[%s3 + $0x64] sm:$0xf] %vm550, %v544
  %577 = vst.msk [vmem:[%s3 + $0x68] sm:$0xf] %vm550, %v545
  %578 = vst.msk [vmem:[%s3 + $0x6c] sm:$0xf] %vm550, %v546
  %579 = vst.msk [vmem:[%s3 + $0x70] sm:$0xf] %vm550, %v547
  %580 = vst.msk [vmem:[%s3 + $0x74] sm:$0xf] %vm550, %v548
  %vm581 = vcmask 253952
  %582 = vst.msk [vmem:[%s3 + $0x78] sm:$0x1] %vm581, %v549
  // Predicated region
  $region14: #{nn_forward.9} parent=0 // pred_check
    _
  $region15: #{nn_forward.9} parent=0 // pred_check_branch
    %584 = sbr.rel (0) target = $region17
  $region16: #{nn_forward.9} parent=0 // pred_region
    _
  $region17: #{nn_forward.9} parent=0 // pred_fallthru
    _
  // Predicated region
  $region18: #{nn_forward.9} parent=0 // pred_check
    _
  $region19: #{nn_forward.9} parent=0 // pred_check_branch
    %586 = sbr.rel (0) target = $region21
  $region20: #{nn_forward.9} parent=0 // pred_region
    _
  $region21: #{nn_forward.9} parent=0 // pred_fallthru
    _

// kernel: nn_forward.10
$region0: #{nn_forward.10}
  #allocation0 [shape = 'u32[]', space=smem, size = 0x4, offset = 0x4, fixed_abs, tag = 'smem constant byte address 0x4 - core index']
  #allocation1 [shape = 'u32[72,128]{1,0:T(1,128)}', space=vmem, size = 0x9000, scoped, tag = 'internal scratch']
  %s0 = inlined_call_operand.vmem [shape: bf16[50,288], index: 0, kind: input, shape index: {}]
  %s1 = inlined_call_operand.vmem [shape: bf16[288,64], index: 1, kind: input, shape index: {}]
  %s2 = inlined_call_operand.vmem [shape: f32[1,64], index: 2, kind: input, shape index: {}]
  %s3 = inlined_call_operand.vmem [shape: bf16[50,64], index: 3, kind: output, shape index: {}]
  %s4 = sld [smem:[#allocation0]]
  $region22: #{nn_forward.10} parent=0
    _
  %s6 = ssub.s32 1, %s4
  %s7 = scalar_select 0, %s6, %s4
  // Predicated region
  $region2: #{nn_forward.10} parent=0 // pred_check
    _
  $region3: #{nn_forward.10} parent=0 // pred_check_branch
    %9 = sbr.rel (0) target = $region5
  $region4: #{nn_forward.10} parent=0 // pred_region
    _
  $region5: #{nn_forward.10} parent=0 // pred_fallthru
    _
  // Predicated region
  $region6: #{nn_forward.10} parent=0 // pred_check
    _
  $region7: #{nn_forward.10} parent=0 // pred_check_branch
    %11 = sbr.rel (0) target = $region9
  $region8: #{nn_forward.10} parent=0 // pred_region
    _
  $region9: #{nn_forward.10} parent=0 // pred_fallthru
    _
  // Predicated region
  $region10: #{nn_forward.10} parent=0 // pred_check
    _
  $region11: #{nn_forward.10} parent=0 // pred_check_branch
    %13 = sbr.rel (0) target = $region13
  $region12: #{nn_forward.10} parent=0 // pred_region
    _
  $region13: #{nn_forward.10} parent=0 // pred_fallthru
    _
  %v15 = vld [vmem:[%s0] sm:$0xff]
  %v16 = vld [vmem:[%s0 + $0x8] sm:$0xf]
  %v17 = vld [vmem:[%s0 + $0xc] sm:$0xff]
  %v18 = vld [vmem:[%s0 + $0x14] sm:$0xf]
  %v19 = vld [vmem:[%s0 + $0x18] sm:$0xff]
  %v20 = vld [vmem:[%s0 + $0x20] sm:$0xf]
  %v21 = vld [vmem:[%s0 + $0x24] sm:$0xff]
  %v22 = vld [vmem:[%s0 + $0x2c] sm:$0xf]
  %v23 = vld [vmem:[%s0 + $0x30] sm:$0xff]
  %v24 = vld [vmem:[%s0 + $0x38] sm:$0xf]
  %v25 = vld [vmem:[%s0 + $0x3c] sm:$0xff]
  %v26 = vld [vmem:[%s0 + $0x44] sm:$0xf]
  %v27 = vld [vmem:[%s0 + $0x48] sm:$0x11]
  %v28 = vld [vmem:[%s0 + $0x50] sm:$0x1]
  %v29 = vld [vmem:[%s1] sm:$0xf]
  %v30 = vld [vmem:[%s1 + $0x4] sm:$0xf]
  %v31 = vld [vmem:[%s1 + $0x8] sm:$0xf]
  %v32 = vld [vmem:[%s1 + $0xc] sm:$0xf]
  %v33 = vld [vmem:[%s1 + $0x10] sm:$0xf]
  %v34 = vld [vmem:[%s1 + $0x14] sm:$0xf]
  %v35 = vld [vmem:[%s1 + $0x18] sm:$0xf]
  %v36 = vld [vmem:[%s1 + $0x1c] sm:$0xf]
  %v37 = vld [vmem:[%s1 + $0x20] sm:$0xf]
  %v38 = vld [vmem:[%s1 + $0x24] sm:$0xf]
  %v39 = vld [vmem:[%s1 + $0x28] sm:$0xf]
  %v40 = vld [vmem:[%s1 + $0x2c] sm:$0xf]
  %v41 = vld [vmem:[%s1 + $0x30] sm:$0xf]
  %v42 = vld [vmem:[%s1 + $0x34] sm:$0xf]
  %v43 = vld [vmem:[%s1 + $0x38] sm:$0xf]
  %v44 = vld [vmem:[%s1 + $0x3c] sm:$0xf]
  %v45 = vld [vmem:[%s1 + $0x40] sm:$0xf]
  %v46 = vld [vmem:[%s1 + $0x44] sm:$0xf]
  %v47 = vld [vmem:[%s1 + $0x48] sm:$0xf]
  %v48 = vld [vmem:[%s1 + $0x4c] sm:$0xf]
  %v49 = vld [vmem:[%s1 + $0x50] sm:$0xf]
  %v50 = vld [vmem:[%s1 + $0x54] sm:$0xf]
  %v51 = vld [vmem:[%s1 + $0x58] sm:$0xf]
  %v52 = vld [vmem:[%s1 + $0x5c] sm:$0xf]
  %v53 = vld [vmem:[%s1 + $0x60] sm:$0xf]
  %v54 = vld [vmem:[%s1 + $0x64] sm:$0xf]
  %v55 = vld [vmem:[%s1 + $0x68] sm:$0xf]
  %v56 = vld [vmem:[%s1 + $0x6c] sm:$0xf]
  %v57 = vld [vmem:[%s1 + $0x70] sm:$0xf]
  %v58 = vld [vmem:[%s1 + $0x74] sm:$0xf]
  %v59 = vld [vmem:[%s1 + $0x78] sm:$0xf]
  %v60 = vld [vmem:[%s1 + $0x7c] sm:$0xf]
  %v61 = vld [vmem:[%s1 + $0x80] sm:$0xf]
  %v62 = vld [vmem:[%s1 + $0x84] sm:$0xf]
  %v63 = vld [vmem:[%s1 + $0x88] sm:$0xf]
  %v64 = vld [vmem:[%s1 + $0x8c] sm:$0xf]
  %v65 = vld [vmem:[%s2] sm:$0x1]
  %v67 = vperm.slane %v65, 0
  %v83 = vunpack.c.l.b16 %v15
  %v84 = vunpack.c.h.b16 %v15
  %v85 = vunpack.c.l.b16 %v16
  %v86 = vunpack.c.l.b16 %v17
  %v87 = vunpack.c.h.b16 %v17
  %v88 = vunpack.c.l.b16 %v18
  %v89 = vunpack.c.l.b16 %v19
  %v90 = vunpack.c.h.b16 %v19
  %v91 = vunpack.c.l.b16 %v20
  %v92 = vunpack.c.l.b16 %v21
  %v93 = vunpack.c.h.b16 %v21
  %v94 = vunpack.c.l.b16 %v22
  %v95 = vunpack.c.l.b16 %v23
  %v96 = vunpack.c.h.b16 %v23
  %v97 = vunpack.c.l.b16 %v24
  %v98 = vunpack.c.l.b16 %v25
  %v99 = vunpack.c.h.b16 %v25
  %v100 = vunpack.c.l.b16 %v26
  %v101 = vunpack.c.l.b16 %v27
  %v102 = vunpack.c.h.b16 %v27
  %v103 = vunpack.c.l.b16 %v28
  %v104 = vpack.c.b16 %v86, %v83
  %v105 = vpack.c.b16 %v87, %v84
  %v106 = vpack.c.b16 %v88, %v85
  %v107 = vpack.c.b16 %v92, %v89
  %v108 = vpack.c.b16 %v93, %v90
  %v109 = vpack.c.b16 %v94, %v91
  %v110 = vpack.c.b16 %v98, %v95
  %v111 = vpack.c.b16 %v99, %v96
  %v112 = vpack.c.b16 %v100, %v97
  %v113 = vpack.c.b16 %v101, %v101
  %v114 = vpack.c.b16 %v102, %v102
  %v115 = vpack.c.b16 %v103, %v103
  %v160 = vunpack.c.l.b16 %v29
  %v161 = vunpack.c.l.b16 %v30
  %v162 = vunpack.c.l.b16 %v31
  %v163 = vunpack.c.l.b16 %v32
  %v164 = vunpack.c.l.b16 %v33
  %v165 = vunpack.c.l.b16 %v34
  %v166 = vunpack.c.l.b16 %v35
  %v167 = vunpack.c.l.b16 %v36
  %v168 = vunpack.c.l.b16 %v37
  %v169 = vunpack.c.l.b16 %v38
  %v170 = vunpack.c.l.b16 %v39
  %v171 = vunpack.c.l.b16 %v40
  %v172 = vunpack.c.l.b16 %v41
  %v173 = vunpack.c.l.b16 %v42
  %v174 = vunpack.c.l.b16 %v43
  %v175 = vunpack.c.l.b16 %v44
  %v176 = vunpack.c.l.b16 %v45
  %v177 = vunpack.c.l.b16 %v46
  %v178 = vunpack.c.l.b16 %v47
  %v179 = vunpack.c.l.b16 %v48
  %v180 = vunpack.c.l.b16 %v49
  %v181 = vunpack.c.l.b16 %v50
  %v182 = vunpack.c.l.b16 %v51
  %v183 = vunpack.c.l.b16 %v52
  %v184 = vunpack.c.l.b16 %v53
  %v185 = vunpack.c.l.b16 %v54
  %v186 = vunpack.c.l.b16 %v55
  %v187 = vunpack.c.l.b16 %v56
  %v188 = vunpack.c.l.b16 %v57
  %v189 = vunpack.c.l.b16 %v58
  %v190 = vunpack.c.l.b16 %v59
  %v191 = vunpack.c.l.b16 %v60
  %v192 = vunpack.c.l.b16 %v61
  %v193 = vunpack.c.l.b16 %v62
  %v194 = vunpack.c.l.b16 %v63
  %v195 = vunpack.c.l.b16 %v64
  %v196 = vpack.c.b16 %v161, %v160
  %v197 = vpack.c.b16 %v163, %v162
  %v198 = vpack.c.b16 %v165, %v164
  %v199 = vpack.c.b16 %v167, %v166
  %v200 = vpack.c.b16 %v169, %v168
  %v201 = vpack.c.b16 %v171, %v170
  %v202 = vpack.c.b16 %v173, %v172
  %v203 = vpack.c.b16 %v175, %v174
  %v204 = vpack.c.b16 %v177, %v176
  %v205 = vpack.c.b16 %v179, %v178
  %v206 = vpack.c.b16 %v181, %v180
  %v207 = vpack.c.b16 %v183, %v182
  %v208 = vpack.c.b16 %v185, %v184
  %v209 = vpack.c.b16 %v187, %v186
  %v210 = vpack.c.b16 %v189, %v188
  %v211 = vpack.c.b16 %v191, %v190
  %v212 = vpack.c.b16 %v193, %v192
  %v213 = vpack.c.b16 %v195, %v194
  %vm232 = vcmask 261120
  %v234 = vsel %vm232, %v106, 0
  %v237 = vsel %vm232, %v109, 0
  %v240 = vsel %vm232, %v112, 0
  %v243 = vsel %vm232, %v115, 0
  %245 = vmatpush.bf16.msra.mxu0 %v203
  %246 = vmatpush.bf16.msra.mxu0 %v202
  %247 = vmatpush.bf16.msra.mxu0 %v201
  %248 = vmatpush.bf16.msra.mxu0 %v200
  %249 = vmatpush.bf16.msra.mxu0 %v199
  %250 = vmatpush.bf16.msra.mxu0 %v198
  %251 = vmatpush.bf16.msra.mxu0 %v197
  %252 = vmatpush.bf16.msra.mxu0 %v196
  %253 = vmatmul.bf16.gmra.mxu0 %v104
  %v254 = vpop.f32.mrf.mxu0
  %v255 = vadd.f32 %v67, %v254
  %v256 = vpop.f32.mrf.mxu0
  %v257 = vadd.f32 %v67, %v256
  %258 = vmatmul.bf16.gmra.mxu0 %v107
  %v259 = vpop.f32.mrf.mxu0
  %v260 = vadd.f32 %v67, %v259
  %v261 = vpop.f32.mrf.mxu0
  %v262 = vadd.f32 %v67, %v261
  %263 = vmatmul.bf16.gmra.mxu0 %v110
  %v264 = vpop.f32.mrf.mxu0
  %v265 = vadd.f32 %v67, %v264
  %v266 = vpop.f32.mrf.mxu0
  %v267 = vadd.f32 %v67, %v266
  %268 = vmatmul.bf16.gmra.mxu0 %v113
  %v269 = vpop.f32.mrf.mxu0
  %v270 = vadd.f32 %v67, %v269
  %v271 = vpop.f32.mrf.mxu0
  %272 = vdwg.mxu0
  %273 = vmatpush.bf16.msra.mxu0 %v211
  %274 = vmatpush.bf16.msra.mxu0 %v210
  %275 = vmatpush.bf16.msra.mxu0 %v209
  %276 = vmatpush.bf16.msra.mxu0 %v208
  %277 = vmatpush.bf16.msra.mxu0 %v207
  %278 = vmatpush.bf16.msra.mxu0 %v206
  %279 = vmatpush.bf16.msra.mxu0 %v205
  %280 = vmatpush.bf16.msra.mxu0 %v204
  %281 = vmatmul.bf16.gmra.mxu0 %v105
  %v282 = vpop.f32.mrf.mxu0
  %v283 = vadd.f32 %v255, %v282
  %v284 = vpop.f32.mrf.mxu0
  %v285 = vadd.f32 %v257, %v284
  %286 = vmatmul.bf16.gmra.mxu0 %v108
  %v287 = vpop.f32.mrf.mxu0
  %v288 = vadd.f32 %v260, %v287
  %v289 = vpop.f32.mrf.mxu0
  %v290 = vadd.f32 %v262, %v289
  %291 = vmatmul.bf16.gmra.mxu0 %v111
  %v292 = vpop.f32.mrf.mxu0
  %v293 = vadd.f32 %v265, %v292
  %v294 = vpop.f32.mrf.mxu0
  %v295 = vadd.f32 %v267, %v294
  %296 = vmatmul.bf16.gmra.mxu0 %v114
  %v297 = vpop.f32.mrf.mxu0
  %v298 = vadd.f32 %v270, %v297
  %v299 = vpop.f32.mrf.mxu0
  %300 = vdwg.mxu0
  %301 = vmatpush.bf16.msra.mxu0 0
  %302 = vmatpush.bf16.msra.mxu0 0
  %303 = vmatpush.bf16.msra.mxu0 0
  %304 = vmatpush.bf16.msra.mxu0 0
  %305 = vmatpush.bf16.msra.mxu0 0
  %306 = vmatpush.bf16.msra.mxu0 0
  %307 = vmatpush.bf16.msra.mxu0 %v213
  %308 = vmatpush.bf16.msra.mxu0 %v212
  %309 = vmatmul.bf16.gmra.mxu0 %v234
  %v310 = vpop.f32.mrf.mxu0
  %v311 = vadd.f32 %v283, %v310
  %v312 = vpop.f32.mrf.mxu0
  %v313 = vadd.f32 %v285, %v312
  %314 = vmatmul.bf16.gmra.mxu0 %v237
  %v315 = vpop.f32.mrf.mxu0
  %v316 = vadd.f32 %v288, %v315
  %v317 = vpop.f32.mrf.mxu0
  %v318 = vadd.f32 %v290, %v317
  %319 = vmatmul.bf16.gmra.mxu0 %v240
  %v320 = vpop.f32.mrf.mxu0
  %v321 = vadd.f32 %v293, %v320
  %v322 = vpop.f32.mrf.mxu0
  %v323 = vadd.f32 %v295, %v322
  %324 = vmatmul.bf16.gmra.mxu0 %v243
  %v325 = vpop.f32.mrf.mxu0
  %v326 = vadd.f32 %v298, %v325
  %v327 = vpop.f32.mrf.mxu0
  %328 = vdwg.mxu0
  %v329 = vmax.f32 %v311, 0.0
  %v330 = vmax.f32 %v313, 0.0
  %v331 = vmax.f32 %v316, 0.0
  %v332 = vmax.f32 %v318, 0.0
  %v333 = vmax.f32 %v321, 0.0
  %v334 = vmax.f32 %v323, 0.0
  %v335 = vmax.f32 %v326, 0.0
  %v336 = vpack.c.bf16 %v329, %v329
  %v337 = vpack.c.bf16 %v330, %v330
  %v338 = vpack.c.bf16 %v331, %v331
  %v339 = vpack.c.bf16 %v332, %v332
  %v340 = vpack.c.bf16 %v333, %v333
  %v341 = vpack.c.bf16 %v334, %v334
  %v342 = vpack.c.bf16 %v335, %v335
  %vm343 = vcmask 519168
  %344 = vst.msk [vmem:[%s3] sm:$0xf] %vm343, %v336
  %345 = vst.msk [vmem:[%s3 + $0x4] sm:$0xf] %vm343, %v337
  %346 = vst.msk [vmem:[%s3 + $0x8] sm:$0xf] %vm343, %v338
  %347 = vst.msk [vmem:[%s3 + $0xc] sm:$0xf] %vm343, %v339
  %348 = vst.msk [vmem:[%s3 + $0x10] sm:$0xf] %vm343, %v340
  %349 = vst.msk [vmem:[%s3 + $0x14] sm:$0xf] %vm343, %v341
  %vm350 = vcmask 516096
  %351 = vst.msk [vmem:[%s3 + $0x18] sm:$0x1] %vm350, %v342
  // Predicated region
  $region14: #{nn_forward.10} parent=0 // pred_check
    _
  $region15: #{nn_forward.10} parent=0 // pred_check_branch
    %353 = sbr.rel (0) target = $region17
  $region16: #{nn_forward.10} parent=0 // pred_region
    _
  $region17: #{nn_forward.10} parent=0 // pred_fallthru
    _
  // Predicated region
  $region18: #{nn_forward.10} parent=0 // pred_check
    _
  $region19: #{nn_forward.10} parent=0 // pred_check_branch
    %355 = sbr.rel (0) target = $region21
  $region20: #{nn_forward.10} parent=0 // pred_region
    _
  $region21: #{nn_forward.10} parent=0 // pred_fallthru
    _

// kernel: nn_forward.11
$region0: #{nn_forward.11}
  #allocation0 [shape = 'u32[]', space=smem, size = 0x4, offset = 0x4, fixed_abs, tag = 'smem constant byte address 0x4 - core index']
  #allocation1 [shape = 'u32[72,128]{1,0:T(1,128)}', space=vmem, size = 0x9000, scoped, tag = 'internal scratch']
  %s0 = inlined_call_operand.vmem [shape: bf16[18,576], index: 0, kind: input, shape index: {}]
  %s1 = inlined_call_operand.vmem [shape: bf16[576,128], index: 1, kind: input, shape index: {}]
  %s2 = inlined_call_operand.vmem [shape: f32[1,128], index: 2, kind: input, shape index: {}]
  %s3 = inlined_call_operand.vmem [shape: bf16[18,128], index: 3, kind: output, shape index: {}]
  %s4 = sld [smem:[#allocation0]]
  $region22: #{nn_forward.11} parent=0
    _
  %s6 = ssub.s32 1, %s4
  %s7 = scalar_select 0, %s6, %s4
  // Predicated region
  $region2: #{nn_forward.11} parent=0 // pred_check
    _
  $region3: #{nn_forward.11} parent=0 // pred_check_branch
    %9 = sbr.rel (0) target = $region5
  $region4: #{nn_forward.11} parent=0 // pred_region
    _
  $region5: #{nn_forward.11} parent=0 // pred_fallthru
    _
  // Predicated region
  $region6: #{nn_forward.11} parent=0 // pred_check
    _
  $region7: #{nn_forward.11} parent=0 // pred_check_branch
    %11 = sbr.rel (0) target = $region9
  $region8: #{nn_forward.11} parent=0 // pred_region
    _
  $region9: #{nn_forward.11} parent=0 // pred_fallthru
    _
  // Predicated region
  $region10: #{nn_forward.11} parent=0 // pred_check
    _
  $region11: #{nn_forward.11} parent=0 // pred_check_branch
    %13 = sbr.rel (0) target = $region13
  $region12: #{nn_forward.11} parent=0 // pred_region
    _
  $region13: #{nn_forward.11} parent=0 // pred_fallthru
    _
  %v15 = vld [vmem:[%s0] sm:$0xff]
  %v16 = vld [vmem:[%s0 + $0x8] sm:$0xff]
  %v17 = vld [vmem:[%s0 + $0x10] sm:$0xf]
  %v18 = vld [vmem:[%s0 + $0x14] sm:$0xff]
  %v19 = vld [vmem:[%s0 + $0x1c] sm:$0xff]
  %v20 = vld [vmem:[%s0 + $0x24] sm:$0xf]
  %v21 = vld [vmem:[%s0 + $0x28] sm:$0x11]
  %v22 = vld [vmem:[%s0 + $0x30] sm:$0x11]
  %v23 = vld [vmem:[%s0 + $0x38] sm:$0x1]
  %v24 = vld [vmem:[%s1] sm:$0xf]
  %v25 = vld [vmem:[%s1 + $0x4] sm:$0xf]
  %v26 = vld [vmem:[%s1 + $0x8] sm:$0xf]
  %v27 = vld [vmem:[%s1 + $0xc] sm:$0xf]
  %v28 = vld [vmem:[%s1 + $0x10] sm:$0xf]
  %v29 = vld [vmem:[%s1 + $0x14] sm:$0xf]
  %v30 = vld [vmem:[%s1 + $0x18] sm:$0xf]
  %v31 = vld [vmem:[%s1 + $0x1c] sm:$0xf]
  %v32 = vld [vmem:[%s1 + $0x20] sm:$0xf]
  %v33 = vld [vmem:[%s1 + $0x24] sm:$0xf]
  %v34 = vld [vmem:[%s1 + $0x28] sm:$0xf]
  %v35 = vld [vmem:[%s1 + $0x2c] sm:$0xf]
  %v36 = vld [vmem:[%s1 + $0x30] sm:$0xf]
  %v37 = vld [vmem:[%s1 + $0x34] sm:$0xf]
  %v38 = vld [vmem:[%s1 + $0x38] sm:$0xf]
  %v39 = vld [vmem:[%s1 + $0x3c] sm:$0xf]
  %v40 = vld [vmem:[%s1 + $0x40] sm:$0xf]
  %v41 = vld [vmem:[%s1 + $0x44] sm:$0xf]
  %v42 = vld [vmem:[%s1 + $0x48] sm:$0xf]
  %v43 = vld [vmem:[%s1 + $0x4c] sm:$0xf]
  %v44 = vld [vmem:[%s1 + $0x50] sm:$0xf]
  %v45 = vld [vmem:[%s1 + $0x54] sm:$0xf]
  %v46 = vld [vmem:[%s1 + $0x58] sm:$0xf]
  %v47 = vld [vmem:[%s1 + $0x5c] sm:$0xf]
  %v48 = vld [vmem:[%s1 + $0x60] sm:$0xf]
  %v49 = vld [vmem:[%s1 + $0x64] sm:$0xf]
  %v50 = vld [vmem:[%s1 + $0x68] sm:$0xf]
  %v51 = vld [vmem:[%s1 + $0x6c] sm:$0xf]
  %v52 = vld [vmem:[%s1 + $0x70] sm:$0xf]
  %v53 = vld [vmem:[%s1 + $0x74] sm:$0xf]
  %v54 = vld [vmem:[%s1 + $0x78] sm:$0xf]
  %v55 = vld [vmem:[%s1 + $0x7c] sm:$0xf]
  %v56 = vld [vmem:[%s1 + $0x80] sm:$0xf]
  %v57 = vld [vmem:[%s1 + $0x84] sm:$0xf]
  %v58 = vld [vmem:[%s1 + $0x88] sm:$0xf]
  %v59 = vld [vmem:[%s1 + $0x8c] sm:$0xf]
  %v60 = vld [vmem:[%s1 + $0x90] sm:$0xf]
  %v61 = vld [vmem:[%s1 + $0x94] sm:$0xf]
  %v62 = vld [vmem:[%s1 + $0x98] sm:$0xf]
  %v63 = vld [vmem:[%s1 + $0x9c] sm:$0xf]
  %v64 = vld [vmem:[%s1 + $0xa0] sm:$0xf]
  %v65 = vld [vmem:[%s1 + $0xa4] sm:$0xf]
  %v66 = vld [vmem:[%s1 + $0xa8] sm:$0xf]
  %v67 = vld [vmem:[%s1 + $0xac] sm:$0xf]
  %v68 = vld [vmem:[%s1 + $0xb0] sm:$0xf]
  %v69 = vld [vmem:[%s1 + $0xb4] sm:$0xf]
  %v70 = vld [vmem:[%s1 + $0xb8] sm:$0xf]
  %v71 = vld [vmem:[%s1 + $0xbc] sm:$0xf]
  %v72 = vld [vmem:[%s1 + $0xc0] sm:$0xf]
  %v73 = vld [vmem:[%s1 + $0xc4] sm:$0xf]
  %v74 = vld [vmem:[%s1 + $0xc8] sm:$0xf]
  %v75 = vld [vmem:[%s1 + $0xcc] sm:$0xf]
  %v76 = vld [vmem:[%s1 + $0xd0] sm:$0xf]
  %v77 = vld [vmem:[%s1 + $0xd4] sm:$0xf]
  %v78 = vld [vmem:[%s1 + $0xd8] sm:$0xf]
  %v79 = vld [vmem:[%s1 + $0xdc] sm:$0xf]
  %v80 = vld [vmem:[%s1 + $0xe0] sm:$0xf]
  %v81 = vld [vmem:[%s1 + $0xe4] sm:$0xf]
  %v82 = vld [vmem:[%s1 + $0xe8] sm:$0xf]
  %v83 = vld [vmem:[%s1 + $0xec] sm:$0xf]
  %v84 = vld [vmem:[%s1 + $0xf0] sm:$0xf]
  %v85 = vld [vmem:[%s1 + $0xf4] sm:$0xf]
  %v86 = vld [vmem:[%s1 + $0xf8] sm:$0xf]
  %v87 = vld [vmem:[%s1 + $0xfc] sm:$0xf]
  %v88 = vld [vmem:[%s1 + $0x100] sm:$0xf]
  %v89 = vld [vmem:[%s1 + $0x104] sm:$0xf]
  %v90 = vld [vmem:[%s1 + $0x108] sm:$0xf]
  %v91 = vld [vmem:[%s1 + $0x10c] sm:$0xf]
  %v92 = vld [vmem:[%s1 + $0x110] sm:$0xf]
  %v93 = vld [vmem:[%s1 + $0x114] sm:$0xf]
  %v94 = vld [vmem:[%s1 + $0x118] sm:$0xf]
  %v95 = vld [vmem:[%s1 + $0x11c] sm:$0xf]
  %v96 = vld [vmem:[%s2] sm:$0x1]
  %v98 = vperm.slane %v96, 0
  %v109 = vunpack.c.l.b16 %v15
  %v110 = vunpack.c.h.b16 %v15
  %v111 = vunpack.c.l.b16 %v16
  %v112 = vunpack.c.h.b16 %v16
  %v113 = vunpack.c.l.b16 %v17
  %v114 = vunpack.c.l.b16 %v18
  %v115 = vunpack.c.h.b16 %v18
  %v116 = vunpack.c.l.b16 %v19
  %v117 = vunpack.c.h.b16 %v19
  %v118 = vunpack.c.l.b16 %v20
  %v119 = vunpack.c.l.b16 %v21
  %v120 = vunpack.c.h.b16 %v21
  %v121 = vunpack.c.l.b16 %v22
  %v122 = vunpack.c.h.b16 %v22
  %v123 = vunpack.c.l.b16 %v23
  %v124 = vpack.c.b16 %v114, %v109
  %v125 = vpack.c.b16 %v115, %v110
  %v126 = vpack.c.b16 %v116, %v111
  %v127 = vpack.c.b16 %v117, %v112
  %v128 = vpack.c.b16 %v118, %v113
  %v129 = vpack.c.b16 %v119, %v119
  %v130 = vpack.c.b16 %v120, %v120
  %v131 = vpack.c.b16 %v121, %v121
  %v132 = vpack.c.b16 %v122, %v122
  %v133 = vpack.c.b16 %v123, %v123
  %v214 = vunpack.c.l.b16 %v24
  %v215 = vunpack.c.l.b16 %v25
  %v216 = vunpack.c.l.b16 %v26
  %v217 = vunpack.c.l.b16 %v27
  %v218 = vunpack.c.l.b16 %v28
  %v219 = vunpack.c.l.b16 %v29
  %v220 = vunpack.c.l.b16 %v30
  %v221 = vunpack.c.l.b16 %v31
  %v222 = vunpack.c.l.b16 %v32
  %v223 = vunpack.c.l.b16 %v33
  %v224 = vunpack.c.l.b16 %v34
  %v225 = vunpack.c.l.b16 %v35
  %v226 = vunpack.c.l.b16 %v36
  %v227 = vunpack.c.l.b16 %v37
  %v228 = vunpack.c.l.b16 %v38
  %v229 = vunpack.c.l.b16 %v39
  %v230 = vunpack.c.l.b16 %v40
  %v231 = vunpack.c.l.b16 %v41
  %v232 = vunpack.c.l.b16 %v42
  %v233 = vunpack.c.l.b16 %v43
  %v234 = vunpack.c.l.b16 %v44
  %v235 = vunpack.c.l.b16 %v45
  %v236 = vunpack.c.l.b16 %v46
  %v237 = vunpack.c.l.b16 %v47
  %v238 = vunpack.c.l.b16 %v48
  %v239 = vunpack.c.l.b16 %v49
  %v240 = vunpack.c.l.b16 %v50
  %v241 = vunpack.c.l.b16 %v51
  %v242 = vunpack.c.l.b16 %v52
  %v243 = vunpack.c.l.b16 %v53
  %v244 = vunpack.c.l.b16 %v54
  %v245 = vunpack.c.l.b16 %v55
  %v246 = vunpack.c.l.b16 %v56
  %v247 = vunpack.c.l.b16 %v57
  %v248 = vunpack.c.l.b16 %v58
  %v249 = vunpack.c.l.b16 %v59
  %v250 = vunpack.c.l.b16 %v60
  %v251 = vunpack.c.l.b16 %v61
  %v252 = vunpack.c.l.b16 %v62
  %v253 = vunpack.c.l.b16 %v63
  %v254 = vunpack.c.l.b16 %v64
  %v255 = vunpack.c.l.b16 %v65
  %v256 = vunpack.c.l.b16 %v66
  %v257 = vunpack.c.l.b16 %v67
  %v258 = vunpack.c.l.b16 %v68
  %v259 = vunpack.c.l.b16 %v69
  %v260 = vunpack.c.l.b16 %v70
  %v261 = vunpack.c.l.b16 %v71
  %v262 = vunpack.c.l.b16 %v72
  %v263 = vunpack.c.l.b16 %v73
  %v264 = vunpack.c.l.b16 %v74
  %v265 = vunpack.c.l.b16 %v75
  %v266 = vunpack.c.l.b16 %v76
  %v267 = vunpack.c.l.b16 %v77
  %v268 = vunpack.c.l.b16 %v78
  %v269 = vunpack.c.l.b16 %v79
  %v270 = vunpack.c.l.b16 %v80
  %v271 = vunpack.c.l.b16 %v81
  %v272 = vunpack.c.l.b16 %v82
  %v273 = vunpack.c.l.b16 %v83
  %v274 = vunpack.c.l.b16 %v84
  %v275 = vunpack.c.l.b16 %v85
  %v276 = vunpack.c.l.b16 %v86
  %v277 = vunpack.c.l.b16 %v87
  %v278 = vunpack.c.l.b16 %v88
  %v279 = vunpack.c.l.b16 %v89
  %v280 = vunpack.c.l.b16 %v90
  %v281 = vunpack.c.l.b16 %v91
  %v282 = vunpack.c.l.b16 %v92
  %v283 = vunpack.c.l.b16 %v93
  %v284 = vunpack.c.l.b16 %v94
  %v285 = vunpack.c.l.b16 %v95
  %v286 = vpack.c.b16 %v215, %v214
  %v287 = vpack.c.b16 %v217, %v216
  %v288 = vpack.c.b16 %v219, %v218
  %v289 = vpack.c.b16 %v221, %v220
  %v290 = vpack.c.b16 %v223, %v222
  %v291 = vpack.c.b16 %v225, %v224
  %v292 = vpack.c.b16 %v227, %v226
  %v293 = vpack.c.b16 %v229, %v228
  %v294 = vpack.c.b16 %v231, %v230
  %v295 = vpack.c.b16 %v233, %v232
  %v296 = vpack.c.b16 %v235, %v234
  %v297 = vpack.c.b16 %v237, %v236
  %v298 = vpack.c.b16 %v239, %v238
  %v299 = vpack.c.b16 %v241, %v240
  %v300 = vpack.c.b16 %v243, %v242
  %v301 = vpack.c.b16 %v245, %v244
  %v302 = vpack.c.b16 %v247, %v246
  %v303 = vpack.c.b16 %v249, %v248
  %v304 = vpack.c.b16 %v251, %v250
  %v305 = vpack.c.b16 %v253, %v252
  %v306 = vpack.c.b16 %v255, %v254
  %v307 = vpack.c.b16 %v257, %v256
  %v308 = vpack.c.b16 %v259, %v258
  %v309 = vpack.c.b16 %v261, %v260
  %v310 = vpack.c.b16 %v263, %v262
  %v311 = vpack.c.b16 %v265, %v264
  %v312 = vpack.c.b16 %v267, %v266
  %v313 = vpack.c.b16 %v269, %v268
  %v314 = vpack.c.b16 %v271, %v270
  %v315 = vpack.c.b16 %v273, %v272
  %v316 = vpack.c.b16 %v275, %v274
  %v317 = vpack.c.b16 %v277, %v276
  %v318 = vpack.c.b16 %v279, %v278
  %v319 = vpack.c.b16 %v281, %v280
  %v320 = vpack.c.b16 %v283, %v282
  %v321 = vpack.c.b16 %v285, %v284
  %vm358 = vcmask 523264
  %v360 = vsel %vm358, %v128, 0
  %v363 = vsel %vm358, %v133, 0
  %365 = vmatpush.bf16.msra.mxu0 %v293
  %366 = vmatpush.bf16.msra.mxu0 %v292
  %367 = vmatpush.bf16.msra.mxu0 %v291
  %368 = vmatpush.bf16.msra.mxu0 %v290
  %369 = vmatpush.bf16.msra.mxu0 %v289
  %370 = vmatpush.bf16.msra.mxu0 %v288
  %371 = vmatpush.bf16.msra.mxu0 %v287
  %372 = vmatpush.bf16.msra.mxu0 %v286
  %373 = vmatmul.bf16.gmra.mxu0 %v124
  %v374 = vpop.f32.mrf.mxu0
  %v375 = vadd.f32 %v98, %v374
  %v376 = vpop.f32.mrf.mxu0
  %v377 = vadd.f32 %v98, %v376
  %378 = vmatmul.bf16.gmra.mxu0 %v129
  %v379 = vpop.f32.mrf.mxu0
  %v380 = vadd.f32 %v98, %v379
  %v381 = vpop.f32.mrf.mxu0
  %382 = vdwg.mxu0
  %383 = vmatpush.bf16.msra.mxu0 %v301
  %384 = vmatpush.bf16.msra.mxu0 %v300
  %385 = vmatpush.bf16.msra.mxu0 %v299
  %386 = vmatpush.bf16.msra.mxu0 %v298
  %387 = vmatpush.bf16.msra.mxu0 %v297
  %388 = vmatpush.bf16.msra.mxu0 %v296
  %389 = vmatpush.bf16.msra.mxu0 %v295
  %390 = vmatpush.bf16.msra.mxu0 %v294
  %391 = vmatmul.bf16.gmra.mxu0 %v125
  %v392 = vpop.f32.mrf.mxu0
  %v393 = vadd.f32 %v375, %v392
  %v394 = vpop.f32.mrf.mxu0
  %v395 = vadd.f32 %v377, %v394
  %396 = vmatmul.bf16.gmra.mxu0 %v130
  %v397 = vpop.f32.mrf.mxu0
  %v398 = vadd.f32 %v380, %v397
  %v399 = vpop.f32.mrf.mxu0
  %400 = vdwg.mxu0
  %401 = vmatpush.bf16.msra.mxu0 %v309
  %402 = vmatpush.bf16.msra.mxu0 %v308
  %403 = vmatpush.bf16.msra.mxu0 %v307
  %404 = vmatpush.bf16.msra.mxu0 %v306
  %405 = vmatpush.bf16.msra.mxu0 %v305
  %406 = vmatpush.bf16.msra.mxu0 %v304
  %407 = vmatpush.bf16.msra.mxu0 %v303
  %408 = vmatpush.bf16.msra.mxu0 %v302
  %409 = vmatmul.bf16.gmra.mxu0 %v126
  %v410 = vpop.f32.mrf.mxu0
  %v411 = vadd.f32 %v393, %v410
  %v412 = vpop.f32.mrf.mxu0
  %v413 = vadd.f32 %v395, %v412
  %414 = vmatmul.bf16.gmra.mxu0 %v131
  %v415 = vpop.f32.mrf.mxu0
  %v416 = vadd.f32 %v398, %v415
  %v417 = vpop.f32.mrf.mxu0
  %418 = vdwg.mxu0
  %419 = vmatpush.bf16.msra.mxu0 %v317
  %420 = vmatpush.bf16.msra.mxu0 %v316
  %421 = vmatpush.bf16.msra.mxu0 %v315
  %422 = vmatpush.bf16.msra.mxu0 %v314
  %423 = vmatpush.bf16.msra.mxu0 %v313
  %424 = vmatpush.bf16.msra.mxu0 %v312
  %425 = vmatpush.bf16.msra.mxu0 %v311
  %426 = vmatpush.bf16.msra.mxu0 %v310
  %427 = vmatmul.bf16.gmra.mxu0 %v127
  %v428 = vpop.f32.mrf.mxu0
  %v429 = vadd.f32 %v411, %v428
  %v430 = vpop.f32.mrf.mxu0
  %v431 = vadd.f32 %v413, %v430
  %432 = vmatmul.bf16.gmra.mxu0 %v132
  %v433 = vpop.f32.mrf.mxu0
  %v434 = vadd.f32 %v416, %v433
  %v435 = vpop.f32.mrf.mxu0
  %436 = vdwg.mxu0
  %437 = vmatpush.bf16.msra.mxu0 0
  %438 = vmatpush.bf16.msra.mxu0 0
  %439 = vmatpush.bf16.msra.mxu0 0
  %440 = vmatpush.bf16.msra.mxu0 0
  %441 = vmatpush.bf16.msra.mxu0 %v321
  %442 = vmatpush.bf16.msra.mxu0 %v320
  %443 = vmatpush.bf16.msra.mxu0 %v319
  %444 = vmatpush.bf16.msra.mxu0 %v318
  %445 = vmatmul.bf16.gmra.mxu0 %v360
  %v446 = vpop.f32.mrf.mxu0
  %v447 = vadd.f32 %v429, %v446
  %v448 = vpop.f32.mrf.mxu0
  %v449 = vadd.f32 %v431, %v448
  %450 = vmatmul.bf16.gmra.mxu0 %v363
  %v451 = vpop.f32.mrf.mxu0
  %v452 = vadd.f32 %v434, %v451
  %v453 = vpop.f32.mrf.mxu0
  %454 = vdwg.mxu0
  %v455 = vmax.f32 %v447, 0.0
  %v456 = vmax.f32 %v449, 0.0
  %v457 = vmax.f32 %v452, 0.0
  %v458 = vpack.c.bf16 %v455, %v455
  %v459 = vpack.c.bf16 %v456, %v456
  %v460 = vpack.c.bf16 %v457, %v457
  %461 = vst [vmem:[%s3] sm:$0xf] %v458
  %462 = vst [vmem:[%s3 + $0x4] sm:$0xf] %v459
  %463 = vst [vmem:[%s3 + $0x8] sm:$0x1] %v460
  // Predicated region
  $region14: #{nn_forward.11} parent=0 // pred_check
    _
  $region15: #{nn_forward.11} parent=0 // pred_check_branch
    %465 = sbr.rel (0) target = $region17
  $region16: #{nn_forward.11} parent=0 // pred_region
    _
  $region17: #{nn_forward.11} parent=0 // pred_fallthru
    _
  // Predicated region
  $region18: #{nn_forward.11} parent=0 // pred_check
    _
  $region19: #{nn_forward.11} parent=0 // pred_check_branch
    %467 = sbr.rel (0) target = $region21
  $region20: #{nn_forward.11} parent=0 // pred_region
    _
  $region21: #{nn_forward.11} parent=0 // pred_fallthru
    _

// kernel: nn_forward.12
$region0: #{nn_forward.12}
  #allocation0 [shape = 'u32[]', space=smem, size = 0x4, offset = 0x4, fixed_abs, tag = 'smem constant byte address 0x4 - core index']
  #allocation1 [shape = 'u32[72,128]{1,0:T(1,128)}', space=vmem, size = 0x9000, scoped, tag = 'internal scratch']
  %s0 = inlined_call_operand.vmem [shape: bf16[2,1152], index: 0, kind: input, shape index: {}]
  %s1 = inlined_call_operand.vmem [shape: bf16[1152,256], index: 1, kind: input, shape index: {}]
  %s2 = inlined_call_operand.vmem [shape: f32[1,256], index: 2, kind: input, shape index: {}]
  %s3 = inlined_call_operand.vmem [shape: bf16[2,256], index: 3, kind: output, shape index: {}]
  %s4 = sld [smem:[#allocation0]]
  $region22: #{nn_forward.12} parent=0
    _
  %s6 = ssub.s32 1, %s4
  %s7 = scalar_select 0, %s6, %s4
  // Predicated region
  $region2: #{nn_forward.12} parent=0 // pred_check
    _
  $region3: #{nn_forward.12} parent=0 // pred_check_branch
    %9 = sbr.rel (0) target = $region5
  $region4: #{nn_forward.12} parent=0 // pred_region
    _
  $region5: #{nn_forward.12} parent=0 // pred_fallthru
    _
  // Predicated region
  $region6: #{nn_forward.12} parent=0 // pred_check
    _
  $region7: #{nn_forward.12} parent=0 // pred_check_branch
    %11 = sbr.rel (0) target = $region9
  $region8: #{nn_forward.12} parent=0 // pred_region
    _
  $region9: #{nn_forward.12} parent=0 // pred_fallthru
    _
  // Predicated region
  $region10: #{nn_forward.12} parent=0 // pred_check
    _
  $region11: #{nn_forward.12} parent=0 // pred_check_branch
    %13 = sbr.rel (0) target = $region13
  $region12: #{nn_forward.12} parent=0 // pred_region
    _
  $region13: #{nn_forward.12} parent=0 // pred_fallthru
    _
  %v14 = vld [vmem:[%s0] sm:$0xff]
  %v15 = vld [vmem:[%s0 + $0x8] sm:$0x1]
  %v16 = vld [vmem:[%s1] sm:$0xff]
  %v17 = vld [vmem:[%s1 + $0x8] sm:$0xff]
  %v18 = vld [vmem:[%s1 + $0x10] sm:$0xff]
  %v19 = vld [vmem:[%s1 + $0x18] sm:$0xff]
  %v20 = vld [vmem:[%s1 + $0x20] sm:$0xff]
  %v21 = vld [vmem:[%s1 + $0x28] sm:$0xff]
  %v22 = vld [vmem:[%s1 + $0x30] sm:$0xff]
  %v23 = vld [vmem:[%s1 + $0x38] sm:$0xff]
  %v24 = vld [vmem:[%s1 + $0x40] sm:$0xff]
  %v25 = vld [vmem:[%s1 + $0x48] sm:$0xff]
  %v26 = vld [vmem:[%s1 + $0x50] sm:$0xff]
  %v27 = vld [vmem:[%s1 + $0x58] sm:$0xff]
  %v28 = vld [vmem:[%s1 + $0x60] sm:$0xff]
  %v29 = vld [vmem:[%s1 + $0x68] sm:$0xff]
  %v30 = vld [vmem:[%s1 + $0x70] sm:$0xff]
  %v31 = vld [vmem:[%s1 + $0x78] sm:$0xff]
  %v32 = vld [vmem:[%s1 + $0x80] sm:$0xff]
  %v33 = vld [vmem:[%s1 + $0x88] sm:$0xff]
  %v34 = vld [vmem:[%s1 + $0x90] sm:$0xff]
  %v35 = vld [vmem:[%s1 + $0x98] sm:$0xff]
  %v36 = vld [vmem:[%s1 + $0xa0] sm:$0xff]
  %v37 = vld [vmem:[%s1 + $0xa8] sm:$0xff]
  %v38 = vld [vmem:[%s1 + $0xb0] sm:$0xff]
  %v39 = vld [vmem:[%s1 + $0xb8] sm:$0xff]
  %v40 = vld [vmem:[%s1 + $0xc0] sm:$0xff]
  %v41 = vld [vmem:[%s1 + $0xc8] sm:$0xff]
  %v42 = vld [vmem:[%s1 + $0xd0] sm:$0xff]
  %v43 = vld [vmem:[%s1 + $0xd8] sm:$0xff]
  %v44 = vld [vmem:[%s1 + $0xe0] sm:$0xff]
  %v45 = vld [vmem:[%s1 + $0xe8] sm:$0xff]
  %v46 = vld [vmem:[%s1 + $0xf0] sm:$0xff]
  %v47 = vld [vmem:[%s1 + $0xf8] sm:$0xff]
  %v48 = vld [vmem:[%s1 + $0x100] sm:$0xff]
  %v49 = vld [vmem:[%s1 + $0x108] sm:$0xff]
  %v50 = vld [vmem:[%s1 + $0x110] sm:$0xff]
  %v51 = vld [vmem:[%s1 + $0x118] sm:$0xff]
  %v52 = vld [vmem:[%s1 + $0x120] sm:$0xff]
  %v53 = vld [vmem:[%s1 + $0x128] sm:$0xff]
  %v54 = vld [vmem:[%s1 + $0x130] sm:$0xff]
  %v55 = vld [vmem:[%s1 + $0x138] sm:$0xff]
  %v56 = vld [vmem:[%s1 + $0x140] sm:$0xff]
  %v57 = vld [vmem:[%s1 + $0x148] sm:$0xff]
  %v58 = vld [vmem:[%s1 + $0x150] sm:$0xff]
  %v59 = vld [vmem:[%s1 + $0x158] sm:$0xff]
  %v60 = vld [vmem:[%s1 + $0x160] sm:$0xff]
  %v61 = vld [vmem:[%s1 + $0x168] sm:$0xff]
  %v62 = vld [vmem:[%s1 + $0x170] sm:$0xff]
  %v63 = vld [vmem:[%s1 + $0x178] sm:$0xff]
  %v64 = vld [vmem:[%s1 + $0x180] sm:$0xff]
  %v65 = vld [vmem:[%s1 + $0x188] sm:$0xff]
  %v66 = vld [vmem:[%s1 + $0x190] sm:$0xff]
  %v67 = vld [vmem:[%s1 + $0x198] sm:$0xff]
  %v68 = vld [vmem:[%s1 + $0x1a0] sm:$0xff]
  %v69 = vld [vmem:[%s1 + $0x1a8] sm:$0xff]
  %v70 = vld [vmem:[%s1 + $0x1b0] sm:$0xff]
  %v71 = vld [vmem:[%s1 + $0x1b8] sm:$0xff]
  %v72 = vld [vmem:[%s1 + $0x1c0] sm:$0xff]
  %v73 = vld [vmem:[%s1 + $0x1c8] sm:$0xff]
  %v74 = vld [vmem:[%s1 + $0x1d0] sm:$0xff]
  %v75 = vld [vmem:[%s1 + $0x1d8] sm:$0xff]
  %v76 = vld [vmem:[%s1 + $0x1e0] sm:$0xff]
  %v77 = vld [vmem:[%s1 + $0x1e8] sm:$0xff]
  %v78 = vld [vmem:[%s1 + $0x1f0] sm:$0xff]
  %v79 = vld [vmem:[%s1 + $0x1f8] sm:$0xff]
  %v80 = vld [vmem:[%s1 + $0x200] sm:$0xff]
  %v81 = vld [vmem:[%s1 + $0x208] sm:$0xff]
  %v82 = vld [vmem:[%s1 + $0x210] sm:$0xff]
  %v83 = vld [vmem:[%s1 + $0x218] sm:$0xff]
  %v84 = vld [vmem:[%s1 + $0x220] sm:$0xff]
  %v85 = vld [vmem:[%s1 + $0x228] sm:$0xff]
  %v86 = vld [vmem:[%s1 + $0x230] sm:$0xff]
  %v87 = vld [vmem:[%s1 + $0x238] sm:$0xff]
  %v88 = vld [vmem:[%s1 + $0x240] sm:$0xff]
  %v89 = vld [vmem:[%s1 + $0x248] sm:$0xff]
  %v90 = vld [vmem:[%s1 + $0x250] sm:$0xff]
  %v91 = vld [vmem:[%s1 + $0x258] sm:$0xff]
  %v92 = vld [vmem:[%s1 + $0x260] sm:$0xff]
  %v93 = vld [vmem:[%s1 + $0x268] sm:$0xff]
  %v94 = vld [vmem:[%s1 + $0x270] sm:$0xff]
  %v95 = vld [vmem:[%s1 + $0x278] sm:$0xff]
  %v96 = vld [vmem:[%s1 + $0x280] sm:$0xff]
  %v97 = vld [vmem:[%s1 + $0x288] sm:$0xff]
  %v98 = vld [vmem:[%s1 + $0x290] sm:$0xff]
  %v99 = vld [vmem:[%s1 + $0x298] sm:$0xff]
  %v100 = vld [vmem:[%s1 + $0x2a0] sm:$0xff]
  %v101 = vld [vmem:[%s1 + $0x2a8] sm:$0xff]
  %v102 = vld [vmem:[%s1 + $0x2b0] sm:$0xff]
  %v103 = vld [vmem:[%s1 + $0x2b8] sm:$0xff]
  %v104 = vld [vmem:[%s1 + $0x2c0] sm:$0xff]
  %v105 = vld [vmem:[%s1 + $0x2c8] sm:$0xff]
  %v106 = vld [vmem:[%s1 + $0x2d0] sm:$0xff]
  %v107 = vld [vmem:[%s1 + $0x2d8] sm:$0xff]
  %v108 = vld [vmem:[%s1 + $0x2e0] sm:$0xff]
  %v109 = vld [vmem:[%s1 + $0x2e8] sm:$0xff]
  %v110 = vld [vmem:[%s1 + $0x2f0] sm:$0xff]
  %v111 = vld [vmem:[%s1 + $0x2f8] sm:$0xff]
  %v112 = vld [vmem:[%s1 + $0x300] sm:$0xff]
  %v113 = vld [vmem:[%s1 + $0x308] sm:$0xff]
  %v114 = vld [vmem:[%s1 + $0x310] sm:$0xff]
  %v115 = vld [vmem:[%s1 + $0x318] sm:$0xff]
  %v116 = vld [vmem:[%s1 + $0x320] sm:$0xff]
  %v117 = vld [vmem:[%s1 + $0x328] sm:$0xff]
  %v118 = vld [vmem:[%s1 + $0x330] sm:$0xff]
  %v119 = vld [vmem:[%s1 + $0x338] sm:$0xff]
  %v120 = vld [vmem:[%s1 + $0x340] sm:$0xff]
  %v121 = vld [vmem:[%s1 + $0x348] sm:$0xff]
  %v122 = vld [vmem:[%s1 + $0x350] sm:$0xff]
  %v123 = vld [vmem:[%s1 + $0x358] sm:$0xff]
  %v124 = vld [vmem:[%s1 + $0x360] sm:$0xff]
  %v125 = vld [vmem:[%s1 + $0x368] sm:$0xff]
  %v126 = vld [vmem:[%s1 + $0x370] sm:$0xff]
  %v127 = vld [vmem:[%s1 + $0x378] sm:$0xff]
  %v128 = vld [vmem:[%s1 + $0x380] sm:$0xff]
  %v129 = vld [vmem:[%s1 + $0x388] sm:$0xff]
  %v130 = vld [vmem:[%s1 + $0x390] sm:$0xff]
  %v131 = vld [vmem:[%s1 + $0x398] sm:$0xff]
  %v132 = vld [vmem:[%s1 + $0x3a0] sm:$0xff]
  %v133 = vld [vmem:[%s1 + $0x3a8] sm:$0xff]
  %v134 = vld [vmem:[%s1 + $0x3b0] sm:$0xff]
  %v135 = vld [vmem:[%s1 + $0x3b8] sm:$0xff]
  %v136 = vld [vmem:[%s1 + $0x3c0] sm:$0xff]
  %v137 = vld [vmem:[%s1 + $0x3c8] sm:$0xff]
  %v138 = vld [vmem:[%s1 + $0x3d0] sm:$0xff]
  %v139 = vld [vmem:[%s1 + $0x3d8] sm:$0xff]
  %v140 = vld [vmem:[%s1 + $0x3e0] sm:$0xff]
  %v141 = vld [vmem:[%s1 + $0x3e8] sm:$0xff]
  %v142 = vld [vmem:[%s1 + $0x3f0] sm:$0xff]
  %v143 = vld [vmem:[%s1 + $0x3f8] sm:$0xff]
  %v144 = vld [vmem:[%s1 + $0x400] sm:$0xff]
  %v145 = vld [vmem:[%s1 + $0x408] sm:$0xff]
  %v146 = vld [vmem:[%s1 + $0x410] sm:$0xff]
  %v147 = vld [vmem:[%s1 + $0x418] sm:$0xff]
  %v148 = vld [vmem:[%s1 + $0x420] sm:$0xff]
  %v149 = vld [vmem:[%s1 + $0x428] sm:$0xff]
  %v150 = vld [vmem:[%s1 + $0x430] sm:$0xff]
  %v151 = vld [vmem:[%s1 + $0x438] sm:$0xff]
  %v152 = vld [vmem:[%s1 + $0x440] sm:$0xff]
  %v153 = vld [vmem:[%s1 + $0x448] sm:$0xff]
  %v154 = vld [vmem:[%s1 + $0x450] sm:$0xff]
  %v155 = vld [vmem:[%s1 + $0x458] sm:$0xff]
  %v156 = vld [vmem:[%s1 + $0x460] sm:$0xff]
  %v157 = vld [vmem:[%s1 + $0x468] sm:$0xff]
  %v158 = vld [vmem:[%s1 + $0x470] sm:$0xff]
  %v159 = vld [vmem:[%s1 + $0x478] sm:$0xff]
  %v160 = vld [vmem:[%s2] sm:$0x3]
  %v162 = vperm.slane %v160, 0
  %v163 = vperm.slane %v160, 1
  %167 = vst [vmem:[#allocation1] ss:$9 sm:$0xff] %v14
  %v168 = vld [vmem:[#allocation1] sm:$0xff]
  %v169 = vld [vmem:[#allocation1 + $0x9] sm:$0xff]
  %v170 = vld [vmem:[#allocation1 + $0x12] sm:$0xff]
  %v171 = vld [vmem:[#allocation1 + $0x1b] sm:$0xff]
  %v172 = vld [vmem:[#allocation1 + $0x24] sm:$0xff]
  %v173 = vld [vmem:[#allocation1 + $0x2d] sm:$0xff]
  %v174 = vld [vmem:[#allocation1 + $0x36] sm:$0xff]
  %v175 = vld [vmem:[#allocation1 + $0x3f] sm:$0xff]
  %177 = vst [vmem:[#allocation1] ss:$9 sm:$0xff] %v15
  %v178 = vld [vmem:[#allocation1] sm:$0xff]
  %v332 = vunpack.c.l.b16 %v16
  %v333 = vunpack.c.h.b16 %v16
  %v334 = vunpack.c.l.b16 %v17
  %v335 = vunpack.c.h.b16 %v17
  %v336 = vunpack.c.l.b16 %v18
  %v337 = vunpack.c.h.b16 %v18
  %v338 = vunpack.c.l.b16 %v19
  %v339 = vunpack.c.h.b16 %v19
  %v340 = vunpack.c.l.b16 %v20
  %v341 = vunpack.c.h.b16 %v20
  %v342 = vunpack.c.l.b16 %v21
  %v343 = vunpack.c.h.b16 %v21
  %v344 = vunpack.c.l.b16 %v22
  %v345 = vunpack.c.h.b16 %v22
  %v346 = vunpack.c.l.b16 %v23
  %v347 = vunpack.c.h.b16 %v23
  %v348 = vunpack.c.l.b16 %v24
  %v349 = vunpack.c.h.b16 %v24
  %v350 = vunpack.c.l.b16 %v25
  %v351 = vunpack.c.h.b16 %v25
  %v352 = vunpack.c.l.b16 %v26
  %v353 = vunpack.c.h.b16 %v26
  %v354 = vunpack.c.l.b16 %v27
  %v355 = vunpack.c.h.b16 %v27
  %v356 = vunpack.c.l.b16 %v28
  %v357 = vunpack.c.h.b16 %v28
  %v358 = vunpack.c.l.b16 %v29
  %v359 = vunpack.c.h.b16 %v29
  %v360 = vunpack.c.l.b16 %v30
  %v361 = vunpack.c.h.b16 %v30
  %v362 = vunpack.c.l.b16 %v31
  %v363 = vunpack.c.h.b16 %v31
  %v364 = vunpack.c.l.b16 %v32
  %v365 = vunpack.c.h.b16 %v32
  %v366 = vunpack.c.l.b16 %v33
  %v367 = vunpack.c.h.b16 %v33
  %v368 = vunpack.c.l.b16 %v34
  %v369 = vunpack.c.h.b16 %v34
  %v370 = vunpack.c.l.b16 %v35
  %v371 = vunpack.c.h.b16 %v35
  %v372 = vunpack.c.l.b16 %v36
  %v373 = vunpack.c.h.b16 %v36
  %v374 = vunpack.c.l.b16 %v37
  %v375 = vunpack.c.h.b16 %v37
  %v376 = vunpack.c.l.b16 %v38
  %v377 = vunpack.c.h.b16 %v38
  %v378 = vunpack.c.l.b16 %v39
  %v379 = vunpack.c.h.b16 %v39
  %v380 = vunpack.c.l.b16 %v40
  %v381 = vunpack.c.h.b16 %v40
  %v382 = vunpack.c.l.b16 %v41
  %v383 = vunpack.c.h.b16 %v41
  %v384 = vunpack.c.l.b16 %v42
  %v385 = vunpack.c.h.b16 %v42
  %v386 = vunpack.c.l.b16 %v43
  %v387 = vunpack.c.h.b16 %v43
  %v388 = vunpack.c.l.b16 %v44
  %v389 = vunpack.c.h.b16 %v44
  %v390 = vunpack.c.l.b16 %v45
  %v391 = vunpack.c.h.b16 %v45
  %v392 = vunpack.c.l.b16 %v46
  %v393 = vunpack.c.h.b16 %v46
  %v394 = vunpack.c.l.b16 %v47
  %v395 = vunpack.c.h.b16 %v47
  %v396 = vunpack.c.l.b16 %v48
  %v397 = vunpack.c.h.b16 %v48
  %v398 = vunpack.c.l.b16 %v49
  %v399 = vunpack.c.h.b16 %v49
  %v400 = vunpack.c.l.b16 %v50
  %v401 = vunpack.c.h.b16 %v50
  %v402 = vunpack.c.l.b16 %v51
  %v403 = vunpack.c.h.b16 %v51
  %v404 = vunpack.c.l.b16 %v52
  %v405 = vunpack.c.h.b16 %v52
  %v406 = vunpack.c.l.b16 %v53
  %v407 = vunpack.c.h.b16 %v53
  %v408 = vunpack.c.l.b16 %v54
  %v409 = vunpack.c.h.b16 %v54
  %v410 = vunpack.c.l.b16 %v55
  %v411 = vunpack.c.h.b16 %v55
  %v412 = vunpack.c.l.b16 %v56
  %v413 = vunpack.c.h.b16 %v56
  %v414 = vunpack.c.l.b16 %v57
  %v415 = vunpack.c.h.b16 %v57
  %v416 = vunpack.c.l.b16 %v58
  %v417 = vunpack.c.h.b16 %v58
  %v418 = vunpack.c.l.b16 %v59
  %v419 = vunpack.c.h.b16 %v59
  %v420 = vunpack.c.l.b16 %v60
  %v421 = vunpack.c.h.b16 %v60
  %v422 = vunpack.c.l.b16 %v61
  %v423 = vunpack.c.h.b16 %v61
  %v424 = vunpack.c.l.b16 %v62
  %v425 = vunpack.c.h.b16 %v62
  %v426 = vunpack.c.l.b16 %v63
  %v427 = vunpack.c.h.b16 %v63
  %v428 = vunpack.c.l.b16 %v64
  %v429 = vunpack.c.h.b16 %v64
  %v430 = vunpack.c.l.b16 %v65
  %v431 = vunpack.c.h.b16 %v65
  %v432 = vunpack.c.l.b16 %v66
  %v433 = vunpack.c.h.b16 %v66
  %v434 = vunpack.c.l.b16 %v67
  %v435 = vunpack.c.h.b16 %v67
  %v436 = vunpack.c.l.b16 %v68
  %v437 = vunpack.c.h.b16 %v68
  %v438 = vunpack.c.l.b16 %v69
  %v439 = vunpack.c.h.b16 %v69
  %v440 = vunpack.c.l.b16 %v70
  %v441 = vunpack.c.h.b16 %v70
  %v442 = vunpack.c.l.b16 %v71
  %v443 = vunpack.c.h.b16 %v71
  %v444 = vunpack.c.l.b16 %v72
  %v445 = vunpack.c.h.b16 %v72
  %v446 = vunpack.c.l.b16 %v73
  %v447 = vunpack.c.h.b16 %v73
  %v448 = vunpack.c.l.b16 %v74
  %v449 = vunpack.c.h.b16 %v74
  %v450 = vunpack.c.l.b16 %v75
  %v451 = vunpack.c.h.b16 %v75
  %v452 = vunpack.c.l.b16 %v76
  %v453 = vunpack.c.h.b16 %v76
  %v454 = vunpack.c.l.b16 %v77
  %v455 = vunpack.c.h.b16 %v77
  %v456 = vunpack.c.l.b16 %v78
  %v457 = vunpack.c.h.b16 %v78
  %v458 = vunpack.c.l.b16 %v79
  %v459 = vunpack.c.h.b16 %v79
  %v460 = vunpack.c.l.b16 %v80
  %v461 = vunpack.c.h.b16 %v80
  %v462 = vunpack.c.l.b16 %v81
  %v463 = vunpack.c.h.b16 %v81
  %v464 = vunpack.c.l.b16 %v82
  %v465 = vunpack.c.h.b16 %v82
  %v466 = vunpack.c.l.b16 %v83
  %v467 = vunpack.c.h.b16 %v83
  %v468 = vunpack.c.l.b16 %v84
  %v469 = vunpack.c.h.b16 %v84
  %v470 = vunpack.c.l.b16 %v85
  %v471 = vunpack.c.h.b16 %v85
  %v472 = vunpack.c.l.b16 %v86
  %v473 = vunpack.c.h.b16 %v86
  %v474 = vunpack.c.l.b16 %v87
  %v475 = vunpack.c.h.b16 %v87
  %v476 = vunpack.c.l.b16 %v88
  %v477 = vunpack.c.h.b16 %v88
  %v478 = vunpack.c.l.b16 %v89
  %v479 = vunpack.c.h.b16 %v89
  %v480 = vunpack.c.l.b16 %v90
  %v481 = vunpack.c.h.b16 %v90
  %v482 = vunpack.c.l.b16 %v91
  %v483 = vunpack.c.h.b16 %v91
  %v484 = vunpack.c.l.b16 %v92
  %v485 = vunpack.c.h.b16 %v92
  %v486 = vunpack.c.l.b16 %v93
  %v487 = vunpack.c.h.b16 %v93
  %v488 = vunpack.c.l.b16 %v94
  %v489 = vunpack.c.h.b16 %v94
  %v490 = vunpack.c.l.b16 %v95
  %v491 = vunpack.c.h.b16 %v95
  %v492 = vunpack.c.l.b16 %v96
  %v493 = vunpack.c.h.b16 %v96
  %v494 = vunpack.c.l.b16 %v97
  %v495 = vunpack.c.h.b16 %v97
  %v496 = vunpack.c.l.b16 %v98
  %v497 = vunpack.c.h.b16 %v98
  %v498 = vunpack.c.l.b16 %v99
  %v499 = vunpack.c.h.b16 %v99
  %v500 = vunpack.c.l.b16 %v100
  %v501 = vunpack.c.h.b16 %v100
  %v502 = vunpack.c.l.b16 %v101
  %v503 = vunpack.c.h.b16 %v101
  %v504 = vunpack.c.l.b16 %v102
  %v505 = vunpack.c.h.b16 %v102
  %v506 = vunpack.c.l.b16 %v103
  %v507 = vunpack.c.h.b16 %v103
  %v508 = vunpack.c.l.b16 %v104
  %v509 = vunpack.c.h.b16 %v104
  %v510 = vunpack.c.l.b16 %v105
  %v511 = vunpack.c.h.b16 %v105
  %v512 = vunpack.c.l.b16 %v106
  %v513 = vunpack.c.h.b16 %v106
  %v514 = vunpack.c.l.b16 %v107
  %v515 = vunpack.c.h.b16 %v107
  %v516 = vunpack.c.l.b16 %v108
  %v517 = vunpack.c.h.b16 %v108
  %v518 = vunpack.c.l.b16 %v109
  %v519 = vunpack.c.h.b16 %v109
  %v520 = vunpack.c.l.b16 %v110
  %v521 = vunpack.c.h.b16 %v110
  %v522 = vunpack.c.l.b16 %v111
  %v523 = vunpack.c.h.b16 %v111
  %v524 = vunpack.c.l.b16 %v112
  %v525 = vunpack.c.h.b16 %v112
  %v526 = vunpack.c.l.b16 %v113
  %v527 = vunpack.c.h.b16 %v113
  %v528 = vunpack.c.l.b16 %v114
  %v529 = vunpack.c.h.b16 %v114
  %v530 = vunpack.c.l.b16 %v115
  %v531 = vunpack.c.h.b16 %v115
  %v532 = vunpack.c.l.b16 %v116
  %v533 = vunpack.c.h.b16 %v116
  %v534 = vunpack.c.l.b16 %v117
  %v535 = vunpack.c.h.b16 %v117
  %v536 = vunpack.c.l.b16 %v118
  %v537 = vunpack.c.h.b16 %v118
  %v538 = vunpack.c.l.b16 %v119
  %v539 = vunpack.c.h.b16 %v119
  %v540 = vunpack.c.l.b16 %v120
  %v541 = vunpack.c.h.b16 %v120
  %v542 = vunpack.c.l.b16 %v121
  %v543 = vunpack.c.h.b16 %v121
  %v544 = vunpack.c.l.b16 %v122
  %v545 = vunpack.c.h.b16 %v122
  %v546 = vunpack.c.l.b16 %v123
  %v547 = vunpack.c.h.b16 %v123
  %v548 = vunpack.c.l.b16 %v124
  %v549 = vunpack.c.h.b16 %v124
  %v550 = vunpack.c.l.b16 %v125
  %v551 = vunpack.c.h.b16 %v125
  %v552 = vunpack.c.l.b16 %v126
  %v553 = vunpack.c.h.b16 %v126
  %v554 = vunpack.c.l.b16 %v127
  %v555 = vunpack.c.h.b16 %v127
  %v556 = vunpack.c.l.b16 %v128
  %v557 = vunpack.c.h.b16 %v128
  %v558 = vunpack.c.l.b16 %v129
  %v559 = vunpack.c.h.b16 %v129
  %v560 = vunpack.c.l.b16 %v130
  %v561 = vunpack.c.h.b16 %v130
  %v562 = vunpack.c.l.b16 %v131
  %v563 = vunpack.c.h.b16 %v131
  %v564 = vunpack.c.l.b16 %v132
  %v565 = vunpack.c.h.b16 %v132
  %v566 = vunpack.c.l.b16 %v133
  %v567 = vunpack.c.h.b16 %v133
  %v568 = vunpack.c.l.b16 %v134
  %v569 = vunpack.c.h.b16 %v134
  %v570 = vunpack.c.l.b16 %v135
  %v571 = vunpack.c.h.b16 %v135
  %v572 = vunpack.c.l.b16 %v136
  %v573 = vunpack.c.h.b16 %v136
  %v574 = vunpack.c.l.b16 %v137
  %v575 = vunpack.c.h.b16 %v137
  %v576 = vunpack.c.l.b16 %v138
  %v577 = vunpack.c.h.b16 %v138
  %v578 = vunpack.c.l.b16 %v139
  %v579 = vunpack.c.h.b16 %v139
  %v580 = vunpack.c.l.b16 %v140
  %v581 = vunpack.c.h.b16 %v140
  %v582 = vunpack.c.l.b16 %v141
  %v583 = vunpack.c.h.b16 %v141
  %v584 = vunpack.c.l.b16 %v142
  %v585 = vunpack.c.h.b16 %v142
  %v586 = vunpack.c.l.b16 %v143
  %v587 = vunpack.c.h.b16 %v143
  %v588 = vunpack.c.l.b16 %v144
  %v589 = vunpack.c.h.b16 %v144
  %v590 = vunpack.c.l.b16 %v145
  %v591 = vunpack.c.h.b16 %v145
  %v592 = vunpack.c.l.b16 %v146
  %v593 = vunpack.c.h.b16 %v146
  %v594 = vunpack.c.l.b16 %v147
  %v595 = vunpack.c.h.b16 %v147
  %v596 = vunpack.c.l.b16 %v148
  %v597 = vunpack.c.h.b16 %v148
  %v598 = vunpack.c.l.b16 %v149
  %v599 = vunpack.c.h.b16 %v149
  %v600 = vunpack.c.l.b16 %v150
  %v601 = vunpack.c.h.b16 %v150
  %v602 = vunpack.c.l.b16 %v151
  %v603 = vunpack.c.h.b16 %v151
  %v604 = vunpack.c.l.b16 %v152
  %v605 = vunpack.c.h.b16 %v152
  %v606 = vunpack.c.l.b16 %v153
  %v607 = vunpack.c.h.b16 %v153
  %v608 = vunpack.c.l.b16 %v154
  %v609 = vunpack.c.h.b16 %v154
  %v610 = vunpack.c.l.b16 %v155
  %v611 = vunpack.c.h.b16 %v155
  %v612 = vunpack.c.l.b16 %v156
  %v613 = vunpack.c.h.b16 %v156
  %v614 = vunpack.c.l.b16 %v157
  %v615 = vunpack.c.h.b16 %v157
  %v616 = vunpack.c.l.b16 %v158
  %v617 = vunpack.c.h.b16 %v158
  %v618 = vunpack.c.l.b16 %v159
  %v619 = vunpack.c.h.b16 %v159
  %v620 = vpack.c.b16 %v334, %v332
  %v621 = vpack.c.b16 %v335, %v333
  %v622 = vpack.c.b16 %v338, %v336
  %v623 = vpack.c.b16 %v339, %v337
  %v624 = vpack.c.b16 %v342, %v340
  %v625 = vpack.c.b16 %v343, %v341
  %v626 = vpack.c.b16 %v346, %v344
  %v627 = vpack.c.b16 %v347, %v345
  %v628 = vpack.c.b16 %v350, %v348
  %v629 = vpack.c.b16 %v351, %v349
  %v630 = vpack.c.b16 %v354, %v352
  %v631 = vpack.c.b16 %v355, %v353
  %v632 = vpack.c.b16 %v358, %v356
  %v633 = vpack.c.b16 %v359, %v357
  %v634 = vpack.c.b16 %v362, %v360
  %v635 = vpack.c.b16 %v363, %v361
  %v636 = vpack.c.b16 %v366, %v364
  %v637 = vpack.c.b16 %v367, %v365
  %v638 = vpack.c.b16 %v370, %v368
  %v639 = vpack.c.b16 %v371, %v369
  %v640 = vpack.c.b16 %v374, %v372
  %v641 = vpack.c.b16 %v375, %v373
  %v642 = vpack.c.b16 %v378, %v376
  %v643 = vpack.c.b16 %v379, %v377
  %v644 = vpack.c.b16 %v382, %v380
  %v645 = vpack.c.b16 %v383, %v381
  %v646 = vpack.c.b16 %v386, %v384
  %v647 = vpack.c.b16 %v387, %v385
  %v648 = vpack.c.b16 %v390, %v388
  %v649 = vpack.c.b16 %v391, %v389
  %v650 = vpack.c.b16 %v394, %v392
  %v651 = vpack.c.b16 %v395, %v393
  %v652 = vpack.c.b16 %v398, %v396
  %v653 = vpack.c.b16 %v399, %v397
  %v654 = vpack.c.b16 %v402, %v400
  %v655 = vpack.c.b16 %v403, %v401
  %v656 = vpack.c.b16 %v406, %v404
  %v657 = vpack.c.b16 %v407, %v405
  %v658 = vpack.c.b16 %v410, %v408
  %v659 = vpack.c.b16 %v411, %v409
  %v660 = vpack.c.b16 %v414, %v412
  %v661 = vpack.c.b16 %v415, %v413
  %v662 = vpack.c.b16 %v418, %v416
  %v663 = vpack.c.b16 %v419, %v417
  %v664 = vpack.c.b16 %v422, %v420
  %v665 = vpack.c.b16 %v423, %v421
  %v666 = vpack.c.b16 %v426, %v424
  %v667 = vpack.c.b16 %v427, %v425
  %v668 = vpack.c.b16 %v430, %v428
  %v669 = vpack.c.b16 %v431, %v429
  %v670 = vpack.c.b16 %v434, %v432
  %v671 = vpack.c.b16 %v435, %v433
  %v672 = vpack.c.b16 %v438, %v436
  %v673 = vpack.c.b16 %v439, %v437
  %v674 = vpack.c.b16 %v442, %v440
  %v675 = vpack.c.b16 %v443, %v441
  %v676 = vpack.c.b16 %v446, %v444
  %v677 = vpack.c.b16 %v447, %v445
  %v678 = vpack.c.b16 %v450, %v448
  %v679 = vpack.c.b16 %v451, %v449
  %v680 = vpack.c.b16 %v454, %v452
  %v681 = vpack.c.b16 %v455, %v453
  %v682 = vpack.c.b16 %v458, %v456
  %v683 = vpack.c.b16 %v459, %v457
  %v684 = vpack.c.b16 %v462, %v460
  %v685 = vpack.c.b16 %v463, %v461
  %v686 = vpack.c.b16 %v466, %v464
  %v687 = vpack.c.b16 %v467, %v465
  %v688 = vpack.c.b16 %v470, %v468
  %v689 = vpack.c.b16 %v471, %v469
  %v690 = vpack.c.b16 %v474, %v472
  %v691 = vpack.c.b16 %v475, %v473
  %v692 = vpack.c.b16 %v478, %v476
  %v693 = vpack.c.b16 %v479, %v477
  %v694 = vpack.c.b16 %v482, %v480
  %v695 = vpack.c.b16 %v483, %v481
  %v696 = vpack.c.b16 %v486, %v484
  %v697 = vpack.c.b16 %v487, %v485
  %v698 = vpack.c.b16 %v490, %v488
  %v699 = vpack.c.b16 %v491, %v489
  %v700 = vpack.c.b16 %v494, %v492
  %v701 = vpack.c.b16 %v495, %v493
  %v702 = vpack.c.b16 %v498, %v496
  %v703 = vpack.c.b16 %v499, %v497
  %v704 = vpack.c.b16 %v502, %v500
  %v705 = vpack.c.b16 %v503, %v501
  %v706 = vpack.c.b16 %v506, %v504
  %v707 = vpack.c.b16 %v507, %v505
  %v708 = vpack.c.b16 %v510, %v508
  %v709 = vpack.c.b16 %v511, %v509
  %v710 = vpack.c.b16 %v514, %v512
  %v711 = vpack.c.b16 %v515, %v513
  %v712 = vpack.c.b16 %v518, %v516
  %v713 = vpack.c.b16 %v519, %v517
  %v714 = vpack.c.b16 %v522, %v520
  %v715 = vpack.c.b16 %v523, %v521
  %v716 = vpack.c.b16 %v526, %v524
  %v717 = vpack.c.b16 %v527, %v525
  %v718 = vpack.c.b16 %v530, %v528
  %v719 = vpack.c.b16 %v531, %v529
  %v720 = vpack.c.b16 %v534, %v532
  %v721 = vpack.c.b16 %v535, %v533
  %v722 = vpack.c.b16 %v538, %v536
  %v723 = vpack.c.b16 %v539, %v537
  %v724 = vpack.c.b16 %v542, %v540
  %v725 = vpack.c.b16 %v543, %v541
  %v726 = vpack.c.b16 %v546, %v544
  %v727 = vpack.c.b16 %v547, %v545
  %v728 = vpack.c.b16 %v550, %v548
  %v729 = vpack.c.b16 %v551, %v549
  %v730 = vpack.c.b16 %v554, %v552
  %v731 = vpack.c.b16 %v555, %v553
  %v732 = vpack.c.b16 %v558, %v556
  %v733 = vpack.c.b16 %v559, %v557
  %v734 = vpack.c.b16 %v562, %v560
  %v735 = vpack.c.b16 %v563, %v561
  %v736 = vpack.c.b16 %v566, %v564
  %v737 = vpack.c.b16 %v567, %v565
  %v738 = vpack.c.b16 %v570, %v568
  %v739 = vpack.c.b16 %v571, %v569
  %v740 = vpack.c.b16 %v574, %v572
  %v741 = vpack.c.b16 %v575, %v573
  %v742 = vpack.c.b16 %v578, %v576
  %v743 = vpack.c.b16 %v579, %v577
  %v744 = vpack.c.b16 %v582, %v580
  %v745 = vpack.c.b16 %v583, %v581
  %v746 = vpack.c.b16 %v586, %v584
  %v747 = vpack.c.b16 %v587, %v585
  %v748 = vpack.c.b16 %v590, %v588
  %v749 = vpack.c.b16 %v591, %v589
  %v750 = vpack.c.b16 %v594, %v592
  %v751 = vpack.c.b16 %v595, %v593
  %v752 = vpack.c.b16 %v598, %v596
  %v753 = vpack.c.b16 %v599, %v597
  %v754 = vpack.c.b16 %v602, %v600
  %v755 = vpack.c.b16 %v603, %v601
  %v756 = vpack.c.b16 %v606, %v604
  %v757 = vpack.c.b16 %v607, %v605
  %v758 = vpack.c.b16 %v610, %v608
  %v759 = vpack.c.b16 %v611, %v609
  %v760 = vpack.c.b16 %v614, %v612
  %v761 = vpack.c.b16 %v615, %v613
  %v762 = vpack.c.b16 %v618, %v616
  %v763 = vpack.c.b16 %v619, %v617
  %908 = vmatpush.bf16.msra.mxu0 %v634
  %909 = vmatpush.bf16.msra.mxu0 %v632
  %910 = vmatpush.bf16.msra.mxu0 %v630
  %911 = vmatpush.bf16.msra.mxu0 %v628
  %912 = vmatpush.bf16.msra.mxu0 %v626
  %913 = vmatpush.bf16.msra.mxu0 %v624
  %914 = vmatpush.bf16.msra.mxu0 %v622
  %915 = vmatpush.bf16.msra.mxu0 %v620
  %916 = vmatmul.bf16.gmra.mxu0 %v168
  %v917 = vpop.f32.mrf.mxu0
  %v918 = vadd.f32 %v162, %v917
  %v919 = vpop.f32.mrf.mxu0
  %920 = vdwg.mxu0
  %921 = vmatpush.bf16.msra.mxu0 %v650
  %922 = vmatpush.bf16.msra.mxu0 %v648
  %923 = vmatpush.bf16.msra.mxu0 %v646
  %924 = vmatpush.bf16.msra.mxu0 %v644
  %925 = vmatpush.bf16.msra.mxu0 %v642
  %926 = vmatpush.bf16.msra.mxu0 %v640
  %927 = vmatpush.bf16.msra.mxu0 %v638
  %928 = vmatpush.bf16.msra.mxu0 %v636
  %929 = vmatmul.bf16.gmra.mxu0 %v169
  %v930 = vpop.f32.mrf.mxu0
  %v931 = vadd.f32 %v918, %v930
  %v932 = vpop.f32.mrf.mxu0
  %933 = vdwg.mxu0
  %934 = vmatpush.bf16.msra.mxu0 %v666
  %935 = vmatpush.bf16.msra.mxu0 %v664
  %936 = vmatpush.bf16.msra.mxu0 %v662
  %937 = vmatpush.bf16.msra.mxu0 %v660
  %938 = vmatpush.bf16.msra.mxu0 %v658
  %939 = vmatpush.bf16.msra.mxu0 %v656
  %940 = vmatpush.bf16.msra.mxu0 %v654
  %941 = vmatpush.bf16.msra.mxu0 %v652
  %942 = vmatmul.bf16.gmra.mxu0 %v170
  %v943 = vpop.f32.mrf.mxu0
  %v944 = vadd.f32 %v931, %v943
  %v945 = vpop.f32.mrf.mxu0
  %946 = vdwg.mxu0
  %947 = vmatpush.bf16.msra.mxu0 %v682
  %948 = vmatpush.bf16.msra.mxu0 %v680
  %949 = vmatpush.bf16.msra.mxu0 %v678
  %950 = vmatpush.bf16.msra.mxu0 %v676
  %951 = vmatpush.bf16.msra.mxu0 %v674
  %952 = vmatpush.bf16.msra.mxu0 %v672
  %953 = vmatpush.bf16.msra.mxu0 %v670
  %954 = vmatpush.bf16.msra.mxu0 %v668
  %955 = vmatmul.bf16.gmra.mxu0 %v171
  %v956 = vpop.f32.mrf.mxu0
  %v957 = vadd.f32 %v944, %v956
  %v958 = vpop.f32.mrf.mxu0
  %959 = vdwg.mxu0
  %960 = vmatpush.bf16.msra.mxu0 %v698
  %961 = vmatpush.bf16.msra.mxu0 %v696
  %962 = vmatpush.bf16.msra.mxu0 %v694
  %963 = vmatpush.bf16.msra.mxu0 %v692
  %964 = vmatpush.bf16.msra.mxu0 %v690
  %965 = vmatpush.bf16.msra.mxu0 %v688
  %966 = vmatpush.bf16.msra.mxu0 %v686
  %967 = vmatpush.bf16.msra.mxu0 %v684
  %968 = vmatmul.bf16.gmra.mxu0 %v172
  %v969 = vpop.f32.mrf.mxu0
  %v970 = vadd.f32 %v957, %v969
  %v971 = vpop.f32.mrf.mxu0
  %972 = vdwg.mxu0
  %973 = vmatpush.bf16.msra.mxu0 %v714
  %974 = vmatpush.bf16.msra.mxu0 %v712
  %975 = vmatpush.bf16.msra.mxu0 %v710
  %976 = vmatpush.bf16.msra.mxu0 %v708
  %977 = vmatpush.bf16.msra.mxu0 %v706
  %978 = vmatpush.bf16.msra.mxu0 %v704
  %979 = vmatpush.bf16.msra.mxu0 %v702
  %980 = vmatpush.bf16.msra.mxu0 %v700
  %981 = vmatmul.bf16.gmra.mxu0 %v173
  %v982 = vpop.f32.mrf.mxu0
  %v983 = vadd.f32 %v970, %v982
  %v984 = vpop.f32.mrf.mxu0
  %985 = vdwg.mxu0
  %986 = vmatpush.bf16.msra.mxu0 %v730
  %987 = vmatpush.bf16.msra.mxu0 %v728
  %988 = vmatpush.bf16.msra.mxu0 %v726
  %989 = vmatpush.bf16.msra.mxu0 %v724
  %990 = vmatpush.bf16.msra.mxu0 %v722
  %991 = vmatpush.bf16.msra.mxu0 %v720
  %992 = vmatpush.bf16.msra.mxu0 %v718
  %993 = vmatpush.bf16.msra.mxu0 %v716
  %994 = vmatmul.bf16.gmra.mxu0 %v174
  %v995 = vpop.f32.mrf.mxu0
  %v996 = vadd.f32 %v983, %v995
  %v997 = vpop.f32.mrf.mxu0
  %998 = vdwg.mxu0
  %999 = vmatpush.bf16.msra.mxu0 %v746
  %1000 = vmatpush.bf16.msra.mxu0 %v744
  %1001 = vmatpush.bf16.msra.mxu0 %v742
  %1002 = vmatpush.bf16.msra.mxu0 %v740
  %1003 = vmatpush.bf16.msra.mxu0 %v738
  %1004 = vmatpush.bf16.msra.mxu0 %v736
  %1005 = vmatpush.bf16.msra.mxu0 %v734
  %1006 = vmatpush.bf16.msra.mxu0 %v732
  %1007 = vmatmul.bf16.gmra.mxu0 %v175
  %v1008 = vpop.f32.mrf.mxu0
  %v1009 = vadd.f32 %v996, %v1008
  %v1010 = vpop.f32.mrf.mxu0
  %1011 = vdwg.mxu0
  %1012 = vmatpush.bf16.msra.mxu0 %v762
  %1013 = vmatpush.bf16.msra.mxu0 %v760
  %1014 = vmatpush.bf16.msra.mxu0 %v758
  %1015 = vmatpush.bf16.msra.mxu0 %v756
  %1016 = vmatpush.bf16.msra.mxu0 %v754
  %1017 = vmatpush.bf16.msra.mxu0 %v752
  %1018 = vmatpush.bf16.msra.mxu0 %v750
  %1019 = vmatpush.bf16.msra.mxu0 %v748
  %1020 = vmatmul.bf16.gmra.mxu0 %v178
  %v1021 = vpop.f32.mrf.mxu0
  %v1022 = vadd.f32 %v1009, %v1021
  %v1023 = vpop.f32.mrf.mxu0
  %1024 = vdwg.mxu0
  %1025 = vmatpush.bf16.msra.mxu0 %v635
  %1026 = vmatpush.bf16.msra.mxu0 %v633
  %1027 = vmatpush.bf16.msra.mxu0 %v631
  %1028 = vmatpush.bf16.msra.mxu0 %v629
  %1029 = vmatpush.bf16.msra.mxu0 %v627
  %1030 = vmatpush.bf16.msra.mxu0 %v625
  %1031 = vmatpush.bf16.msra.mxu0 %v623
  %1032 = vmatpush.bf16.msra.mxu0 %v621
  %1033 = vmatmul.bf16.gmra.mxu0 %v168
  %v1034 = vpop.f32.mrf.mxu0
  %v1035 = vadd.f32 %v163, %v1034
  %v1036 = vpop.f32.mrf.mxu0
  %1037 = vdwg.mxu0
  %1038 = vmatpush.bf16.msra.mxu0 %v651
  %1039 = vmatpush.bf16.msra.mxu0 %v649
  %1040 = vmatpush.bf16.msra.mxu0 %v647
  %1041 = vmatpush.bf16.msra.mxu0 %v645
  %1042 = vmatpush.bf16.msra.mxu0 %v643
  %1043 = vmatpush.bf16.msra.mxu0 %v641
  %1044 = vmatpush.bf16.msra.mxu0 %v639
  %1045 = vmatpush.bf16.msra.mxu0 %v637
  %1046 = vmatmul.bf16.gmra.mxu0 %v169
  %v1047 = vpop.f32.mrf.mxu0
  %v1048 = vadd.f32 %v1035, %v1047
  %v1049 = vpop.f32.mrf.mxu0
  %1050 = vdwg.mxu0
  %1051 = vmatpush.bf16.msra.mxu0 %v667
  %1052 = vmatpush.bf16.msra.mxu0 %v665
  %1053 = vmatpush.bf16.msra.mxu0 %v663
  %1054 = vmatpush.bf16.msra.mxu0 %v661
  %1055 = vmatpush.bf16.msra.mxu0 %v659
  %1056 = vmatpush.bf16.msra.mxu0 %v657
  %1057 = vmatpush.bf16.msra.mxu0 %v655
  %1058 = vmatpush.bf16.msra.mxu0 %v653
  %1059 = vmatmul.bf16.gmra.mxu0 %v170
  %v1060 = vpop.f32.mrf.mxu0
  %v1061 = vadd.f32 %v1048, %v1060
  %v1062 = vpop.f32.mrf.mxu0
  %1063 = vdwg.mxu0
  %1064 = vmatpush.bf16.msra.mxu0 %v683
  %1065 = vmatpush.bf16.msra.mxu0 %v681
  %1066 = vmatpush.bf16.msra.mxu0 %v679
  %1067 = vmatpush.bf16.msra.mxu0 %v677
  %1068 = vmatpush.bf16.msra.mxu0 %v675
  %1069 = vmatpush.bf16.msra.mxu0 %v673
  %1070 = vmatpush.bf16.msra.mxu0 %v671
  %1071 = vmatpush.bf16.msra.mxu0 %v669
  %1072 = vmatmul.bf16.gmra.mxu0 %v171
  %v1073 = vpop.f32.mrf.mxu0
  %v1074 = vadd.f32 %v1061, %v1073
  %v1075 = vpop.f32.mrf.mxu0
  %1076 = vdwg.mxu0
  %1077 = vmatpush.bf16.msra.mxu0 %v699
  %1078 = vmatpush.bf16.msra.mxu0 %v697
  %1079 = vmatpush.bf16.msra.mxu0 %v695
  %1080 = vmatpush.bf16.msra.mxu0 %v693
  %1081 = vmatpush.bf16.msra.mxu0 %v691
  %1082 = vmatpush.bf16.msra.mxu0 %v689
  %1083 = vmatpush.bf16.msra.mxu0 %v687
  %1084 = vmatpush.bf16.msra.mxu0 %v685
  %1085 = vmatmul.bf16.gmra.mxu0 %v172
  %v1086 = vpop.f32.mrf.mxu0
  %v1087 = vadd.f32 %v1074, %v1086
  %v1088 = vpop.f32.mrf.mxu0
  %1089 = vdwg.mxu0
  %1090 = vmatpush.bf16.msra.mxu0 %v715
  %1091 = vmatpush.bf16.msra.mxu0 %v713
  %1092 = vmatpush.bf16.msra.mxu0 %v711
  %1093 = vmatpush.bf16.msra.mxu0 %v709
  %1094 = vmatpush.bf16.msra.mxu0 %v707
  %1095 = vmatpush.bf16.msra.mxu0 %v705
  %1096 = vmatpush.bf16.msra.mxu0 %v703
  %1097 = vmatpush.bf16.msra.mxu0 %v701
  %1098 = vmatmul.bf16.gmra.mxu0 %v173
  %v1099 = vpop.f32.mrf.mxu0
  %v1100 = vadd.f32 %v1087, %v1099
  %v1101 = vpop.f32.mrf.mxu0
  %1102 = vdwg.mxu0
  %1103 = vmatpush.bf16.msra.mxu0 %v731
  %1104 = vmatpush.bf16.msra.mxu0 %v729
  %1105 = vmatpush.bf16.msra.mxu0 %v727
  %1106 = vmatpush.bf16.msra.mxu0 %v725
  %1107 = vmatpush.bf16.msra.mxu0 %v723
  %1108 = vmatpush.bf16.msra.mxu0 %v721
  %1109 = vmatpush.bf16.msra.mxu0 %v719
  %1110 = vmatpush.bf16.msra.mxu0 %v717
  %1111 = vmatmul.bf16.gmra.mxu0 %v174
  %v1112 = vpop.f32.mrf.mxu0
  %v1113 = vadd.f32 %v1100, %v1112
  %v1114 = vpop.f32.mrf.mxu0
  %1115 = vdwg.mxu0
  %1116 = vmatpush.bf16.msra.mxu0 %v747
  %1117 = vmatpush.bf16.msra.mxu0 %v745
  %1118 = vmatpush.bf16.msra.mxu0 %v743
  %1119 = vmatpush.bf16.msra.mxu0 %v741
  %1120 = vmatpush.bf16.msra.mxu0 %v739
  %1121 = vmatpush.bf16.msra.mxu0 %v737
  %1122 = vmatpush.bf16.msra.mxu0 %v735
  %1123 = vmatpush.bf16.msra.mxu0 %v733
  %1124 = vmatmul.bf16.gmra.mxu0 %v175
  %v1125 = vpop.f32.mrf.mxu0
  %v1126 = vadd.f32 %v1113, %v1125
  %v1127 = vpop.f32.mrf.mxu0
  %1128 = vdwg.mxu0
  %1129 = vmatpush.bf16.msra.mxu0 %v763
  %1130 = vmatpush.bf16.msra.mxu0 %v761
  %1131 = vmatpush.bf16.msra.mxu0 %v759
  %1132 = vmatpush.bf16.msra.mxu0 %v757
  %1133 = vmatpush.bf16.msra.mxu0 %v755
  %1134 = vmatpush.bf16.msra.mxu0 %v753
  %1135 = vmatpush.bf16.msra.mxu0 %v751
  %1136 = vmatpush.bf16.msra.mxu0 %v749
  %1137 = vmatmul.bf16.gmra.mxu0 %v178
  %v1138 = vpop.f32.mrf.mxu0
  %v1139 = vadd.f32 %v1126, %v1138
  %v1140 = vpop.f32.mrf.mxu0
  %1141 = vdwg.mxu0
  %v1142 = vmax.f32 %v1022, 0.0
  %v1143 = vmax.f32 %v1139, 0.0
  %v1144 = vpack.c.bf16 %v1143, %v1142
  %v1146 = vrot.slane %v1144, 3
  %vm1147 = vcmask 1040384
  %v1150 = vsel %vm1147, %v1144, %v1146
  %1152 = vst [vmem:[%s3] sm:$0x3] %v1150
  // Predicated region
  $region14: #{nn_forward.12} parent=0 // pred_check
    _
  $region15: #{nn_forward.12} parent=0 // pred_check_branch
    %1154 = sbr.rel (0) target = $region17
  $region16: #{nn_forward.12} parent=0 // pred_region
    _
  $region17: #{nn_forward.12} parent=0 // pred_fallthru
    _
  // Predicated region
  $region18: #{nn_forward.12} parent=0 // pred_check
    _
  $region19: #{nn_forward.12} parent=0 // pred_check_branch
    %1156 = sbr.rel (0) target = $region21
  $region20: #{nn_forward.12} parent=0 // pred_region
    _
  $region21: #{nn_forward.12} parent=0 // pred_fallthru
    _

// kernel: nn_forward.13
$region0: #{nn_forward.13}
  #allocation0 [shape = 'u32[]', space=smem, size = 0x4, offset = 0x4, fixed_abs, tag = 'smem constant byte address 0x4 - core index']
  #allocation1 [shape = 'u32[72,128]{1,0:T(1,128)}', space=vmem, size = 0x9000, scoped, tag = 'internal scratch']
  #allocation2 [shape = 'f32[1,1]{1,0:T(1,128)S(1)}', space=vmem, size = 0x200, scoped, tag = 'scoped memory for nn_forward.13']
  %s0 = inlined_call_operand.vmem [shape: bf16[2,256], index: 0, kind: input, shape index: {}]
  %s1 = inlined_call_operand.vmem [shape: bf16[256,256], index: 1, kind: input, shape index: {}]
  %s2 = inlined_call_operand.vmem [shape: f32[1,256], index: 2, kind: input, shape index: {}]
  %s3 = inlined_call_operand.vmem [shape: f32[128,6], index: 3, kind: input, shape index: {}]
  %s4 = inlined_call_operand.vmem [shape: f32[1,6], index: 4, kind: input, shape index: {}]
  %s5 = inlined_call_operand.vmem [shape: f32[128,1], index: 5, kind: input, shape index: {}]
  %s6 = inlined_call_operand.<no memory space> [shape: f32[1,1], index: 6, kind: input, shape index: {}]
  %s7 = inlined_call_operand.vmem [shape: f32[2,6], index: 7, kind: output, shape index: {0}]
  %s8 = inlined_call_operand.vmem [shape: f32[2,1], index: 8, kind: output, shape index: {1}]
  %9 = xla_tuple %s7, %s8
  %s10 = sld [smem:[#allocation0]]
  $region46: #{nn_forward.13} parent=0
    _
  %s12 = ssub.s32 1, %s10
  %s13 = scalar_select 0, %s12, %s10
  %v14 = vstv %s6
  %15 = vst [vmem:[#allocation2] sm:$0x1] %v14
  // Predicated region
  $region2: #{nn_forward.13} parent=0 // pred_check
    _
  $region3: #{nn_forward.13} parent=0 // pred_check_branch
    %17 = sbr.rel (0) target = $region5
  $region4: #{nn_forward.13} parent=0 // pred_region
    _
  $region5: #{nn_forward.13} parent=0 // pred_fallthru
    _
  // Predicated region
  $region6: #{nn_forward.13} parent=0 // pred_check
    _
  $region7: #{nn_forward.13} parent=0 // pred_check_branch
    %19 = sbr.rel (0) target = $region9
  $region8: #{nn_forward.13} parent=0 // pred_region
    _
  $region9: #{nn_forward.13} parent=0 // pred_fallthru
    _
  // Predicated region
  $region10: #{nn_forward.13} parent=0 // pred_check
    _
  $region11: #{nn_forward.13} parent=0 // pred_check_branch
    %21 = sbr.rel (0) target = $region13
  $region12: #{nn_forward.13} parent=0 // pred_region
    _
  $region13: #{nn_forward.13} parent=0 // pred_fallthru
    _
  // Predicated region
  $region14: #{nn_forward.13} parent=0 // pred_check
    _
  $region15: #{nn_forward.13} parent=0 // pred_check_branch
    %23 = sbr.rel (0) target = $region17
  $region16: #{nn_forward.13} parent=0 // pred_region
    _
  $region17: #{nn_forward.13} parent=0 // pred_fallthru
    _
  // Predicated region
  $region18: #{nn_forward.13} parent=0 // pred_check
    _
  $region19: #{nn_forward.13} parent=0 // pred_check_branch
    %25 = sbr.rel (0) target = $region21
  $region20: #{nn_forward.13} parent=0 // pred_region
    _
  $region21: #{nn_forward.13} parent=0 // pred_fallthru
    _
  // Predicated region
  $region22: #{nn_forward.13} parent=0 // pred_check
    _
  $region23: #{nn_forward.13} parent=0 // pred_check_branch
    %27 = sbr.rel (0) target = $region25
  $region24: #{nn_forward.13} parent=0 // pred_region
    _
  $region25: #{nn_forward.13} parent=0 // pred_fallthru
    _
  // Predicated region
  $region26: #{nn_forward.13} parent=0 // pred_check
    _
  $region27: #{nn_forward.13} parent=0 // pred_check_branch
    %29 = sbr.rel (0) target = $region29
  $region28: #{nn_forward.13} parent=0 // pred_region
    _
  $region29: #{nn_forward.13} parent=0 // pred_fallthru
    _
  %v30 = vld [vmem:[%s0] sm:$0x3]
  %v31 = vld [vmem:[%s1] sm:$0xff]
  %v32 = vld [vmem:[%s1 + $0x8] sm:$0xff]
  %v33 = vld [vmem:[%s1 + $0x10] sm:$0xff]
  %v34 = vld [vmem:[%s1 + $0x18] sm:$0xff]
  %v35 = vld [vmem:[%s1 + $0x20] sm:$0xff]
  %v36 = vld [vmem:[%s1 + $0x28] sm:$0xff]
  %v37 = vld [vmem:[%s1 + $0x30] sm:$0xff]
  %v38 = vld [vmem:[%s1 + $0x38] sm:$0xff]
  %v39 = vld [vmem:[%s1 + $0x40] sm:$0xff]
  %v40 = vld [vmem:[%s1 + $0x48] sm:$0xff]
  %v41 = vld [vmem:[%s1 + $0x50] sm:$0xff]
  %v42 = vld [vmem:[%s1 + $0x58] sm:$0xff]
  %v43 = vld [vmem:[%s1 + $0x60] sm:$0xff]
  %v44 = vld [vmem:[%s1 + $0x68] sm:$0xff]
  %v45 = vld [vmem:[%s1 + $0x70] sm:$0xff]
  %v46 = vld [vmem:[%s1 + $0x78] sm:$0xff]
  %v47 = vld [vmem:[%s1 + $0x80] sm:$0xff]
  %v48 = vld [vmem:[%s1 + $0x88] sm:$0xff]
  %v49 = vld [vmem:[%s1 + $0x90] sm:$0xff]
  %v50 = vld [vmem:[%s1 + $0x98] sm:$0xff]
  %v51 = vld [vmem:[%s1 + $0xa0] sm:$0xff]
  %v52 = vld [vmem:[%s1 + $0xa8] sm:$0xff]
  %v53 = vld [vmem:[%s1 + $0xb0] sm:$0xff]
  %v54 = vld [vmem:[%s1 + $0xb8] sm:$0xff]
  %v55 = vld [vmem:[%s1 + $0xc0] sm:$0xff]
  %v56 = vld [vmem:[%s1 + $0xc8] sm:$0xff]
  %v57 = vld [vmem:[%s1 + $0xd0] sm:$0xff]
  %v58 = vld [vmem:[%s1 + $0xd8] sm:$0xff]
  %v59 = vld [vmem:[%s1 + $0xe0] sm:$0xff]
  %v60 = vld [vmem:[%s1 + $0xe8] sm:$0xff]
  %v61 = vld [vmem:[%s1 + $0xf0] sm:$0xff]
  %v62 = vld [vmem:[%s1 + $0xf8] sm:$0xff]
  %v63 = vld [vmem:[%s2] sm:$0x3]
  %v65 = vperm.slane %v63, 0
  %v66 = vperm.slane %v63, 1
  %70 = vst [vmem:[#allocation1] ss:$9 sm:$0xff] %v30
  %v71 = vld [vmem:[#allocation1] sm:$0xff]
  %v72 = vld [vmem:[#allocation1 + $0x9] sm:$0xff]
  %v107 = vunpack.c.l.b16 %v31
  %v108 = vunpack.c.h.b16 %v31
  %v109 = vunpack.c.l.b16 %v32
  %v110 = vunpack.c.h.b16 %v32
  %v111 = vunpack.c.l.b16 %v33
  %v112 = vunpack.c.h.b16 %v33
  %v113 = vunpack.c.l.b16 %v34
  %v114 = vunpack.c.h.b16 %v34
  %v115 = vunpack.c.l.b16 %v35
  %v116 = vunpack.c.h.b16 %v35
  %v117 = vunpack.c.l.b16 %v36
  %v118 = vunpack.c.h.b16 %v36
  %v119 = vunpack.c.l.b16 %v37
  %v120 = vunpack.c.h.b16 %v37
  %v121 = vunpack.c.l.b16 %v38
  %v122 = vunpack.c.h.b16 %v38
  %v123 = vunpack.c.l.b16 %v39
  %v124 = vunpack.c.h.b16 %v39
  %v125 = vunpack.c.l.b16 %v40
  %v126 = vunpack.c.h.b16 %v40
  %v127 = vunpack.c.l.b16 %v41
  %v128 = vunpack.c.h.b16 %v41
  %v129 = vunpack.c.l.b16 %v42
  %v130 = vunpack.c.h.b16 %v42
  %v131 = vunpack.c.l.b16 %v43
  %v132 = vunpack.c.h.b16 %v43
  %v133 = vunpack.c.l.b16 %v44
  %v134 = vunpack.c.h.b16 %v44
  %v135 = vunpack.c.l.b16 %v45
  %v136 = vunpack.c.h.b16 %v45
  %v137 = vunpack.c.l.b16 %v46
  %v138 = vunpack.c.h.b16 %v46
  %v139 = vunpack.c.l.b16 %v47
  %v140 = vunpack.c.h.b16 %v47
  %v141 = vunpack.c.l.b16 %v48
  %v142 = vunpack.c.h.b16 %v48
  %v143 = vunpack.c.l.b16 %v49
  %v144 = vunpack.c.h.b16 %v49
  %v145 = vunpack.c.l.b16 %v50
  %v146 = vunpack.c.h.b16 %v50
  %v147 = vunpack.c.l.b16 %v51
  %v148 = vunpack.c.h.b16 %v51
  %v149 = vunpack.c.l.b16 %v52
  %v150 = vunpack.c.h.b16 %v52
  %v151 = vunpack.c.l.b16 %v53
  %v152 = vunpack.c.h.b16 %v53
  %v153 = vunpack.c.l.b16 %v54
  %v154 = vunpack.c.h.b16 %v54
  %v155 = vunpack.c.l.b16 %v55
  %v156 = vunpack.c.h.b16 %v55
  %v157 = vunpack.c.l.b16 %v56
  %v158 = vunpack.c.h.b16 %v56
  %v159 = vunpack.c.l.b16 %v57
  %v160 = vunpack.c.h.b16 %v57
  %v161 = vunpack.c.l.b16 %v58
  %v162 = vunpack.c.h.b16 %v58
  %v163 = vunpack.c.l.b16 %v59
  %v164 = vunpack.c.h.b16 %v59
  %v165 = vunpack.c.l.b16 %v60
  %v166 = vunpack.c.h.b16 %v60
  %v167 = vunpack.c.l.b16 %v61
  %v168 = vunpack.c.h.b16 %v61
  %v169 = vunpack.c.l.b16 %v62
  %v170 = vunpack.c.h.b16 %v62
  %v171 = vpack.c.b16 %v109, %v107
  %v172 = vpack.c.b16 %v110, %v108
  %v173 = vpack.c.b16 %v113, %v111
  %v174 = vpack.c.b16 %v114, %v112
  %v175 = vpack.c.b16 %v117, %v115
  %v176 = vpack.c.b16 %v118, %v116
  %v177 = vpack.c.b16 %v121, %v119
  %v178 = vpack.c.b16 %v122, %v120
  %v179 = vpack.c.b16 %v125, %v123
  %v180 = vpack.c.b16 %v126, %v124
  %v181 = vpack.c.b16 %v129, %v127
  %v182 = vpack.c.b16 %v130, %v128
  %v183 = vpack.c.b16 %v133, %v131
  %v184 = vpack.c.b16 %v134, %v132
  %v185 = vpack.c.b16 %v137, %v135
  %v186 = vpack.c.b16 %v138, %v136
  %v187 = vpack.c.b16 %v141, %v139
  %v188 = vpack.c.b16 %v142, %v140
  %v189 = vpack.c.b16 %v145, %v143
  %v190 = vpack.c.b16 %v146, %v144
  %v191 = vpack.c.b16 %v149, %v147
  %v192 = vpack.c.b16 %v150, %v148
  %v193 = vpack.c.b16 %v153, %v151
  %v194 = vpack.c.b16 %v154, %v152
  %v195 = vpack.c.b16 %v157, %v155
  %v196 = vpack.c.b16 %v158, %v156
  %v197 = vpack.c.b16 %v161, %v159
  %v198 = vpack.c.b16 %v162, %v160
  %v199 = vpack.c.b16 %v165, %v163
  %v200 = vpack.c.b16 %v166, %v164
  %v201 = vpack.c.b16 %v169, %v167
  %v202 = vpack.c.b16 %v170, %v168
  %235 = vmatpush.bf16.msra.mxu0 %v185
  %236 = vmatpush.bf16.msra.mxu0 %v183
  %237 = vmatpush.bf16.msra.mxu0 %v181
  %238 = vmatpush.bf16.msra.mxu0 %v179
  %239 = vmatpush.bf16.msra.mxu0 %v177
  %240 = vmatpush.bf16.msra.mxu0 %v175
  %241 = vmatpush.bf16.msra.mxu0 %v173
  %242 = vmatpush.bf16.msra.mxu0 %v171
  %243 = vmatmul.bf16.gmra.mxu0 %v71
  %v244 = vpop.f32.mrf.mxu0
  %v245 = vadd.f32 %v65, %v244
  %v246 = vpop.f32.mrf.mxu0
  %247 = vdwg.mxu0
  %248 = vmatpush.bf16.msra.mxu0 %v201
  %249 = vmatpush.bf16.msra.mxu0 %v199
  %250 = vmatpush.bf16.msra.mxu0 %v197
  %251 = vmatpush.bf16.msra.mxu0 %v195
  %252 = vmatpush.bf16.msra.mxu0 %v193
  %253 = vmatpush.bf16.msra.mxu0 %v191
  %254 = vmatpush.bf16.msra.mxu0 %v189
  %255 = vmatpush.bf16.msra.mxu0 %v187
  %256 = vmatmul.bf16.gmra.mxu0 %v72
  %v257 = vpop.f32.mrf.mxu0
  %v258 = vadd.f32 %v245, %v257
  %v259 = vpop.f32.mrf.mxu0
  %260 = vdwg.mxu0
  %261 = vmatpush.bf16.msra.mxu0 %v186
  %262 = vmatpush.bf16.msra.mxu0 %v184
  %263 = vmatpush.bf16.msra.mxu0 %v182
  %264 = vmatpush.bf16.msra.mxu0 %v180
  %265 = vmatpush.bf16.msra.mxu0 %v178
  %266 = vmatpush.bf16.msra.mxu0 %v176
  %267 = vmatpush.bf16.msra.mxu0 %v174
  %268 = vmatpush.bf16.msra.mxu0 %v172
  %269 = vmatmul.bf16.gmra.mxu0 %v71
  %v270 = vpop.f32.mrf.mxu0
  %v271 = vadd.f32 %v66, %v270
  %v272 = vpop.f32.mrf.mxu0
  %273 = vdwg.mxu0
  %274 = vmatpush.bf16.msra.mxu0 %v202
  %275 = vmatpush.bf16.msra.mxu0 %v200
  %276 = vmatpush.bf16.msra.mxu0 %v198
  %277 = vmatpush.bf16.msra.mxu0 %v196
  %278 = vmatpush.bf16.msra.mxu0 %v194
  %279 = vmatpush.bf16.msra.mxu0 %v192
  %280 = vmatpush.bf16.msra.mxu0 %v190
  %281 = vmatpush.bf16.msra.mxu0 %v188
  %282 = vmatmul.bf16.gmra.mxu0 %v72
  %v283 = vpop.f32.mrf.mxu0
  %v284 = vadd.f32 %v271, %v283
  %v285 = vpop.f32.mrf.mxu0
  %286 = vdwg.mxu0
  %v287 = vmax.f32 %v258, 0.0
  %v288 = vmax.f32 %v284, 0.0
  %v289 = vld [vmem:[%s3] sm:$0xff]
  %v290 = vld [vmem:[%s3 + $0x8] sm:$0xff]
  %v291 = vld [vmem:[%s3 + $0x10] sm:$0xff]
  %v292 = vld [vmem:[%s3 + $0x18] sm:$0xff]
  %v293 = vld [vmem:[%s3 + $0x20] sm:$0xff]
  %v294 = vld [vmem:[%s3 + $0x28] sm:$0xff]
  %v295 = vld [vmem:[%s3 + $0x30] sm:$0xff]
  %v296 = vld [vmem:[%s3 + $0x38] sm:$0xff]
  %v297 = vld [vmem:[%s3 + $0x40] sm:$0xff]
  %v298 = vld [vmem:[%s3 + $0x48] sm:$0xff]
  %v299 = vld [vmem:[%s3 + $0x50] sm:$0xff]
  %v300 = vld [vmem:[%s3 + $0x58] sm:$0xff]
  %v301 = vld [vmem:[%s3 + $0x60] sm:$0xff]
  %v302 = vld [vmem:[%s3 + $0x68] sm:$0xff]
  %v303 = vld [vmem:[%s3 + $0x70] sm:$0xff]
  %v304 = vld [vmem:[%s3 + $0x78] sm:$0xff]
  %v305 = vld [vmem:[%s4] sm:$0x1]
  %v307 = vperm.slane %v305, 0
  %309 = vmatpush.msra.mxu0 %v304
  %310 = vmatpush.msra.mxu0 %v303
  %311 = vmatpush.msra.mxu0 %v302
  %312 = vmatpush.msra.mxu0 %v301
  %313 = vmatpush.msra.mxu0 %v300
  %314 = vmatpush.msra.mxu0 %v299
  %315 = vmatpush.msra.mxu0 %v298
  %316 = vmatpush.msra.mxu0 %v297
  %317 = vmatpush.msra.mxu0 %v296
  %318 = vmatpush.msra.mxu0 %v295
  %319 = vmatpush.msra.mxu0 %v294
  %320 = vmatpush.msra.mxu0 %v293
  %321 = vmatpush.msra.mxu0 %v292
  %322 = vmatpush.msra.mxu0 %v291
  %323 = vmatpush.msra.mxu0 %v290
  %324 = vmatpush.msra.mxu0 %v289
  %325 = vmatmul.f32.gmra.mxu0 %v287
  %v326 = vpop.f32.mrf.mxu0
  %v327 = vadd.f32 %v307, %v326
  %328 = vdwg.mxu0
  %v329 = vmax.f32 %v327, 0.0
  %v330 = vand.u32 2147483647, %v327
  %v331 = vsub.f32 0.0, %v330
  %v332 = vmul.f32 %v331, 1.442695
  %v333 = vpow.pop %v332
  %v334 = vadd.f32 %v333, 1.0
  %v335 = vlog2.pop %v334
  %v336 = vmul.f32 %v335, 0.6931472
  %v337 = vmul.f32 -0.5, %v333
  %v338 = vadd.f32 %v337, 1.0
  %v339 = vmul.f32 %v338, %v333
  %v340 = vand.u32 2147483647, %v333
  %vm341 = vcmp.lt.f32.partialorder %v340, 0.0004427343
  %v342 = vsel %vm341, %v339, %v336
  %v343 = vadd.f32 %v329, %v342
  %v344 = vadd.f32 %v343, 1.0
  %v345 = vld [vmem:[%s5] sm:$0xff]
  %v346 = vld [vmem:[%s5 + $0x8] sm:$0xff]
  %v347 = vld [vmem:[%s5 + $0x10] sm:$0xff]
  %v348 = vld [vmem:[%s5 + $0x18] sm:$0xff]
  %v349 = vld [vmem:[%s5 + $0x20] sm:$0xff]
  %v350 = vld [vmem:[%s5 + $0x28] sm:$0xff]
  %v351 = vld [vmem:[%s5 + $0x30] sm:$0xff]
  %v352 = vld [vmem:[%s5 + $0x38] sm:$0xff]
  %v353 = vld [vmem:[%s5 + $0x40] sm:$0xff]
  %v354 = vld [vmem:[%s5 + $0x48] sm:$0xff]
  %v355 = vld [vmem:[%s5 + $0x50] sm:$0xff]
  %v356 = vld [vmem:[%s5 + $0x58] sm:$0xff]
  %v357 = vld [vmem:[%s5 + $0x60] sm:$0xff]
  %v358 = vld [vmem:[%s5 + $0x68] sm:$0xff]
  %v359 = vld [vmem:[%s5 + $0x70] sm:$0xff]
  %v360 = vld [vmem:[%s5 + $0x78] sm:$0xff]
  %v361 = vld [vmem:[#allocation2] sm:$0x1]
  %v363 = vperm.slane %v361, 0
  %365 = vmatpush.msra.mxu0 %v360
  %366 = vmatpush.msra.mxu0 %v359
  %367 = vmatpush.msra.mxu0 %v358
  %368 = vmatpush.msra.mxu0 %v357
  %369 = vmatpush.msra.mxu0 %v356
  %370 = vmatpush.msra.mxu0 %v355
  %371 = vmatpush.msra.mxu0 %v354
  %372 = vmatpush.msra.mxu0 %v353
  %373 = vmatpush.msra.mxu0 %v352
  %374 = vmatpush.msra.mxu0 %v351
  %375 = vmatpush.msra.mxu0 %v350
  %376 = vmatpush.msra.mxu0 %v349
  %377 = vmatpush.msra.mxu0 %v348
  %378 = vmatpush.msra.mxu0 %v347
  %379 = vmatpush.msra.mxu0 %v346
  %380 = vmatpush.msra.mxu0 %v345
  %381 = vmatmul.f32.gmra.mxu0 %v288
  %v382 = vpop.f32.mrf.mxu0
  %v383 = vadd.f32 %v363, %v382
  %384 = vdwg.mxu0
  %vm385 = vcmask 41984
  %386 = vst.msk [vmem:[%s7] sm:$0x3] %vm385, %v344
  %vm387 = vcmask 1024
  %388 = vst.msk [vmem:[%s8] sm:$0x3] %vm387, %v383
  // Predicated region
  $region30: #{nn_forward.13} parent=0 // pred_check
    _
  $region31: #{nn_forward.13} parent=0 // pred_check_branch
    %390 = sbr.rel (0) target = $region33
  $region32: #{nn_forward.13} parent=0 // pred_region
    _
  $region33: #{nn_forward.13} parent=0 // pred_fallthru
    _
  // Predicated region
  $region34: #{nn_forward.13} parent=0 // pred_check
    _
  $region35: #{nn_forward.13} parent=0 // pred_check_branch
    %392 = sbr.rel (0) target = $region37
  $region36: #{nn_forward.13} parent=0 // pred_region
    _
  $region37: #{nn_forward.13} parent=0 // pred_fallthru
    _
  // Predicated region
  $region38: #{nn_forward.13} parent=0 // pred_check
    _
  $region39: #{nn_forward.13} parent=0 // pred_check_branch
    %394 = sbr.rel (0) target = $region41
  $region40: #{nn_forward.13} parent=0 // pred_region
    _
  $region41: #{nn_forward.13} parent=0 // pred_fallthru
    _
  // Predicated region
  $region42: #{nn_forward.13} parent=0 // pred_check
    _
  $region43: #{nn_forward.13} parent=0 // pred_check_branch
    %396 = sbr.rel (0) target = $region45
  $region44: #{nn_forward.13} parent=0 // pred_region
    _
  $region45: #{nn_forward.13} parent=0 // pred_fallthru
    _

</llo_original>
